<compile_context>
chip_gen: v7x
topology: tpu7x:2x2x1
jax: 0.10.0
libtpu: 0.0.40
codegen_flags: <defaults>
</compile_context>

<pallas_src>
import jax
import jax.numpy as jnp
from jax.experimental import pallas as pl
from jax.experimental.pallas import tpu as pltpu

# ---------------- model hyper-params (small, consistent with the module) ----------------
VOCAB = 50
VOCAB_PAD = 128         # vocab padded to a full lane width for the one-hot matmul
EMBED_DIM = 16
HIDDEN_DIM = 32         # hidden_dim
HIDDEN_DIM2 = 16        # hidden_dim2
N_LAYERS = 2
OUTPUT_SIZE = 1
BATCH = 2
SEQ = 8

# ---------------- packed-parameter buffer row layout (single (P_ROWS, 16H) f32 input) ----
R_T0 = 0                                        # (VOCAB_PAD, 16H) emb @ [Wih_f|Wih_b] layer 0
R_WIH1 = R_T0 + VOCAB_PAD                       # (2H, 16H)        [Wih_f|Wih_b] layer 1
R_WHH = R_WIH1 + 2 * HIDDEN_DIM                 # (2H, 16H)        whh0 in cols 0:8H, whh1 in 8H:16H
R_BIAS = R_WHH + 2 * HIDDEN_DIM                 # row R_BIAS+l     per-layer bias (zeros | b_f+b_b)
R_HEADW = ((R_BIAS + N_LAYERS + 7) // 8) * 8    # (H, 128)         folded fc2(fc1(.)) weight, col 0
R_HEADB = R_HEADW + HIDDEN_DIM                  # row              folded head bias, col 0
P_ROWS = ((R_HEADB + 1 + 7) // 8) * 8

# Gate column order inside each 8H block: [ f | i | o | g ], each 2H wide = [fwd H | bwd H].
# f and o land at offset 0 of their 128-lane tile (aligned with c / tanh(c)); the tanh
# gate g occupies only the high half of the second tile.
GATE_POS = (1, 0, 3, 2)                         # PyTorch gate k (i,f,g,o) -> packed block index

_VMEM = pl.BlockSpec(memory_space=pltpu.MemorySpace.VMEM)


# ---------------- the fused Pallas kernel ----------------
def bilstm_kernel(ids_ref, state0_ref, params_ref, out_ref, gx_scr):
    """Entire BiLSTM forward in one kernel.

    ids_ref   : (T*BP, 1) int32   time-major token ids (row = t*BP + b), batch padded to BP=8
    state0_ref: (NL, BP, 4H)      initial state per layer: [h_fwd|h_bwd|c_fwd|c_bwd]
    params_ref: (P_ROWS, 16H)     all weights packed once host-side (see row layout above)
    out_ref   : (NL+1, BP, 4H)    rows 0..NL-1: final [h|c] per layer; row NL: sigmoid head (col 0)
    gx_scr    : (T*BP, 16H)       hoisted per-layer input projections
                                  (fwd gates in lanes 0:8H, bwd gates + bias in 8H:16H)
    """
    NL, BP, _ = state0_ref.shape
    H = state0_ref.shape[2] // 4
    G2, G8 = 2 * H, 8 * H
    TB = ids_ref.shape[0]
    T = TB // BP

    # ---- one-hot token matmul prologue (gather-free); embedding pre-folded into T0 ----
    onehot = (jax.lax.broadcasted_iota(jnp.int32, (TB, VOCAB_PAD), 1)
              == ids_ref[...]).astype(jnp.float32)                       # (T*BP, VP)

    # tanh lanes (= g gate) are the high half of the second 128-lane gate tile (hoisted once)
    tanh_mask = jax.lax.broadcasted_iota(jnp.int32, (BP, 2 * G2), 1) >= G2

    def run_layer(layer, collect):
        whh = params_ref[R_WHH:R_WHH + G2, layer * G8:(layer + 1) * G8]  # (2H, 8H)
        st = state0_ref[layer]                                           # (BP, 4H)
        h = st[:, 0:G2]                                                  # [h_fwd | h_bwd]
        c = st[:, G2:2 * G2]                                             # [c_fwd | c_bwd]
        hs = []
        head = None

        # Fully unrolled recurrence (T static). Per-step gx slices are whole
        # 8-sublane, 128-lane-aligned tiles; no stores happen inside the loop.
        for s in range(T):
            rb = T - 1 - s                       # time index seen by the backward direction
            gx = (gx_scr[s * BP:(s + 1) * BP, 0:G8]
                  + gx_scr[rb * BP:(rb + 1) * BP, G8:2 * G8])
            gates = gx + jnp.dot(h, whh, preferred_element_type=jnp.float32)   # (BP, 8H)
            lo = jax.nn.sigmoid(gates[:, 0:2 * G2])                      # [ f | i ]
            hi_pre = gates[:, 2 * G2:4 * G2]                             # [ o | g ]
            hi = jnp.where(tanh_mask, jnp.tanh(hi_pre), jax.nn.sigmoid(hi_pre))
            f_g, i_g = lo[:, 0:G2], lo[:, G2:2 * G2]
            o_g, g_g = hi[:, 0:G2], hi[:, G2:2 * G2]
            c = f_g * c + i_g * g_g
            h = o_g * jnp.tanh(c)
            if collect:
                hs.append(h)                     # kept as values; assembled after the loop
            if s == 0:
                head = h[:, H:G2]                # bwd hidden @ time T-1 (feeds the FC head)

        out_ref[layer] = jnp.concatenate([h, c], axis=1)   # lane-dense (BP, 4H) final state
        return hs, head

    # ---- layer 0: projection for ALL timesteps in one matmul (embedding + both dirs fused) ----
    gx_scr[...] = (jnp.dot(onehot, params_ref[R_T0:R_T0 + VOCAB_PAD, :],
                           preferred_element_type=jnp.float32)
                   + params_ref[R_BIAS:R_BIAS + 1, :])
    hs0, _ = run_layer(0, collect=True)

    # ---- layer 1: split-feature projection (fwd rows + bwd rows), no per-step stores / concats --
    xf = jnp.concatenate([hs0[t][:, 0:H] for t in range(T)], axis=0)           # (T*BP, H)
    xb = jnp.concatenate([hs0[T - 1 - t][:, H:G2] for t in range(T)], axis=0)  # (T*BP, H)
    gx_scr[...] = (jnp.dot(xf, params_ref[R_WIH1:R_WIH1 + H, :],
                           preferred_element_type=jnp.float32)
                   + jnp.dot(xb, params_ref[R_WIH1 + H:R_WIH1 + G2, :],
                             preferred_element_type=jnp.float32)
                   + params_ref[R_BIAS + 1:R_BIAS + 2, :])
    _, head_in = run_layer(1, collect=False)

    # ---- FC head: fc2(fc1(.)) folded host-side; dropout is identity in eval mode ----
    z = (jnp.dot(head_in, params_ref[R_HEADW:R_HEADW + H, 0:4 * H],
                 preferred_element_type=jnp.float32)
         + params_ref[R_HEADB:R_HEADB + 1, 0:4 * H])                     # (BP, 128), col 0 real
    out_ref[NL] = jax.nn.sigmoid(z)


# ---------------- wrapper ----------------
def bilstm_forward(packed, x_tokens, hidden):
    """Matches BiLSTM.forward (eval mode): returns (sig_out (B,), (h_n, c_n)) in PyTorch layout."""
    h0, c0 = hidden
    B, T = x_tokens.shape
    H = HIDDEN_DIM
    BP = ((B + 7) // 8) * 8                     # pad batch to full 8-sublane tiles

    # time-major ids, padded batch rows use token 0 (their outputs are discarded)
    ids_tm = (jnp.zeros((T, BP), jnp.int32)
              .at[:, :B].set(jnp.transpose(x_tokens).astype(jnp.int32))
              .reshape(T * BP, 1))

    # per-layer packed initial state: (NL, BP, 4H) = [h_fwd|h_bwd|c_fwd|c_bwd]
    h0c = h0.reshape(N_LAYERS, 2, B, H).transpose(0, 2, 1, 3).reshape(N_LAYERS, B, 2 * H)
    c0c = c0.reshape(N_LAYERS, 2, B, H).transpose(0, 2, 1, 3).reshape(N_LAYERS, B, 2 * H)
    state0 = (jnp.zeros((N_LAYERS, BP, 4 * H), jnp.float32)
              .at[:, :B, 0:2 * H].set(h0c)
              .at[:, :B, 2 * H:4 * H].set(c0c))

    out = pl.pallas_call(
        bilstm_kernel,
        out_shape=jax.ShapeDtypeStruct((N_LAYERS + 1, BP, 4 * H), jnp.float32),
        in_specs=[_VMEM, _VMEM, _VMEM],
        out_specs=_VMEM,
        scratch_shapes=[pltpu.VMEM((T * BP, 16 * H), jnp.float32)],  # hoisted input projections
    )(ids_tm, state0, packed["params"])

    # split the lane-dense packed output back into PyTorch layout
    state = out[:N_LAYERS, :B, :]
    hn = (state[:, :, 0:2 * H].reshape(N_LAYERS, B, 2, H)
          .transpose(0, 2, 1, 3).reshape(2 * N_LAYERS, B, H))
    cn = (state[:, :, 2 * H:4 * H].reshape(N_LAYERS, B, 2, H)
          .transpose(0, 2, 1, 3).reshape(2 * N_LAYERS, B, H))
    sig = out[N_LAYERS, :B, 0]
    return sig, (hn, cn)


# ---------------- parameter init (PyTorch-shaped) + one-time packing ----------------
def init_params(key):
    keys = iter(jax.random.split(key, 32))

    def rnd(shape, scale=0.1):
        return (scale * jax.random.normal(next(keys), shape)).astype(jnp.float32)

    params = {"embedding": rnd((VOCAB, EMBED_DIM), 1.0)}
    layers = []
    for layer in range(N_LAYERS):
        in_dim = EMBED_DIM if layer == 0 else 2 * HIDDEN_DIM
        lp = {}
        for d in ("f", "b"):
            lp[f"w_ih_{d}"] = rnd((4 * HIDDEN_DIM, in_dim))      # PyTorch (4H, in)
            lp[f"w_hh_{d}"] = rnd((4 * HIDDEN_DIM, HIDDEN_DIM))  # PyTorch (4H, H)
            lp[f"b_ih_{d}"] = rnd((4 * HIDDEN_DIM,))
            lp[f"b_hh_{d}"] = rnd((4 * HIDDEN_DIM,))
        layers.append(lp)
    params["lstm"] = layers
    params["fc1_w"] = rnd((HIDDEN_DIM2, HIDDEN_DIM))             # fullyconnect1 (out, in)
    params["fc1_b"] = rnd((HIDDEN_DIM2,))
    params["fc2_w"] = rnd((OUTPUT_SIZE, HIDDEN_DIM2))            # fullyconnect2 (out, in)
    params["fc2_b"] = rnd((OUTPUT_SIZE,))
    return params


def pack_params(params):
    """One-time host-side repack of PyTorch-layout weights into a single kernel buffer.

    Per layer the fwd / bwd input->gate weights are concatenated along columns into a
    (in, 16H) matrix (fwd gate columns in 0:8H, bwd in 8H:16H, each half zero in the other
    direction's lanes).  Layer 0 additionally has the embedding folded in (emb @ Wih).
    The bias (b_ih + b_hh, both directions placed in their lanes) lives only in the bwd
    half so the per-step fwd+bwd add applies it exactly once.  fc2(fc1(.)) is folded into
    a single (H, 1) weight + scalar bias (exact in eval mode: no nonlinearity between them).
    """
    H, G2, G8 = HIDDEN_DIM, 2 * HIDDEN_DIM, 8 * HIDDEN_DIM
    assert sorted(GATE_POS) == [0, 1, 2, 3]
    hp = jax.lax.Precision.HIGHEST

    def ih_wide(w_ih, d):               # PyTorch (4H, in) -> (in, 8H), direction-d columns only
        wide = jnp.zeros((w_ih.shape[1], G8), jnp.float32)
        for k in range(4):              # PyTorch gate order i, f, g, o
            cols = slice(GATE_POS[k] * G2 + d * H, GATE_POS[k] * G2 + (d + 1) * H)
            wide = wide.at[:, cols].set(jnp.transpose(w_ih[k * H:(k + 1) * H, :]))
        return wide

    def hh_wide(w_hh_f, w_hh_b):        # each (4H, H) -> (2H, 8H), block-diagonal per direction
        wide = jnp.zeros((G2, G8), jnp.float32)
        for d, w in enumerate((w_hh_f, w_hh_b)):
            for k in range(4):
                cols = slice(GATE_POS[k] * G2 + d * H, GATE_POS[k] * G2 + (d + 1) * H)
                wide = wide.at[d * H:(d + 1) * H, cols].set(
                    jnp.transpose(w[k * H:(k + 1) * H, :]))
        return wide

    def b_wide(b_f, b_b):               # each (4H,) -> (1, 8H) with both directions placed
        wide = jnp.zeros((1, G8), jnp.float32)
        for d, b in enumerate((b_f, b_b)):
            for k in range(4):
                cols = slice(GATE_POS[k] * G2 + d * H, GATE_POS[k] * G2 + (d + 1) * H)
                wide = wide.at[0, cols].set(b[k * H:(k + 1) * H])
        return wide

    emb_pad = (jnp.zeros((VOCAB_PAD, EMBED_DIM), jnp.float32)
               .at[:VOCAB].set(params["embedding"]))

    buf = jnp.zeros((P_ROWS, 2 * G8), jnp.float32)
    for l, lp in enumerate(params["lstm"]):
        wih = jnp.concatenate([ih_wide(lp["w_ih_f"], 0), ih_wide(lp["w_ih_b"], 1)], axis=1)
        if l == 0:
            buf = buf.at[R_T0:R_T0 + VOCAB_PAD, :].set(
                jnp.dot(emb_pad, wih, precision=hp))        # fold embedding into layer 0
        else:
            buf = buf.at[R_WIH1:R_WIH1 + G2, :].set(wih)
        buf = buf.at[R_WHH:R_WHH + G2, l * G8:(l + 1) * G8].set(
            hh_wide(lp["w_hh_f"], lp["w_hh_b"]))
        bias = b_wide(lp["b_ih_f"] + lp["b_hh_f"], lp["b_ih_b"] + lp["b_hh_b"])
        buf = buf.at[R_BIAS + l, G8:2 * G8].set(bias[0])    # bias only in the bwd half
    # fold fc1 -> fc2 (no nonlinearity between; dropout is identity in eval mode)
    wc = jnp.dot(jnp.transpose(params["fc1_w"]), jnp.transpose(params["fc2_w"]), precision=hp)
    bc = jnp.dot(params["fc1_b"], jnp.transpose(params["fc2_w"]), precision=hp) + params["fc2_b"]
    buf = buf.at[R_HEADW:R_HEADW + HIDDEN_DIM, 0].set(wc[:, 0])
    buf = buf.at[R_HEADB, 0].set(bc[0])
    return {"params": buf}


def init_hidden(batch_size):
    shape = (N_LAYERS * 2, batch_size, HIDDEN_DIM)
    return (jnp.zeros(shape, jnp.float32), jnp.zeros(shape, jnp.float32))


# ---------------- pure-JAX reference (mirrors the PyTorch module, eval mode) ----------------
def bilstm_reference(params, x_tokens, hidden):
    h0, c0 = hidden
    B, T = x_tokens.shape
    H = HIDDEN_DIM
    x_seq = params["embedding"][x_tokens]                      # (B, T, E)

    def run_dir(x_in, w_ih, w_hh, b_ih, b_hh, h, c, reverse):
        outs = [None] * T
        order = range(T - 1, -1, -1) if reverse else range(T)
        for t in order:
            gates = x_in[:, t, :] @ w_ih.T + b_ih + h @ w_hh.T + b_hh
            i, f, g, o = jnp.split(gates, 4, axis=1)
            i, f, o = jax.nn.sigmoid(i), jax.nn.sigmoid(f), jax.nn.sigmoid(o)
            g = jnp.tanh(g)
            c = f * c + i * g
            h = o * jnp.tanh(c)
            outs[t] = h
        return jnp.stack(outs, axis=1), h, c                   # (B, T, H)

    layer_in = x_seq
    hn, cn = [], []
    for l, lp in enumerate(params["lstm"]):
        of, hf, cf = run_dir(layer_in, lp["w_ih_f"], lp["w_hh_f"],
                             lp["b_ih_f"], lp["b_hh_f"], h0[2 * l], c0[2 * l], False)
        ob, hb, cb = run_dir(layer_in, lp["w_ih_b"], lp["w_hh_b"],
                             lp["b_ih_b"], lp["b_hh_b"], h0[2 * l + 1], c0[2 * l + 1], True)
        layer_in = jnp.concatenate([of, ob], axis=-1)          # (B, T, 2H)
        hn += [hf, hb]
        cn += [cf, cb]

    flat = layer_in.reshape(-1, H)                             # PyTorch .view(-1, hidden_dim)
    z = flat @ params["fc1_w"].T + params["fc1_b"]
    z = z @ params["fc2_w"].T + params["fc2_b"]
    sig = jax.nn.sigmoid(z).reshape(B, -1)[:, -1]
    return sig, (jnp.stack(hn), jnp.stack(cn))


if __name__ == "__main__":
    key = jax.random.PRNGKey(0)
    pkey, xkey, hkey, ckey = jax.random.split(key, 4)
    params = init_params(pkey)
    packed = pack_params(params)        # one-time weight packing (like a weight load)

    x = jax.random.randint(xkey, (BATCH, SEQ), 0, VOCAB, dtype=jnp.int32)
    # non-zero hidden exercises the h0/c0 path (init_hidden() gives the usual zeros)
    hidden = (0.1 * jax.random.normal(hkey, (2 * N_LAYERS, BATCH, HIDDEN_DIM), jnp.float32),
              0.1 * jax.random.normal(ckey, (2 * N_LAYERS, BATCH, HIDDEN_DIM), jnp.float32))

    fwd = jax.jit(bilstm_forward)
    sig_out, (hn, cn) = fwd(packed, x, hidden)
    jax.block_until_ready((sig_out, hn, cn))

    assert sig_out.shape == (BATCH,)
    assert hn.shape == (2 * N_LAYERS, BATCH, HIDDEN_DIM)
    assert cn.shape == (2 * N_LAYERS, BATCH, HIDDEN_DIM)
    assert bool(jnp.all(jnp.isfinite(sig_out)))

    # numeric check against the pure-JAX mirror of the PyTorch module
    ref_sig, (ref_hn, ref_cn) = bilstm_reference(params, x, hidden)
    assert jnp.allclose(sig_out, ref_sig, atol=1e-4, rtol=1e-4)
    assert jnp.allclose(hn, ref_hn, atol=1e-4, rtol=1e-4)
    assert jnp.allclose(cn, ref_cn, atol=1e-4, rtol=1e-4)

    print("KERNEL_OK")
</pallas_src>

<mosaic_0001>
module attributes {stable_mosaic.version = 11 : i64} {
  func.func @bilstm_kernel(%arg0: memref<64x1xi32, #tpu.memory_space<vmem>>, %arg1: memref<2x8x128xf32, #tpu.memory_space<vmem>>, %arg2: memref<304x512xf32, #tpu.memory_space<vmem>>, %arg3: memref<3x8x128xf32, #tpu.memory_space<vmem>>, %arg4: memref<64x512xf32, #tpu.memory_space<vmem>>) attributes {dimension_semantics = [], scalar_prefetch = 0 : i64, scratch_operands = 1 : i64, tpu.core_type = #tpu.core_type<tc>} {
    %0 = tpu.iota {dimensions = array<i32: 1>} : vector<64x128xi32>
    %c0 = arith.constant 0 : index
    %c0_0 = arith.constant 0 : index
    %1 = vector.load %arg0[%c0, %c0_0] : memref<64x1xi32, #tpu.memory_space<vmem>>, vector<64x1xi32>
    %2 = vector.broadcast %1 : vector<64x1xi32> to vector<64x128xi32>
    %3 = arith.cmpi eq, %0, %2 : vector<64x128xi32>
    %4 = arith.extui %3 : vector<64x128xi1> to vector<64x128xi32>
    %5 = arith.sitofp %4 : vector<64x128xi32> to vector<64x128xf32>
    %6 = tpu.iota {dimensions = array<i32: 1>} : vector<8x128xi32>
    %c64_i32 = arith.constant 64 : i32
    %7 = vector.broadcast %c64_i32 : i32 to vector<8x128xi32>
    %8 = arith.cmpi sge, %6, %7 : vector<8x128xi32>
    %c0_1 = arith.constant 0 : index
    %c0_2 = arith.constant 0 : index
    %9 = vector.load %arg2[%c0_1, %c0_2] : memref<304x512xf32, #tpu.memory_space<vmem>>, vector<128x512xf32>
    %cst = arith.constant dense<0.000000e+00> : vector<64x512xf32>
    %10 = tpu.matmul %5, %9, %cst {dimension_numbers = #tpu.dot_dimension_numbers<[1], [0], [0], [1], [0, 0, 1, 1], [], []>} : vector<64x128xf32>, vector<128x512xf32>, vector<64x512xf32> -> vector<64x512xf32>
    %c256 = arith.constant 256 : index
    %c0_3 = arith.constant 0 : index
    %11 = vector.load %arg2[%c256, %c0_3] : memref<304x512xf32, #tpu.memory_space<vmem>>, vector<1x512xf32>
    %12 = vector.broadcast %11 : vector<1x512xf32> to vector<64x512xf32>
    %13 = arith.addf %10, %12 : vector<64x512xf32>
    %c0_4 = arith.constant 0 : index
    %c0_5 = arith.constant 0 : index
    %14 = vector.load %arg4[%c0_4, %c0_5] : memref<64x512xf32, #tpu.memory_space<vmem>>, vector<64x512xf32>
    tpu.vector_store %arg4[%c0_4, %c0_5], %13 {strides = array<i32>} : memref<64x512xf32, #tpu.memory_space<vmem>>, vector<64x512xf32>,
    %c192 = arith.constant 192 : index
    %c0_6 = arith.constant 0 : index
    %15 = vector.load %arg2[%c192, %c0_6] : memref<304x512xf32, #tpu.memory_space<vmem>>, vector<64x256xf32>
    %c0_7 = arith.constant 0 : index
    %c0_8 = arith.constant 0 : index
    %c0_9 = arith.constant 0 : index
    %16 = vector.load %arg1[%c0_7, %c0_8, %c0_9] : memref<2x8x128xf32, #tpu.memory_space<vmem>>, vector<1x8x128xf32>
    %17 = vector.shape_cast %16 : vector<1x8x128xf32> to vector<8x128xf32>
    %18 = vector.extract_strided_slice %17 {offsets = [0, 0], sizes = [8, 64], strides = [1, 1]} : vector<8x128xf32> to vector<8x64xf32>
    %19 = vector.extract_strided_slice %17 {offsets = [0, 64], sizes = [8, 64], strides = [1, 1]} : vector<8x128xf32> to vector<8x64xf32>
    %c0_10 = arith.constant 0 : index
    %c0_11 = arith.constant 0 : index
    %20 = vector.load %arg4[%c0_10, %c0_11] : memref<64x512xf32, #tpu.memory_space<vmem>>, vector<8x256xf32>
    %c56 = arith.constant 56 : index
    %c256_12 = arith.constant 256 : index
    %21 = vector.load %arg4[%c56, %c256_12] : memref<64x512xf32, #tpu.memory_space<vmem>>, vector<8x256xf32>
    %22 = arith.addf %20, %21 : vector<8x256xf32>
    %cst_13 = arith.constant dense<0.000000e+00> : vector<8x256xf32>
    %23 = tpu.matmul %18, %15, %cst_13 {dimension_numbers = #tpu.dot_dimension_numbers<[1], [0], [0], [1], [0, 0, 1, 1], [], []>} : vector<8x64xf32>, vector<64x256xf32>, vector<8x256xf32> -> vector<8x256xf32>
    %24 = arith.addf %22, %23 : vector<8x256xf32>
    %25 = vector.extract_strided_slice %24 {offsets = [0, 0], sizes = [8, 128], strides = [1, 1]} : vector<8x256xf32> to vector<8x128xf32>
    %26 = arith.negf %25 : vector<8x128xf32>
    %27 = math.exp %26 : vector<8x128xf32>
    %cst_14 = arith.constant 1.000000e+00 : f32
    %28 = vector.broadcast %cst_14 : f32 to vector<8x128xf32>
    %29 = arith.addf %28, %27 : vector<8x128xf32>
    %30 = arith.divf %28, %29 : vector<8x128xf32>
    %31 = vector.extract_strided_slice %24 {offsets = [0, 128], sizes = [8, 128], strides = [1, 1]} : vector<8x256xf32> to vector<8x128xf32>
    %32 = math.tanh %31 : vector<8x128xf32>
    %33 = arith.negf %31 : vector<8x128xf32>
    %34 = math.exp %33 : vector<8x128xf32>
    %cst_15 = arith.constant 1.000000e+00 : f32
    %35 = vector.broadcast %cst_15 : f32 to vector<8x128xf32>
    %36 = arith.addf %35, %34 : vector<8x128xf32>
    %37 = arith.divf %35, %36 : vector<8x128xf32>
    %38 = arith.select %8, %32, %37 : vector<8x128xi1>, vector<8x128xf32>
    %39 = vector.extract_strided_slice %30 {offsets = [0, 0], sizes = [8, 64], strides = [1, 1]} : vector<8x128xf32> to vector<8x64xf32>
    %40 = vector.extract_strided_slice %30 {offsets = [0, 64], sizes = [8, 64], strides = [1, 1]} : vector<8x128xf32> to vector<8x64xf32>
    %41 = vector.extract_strided_slice %38 {offsets = [0, 0], sizes = [8, 64], strides = [1, 1]} : vector<8x128xf32> to vector<8x64xf32>
    %42 = vector.extract_strided_slice %38 {offsets = [0, 64], sizes = [8, 64], strides = [1, 1]} : vector<8x128xf32> to vector<8x64xf32>
    %43 = arith.mulf %39, %19 : vector<8x64xf32>
    %44 = arith.mulf %40, %42 : vector<8x64xf32>
    %45 = arith.addf %43, %44 : vector<8x64xf32>
    %46 = math.tanh %45 : vector<8x64xf32>
    %47 = arith.mulf %41, %46 : vector<8x64xf32>
    %c8 = arith.constant 8 : index
    %c0_16 = arith.constant 0 : index
    %48 = vector.load %arg4[%c8, %c0_16] : memref<64x512xf32, #tpu.memory_space<vmem>>, vector<8x256xf32>
    %c48 = arith.constant 48 : index
    %c256_17 = arith.constant 256 : index
    %49 = vector.load %arg4[%c48, %c256_17] : memref<64x512xf32, #tpu.memory_space<vmem>>, vector<8x256xf32>
    %50 = arith.addf %48, %49 : vector<8x256xf32>
    %cst_18 = arith.constant dense<0.000000e+00> : vector<8x256xf32>
    %51 = tpu.matmul %47, %15, %cst_18 {dimension_numbers = #tpu.dot_dimension_numbers<[1], [0], [0], [1], [0, 0, 1, 1], [], []>} : vector<8x64xf32>, vector<64x256xf32>, vector<8x256xf32> -> vector<8x256xf32>
    %52 = arith.addf %50, %51 : vector<8x256xf32>
    %53 = vector.extract_strided_slice %52 {offsets = [0, 0], sizes = [8, 128], strides = [1, 1]} : vector<8x256xf32> to vector<8x128xf32>
    %54 = arith.negf %53 : vector<8x128xf32>
    %55 = math.exp %54 : vector<8x128xf32>
    %cst_19 = arith.constant 1.000000e+00 : f32
    %56 = vector.broadcast %cst_19 : f32 to vector<8x128xf32>
    %57 = arith.addf %56, %55 : vector<8x128xf32>
    %58 = arith.divf %56, %57 : vector<8x128xf32>
    %59 = vector.extract_strided_slice %52 {offsets = [0, 128], sizes = [8, 128], strides = [1, 1]} : vector<8x256xf32> to vector<8x128xf32>
    %60 = math.tanh %59 : vector<8x128xf32>
    %61 = arith.negf %59 : vector<8x128xf32>
    %62 = math.exp %61 : vector<8x128xf32>
    %cst_20 = arith.constant 1.000000e+00 : f32
    %63 = vector.broadcast %cst_20 : f32 to vector<8x128xf32>
    %64 = arith.addf %63, %62 : vector<8x128xf32>
    %65 = arith.divf %63, %64 : vector<8x128xf32>
    %66 = arith.select %8, %60, %65 : vector<8x128xi1>, vector<8x128xf32>
    %67 = vector.extract_strided_slice %58 {offsets = [0, 0], sizes = [8, 64], strides = [1, 1]} : vector<8x128xf32> to vector<8x64xf32>
    %68 = vector.extract_strided_slice %58 {offsets = [0, 64], sizes = [8, 64], strides = [1, 1]} : vector<8x128xf32> to vector<8x64xf32>
    %69 = vector.extract_strided_slice %66 {offsets = [0, 0], sizes = [8, 64], strides = [1, 1]} : vector<8x128xf32> to vector<8x64xf32>
    %70 = vector.extract_strided_slice %66 {offsets = [0, 64], sizes = [8, 64], strides = [1, 1]} : vector<8x128xf32> to vector<8x64xf32>
    %71 = arith.mulf %67, %45 : vector<8x64xf32>
    %72 = arith.mulf %68, %70 : vector<8x64xf32>
    %73 = arith.addf %71, %72 : vector<8x64xf32>
    %74 = math.tanh %73 : vector<8x64xf32>
    %75 = arith.mulf %69, %74 : vector<8x64xf32>
    %c16 = arith.constant 16 : index
    %c0_21 = arith.constant 0 : index
    %76 = vector.load %arg4[%c16, %c0_21] : memref<64x512xf32, #tpu.memory_space<vmem>>, vector<8x256xf32>
    %c40 = arith.constant 40 : index
    %c256_22 = arith.constant 256 : index
    %77 = vector.load %arg4[%c40, %c256_22] : memref<64x512xf32, #tpu.memory_space<vmem>>, vector<8x256xf32>
    %78 = arith.addf %76, %77 : vector<8x256xf32>
    %cst_23 = arith.constant dense<0.000000e+00> : vector<8x256xf32>
    %79 = tpu.matmul %75, %15, %cst_23 {dimension_numbers = #tpu.dot_dimension_numbers<[1], [0], [0], [1], [0, 0, 1, 1], [], []>} : vector<8x64xf32>, vector<64x256xf32>, vector<8x256xf32> -> vector<8x256xf32>
    %80 = arith.addf %78, %79 : vector<8x256xf32>
    %81 = vector.extract_strided_slice %80 {offsets = [0, 0], sizes = [8, 128], strides = [1, 1]} : vector<8x256xf32> to vector<8x128xf32>
    %82 = arith.negf %81 : vector<8x128xf32>
    %83 = math.exp %82 : vector<8x128xf32>
    %cst_24 = arith.constant 1.000000e+00 : f32
    %84 = vector.broadcast %cst_24 : f32 to vector<8x128xf32>
    %85 = arith.addf %84, %83 : vector<8x128xf32>
    %86 = arith.divf %84, %85 : vector<8x128xf32>
    %87 = vector.extract_strided_slice %80 {offsets = [0, 128], sizes = [8, 128], strides = [1, 1]} : vector<8x256xf32> to vector<8x128xf32>
    %88 = math.tanh %87 : vector<8x128xf32>
    %89 = arith.negf %87 : vector<8x128xf32>
    %90 = math.exp %89 : vector<8x128xf32>
    %cst_25 = arith.constant 1.000000e+00 : f32
    %91 = vector.broadcast %cst_25 : f32 to vector<8x128xf32>
    %92 = arith.addf %91, %90 : vector<8x128xf32>
    %93 = arith.divf %91, %92 : vector<8x128xf32>
    %94 = arith.select %8, %88, %93 : vector<8x128xi1>, vector<8x128xf32>
    %95 = vector.extract_strided_slice %86 {offsets = [0, 0], sizes = [8, 64], strides = [1, 1]} : vector<8x128xf32> to vector<8x64xf32>
    %96 = vector.extract_strided_slice %86 {offsets = [0, 64], sizes = [8, 64], strides = [1, 1]} : vector<8x128xf32> to vector<8x64xf32>
    %97 = vector.extract_strided_slice %94 {offsets = [0, 0], sizes = [8, 64], strides = [1, 1]} : vector<8x128xf32> to vector<8x64xf32>
    %98 = vector.extract_strided_slice %94 {offsets = [0, 64], sizes = [8, 64], strides = [1, 1]} : vector<8x128xf32> to vector<8x64xf32>
    %99 = arith.mulf %95, %73 : vector<8x64xf32>
    %100 = arith.mulf %96, %98 : vector<8x64xf32>
    %101 = arith.addf %99, %100 : vector<8x64xf32>
    %102 = math.tanh %101 : vector<8x64xf32>
    %103 = arith.mulf %97, %102 : vector<8x64xf32>
    %c24 = arith.constant 24 : index
    %c0_26 = arith.constant 0 : index
    %104 = vector.load %arg4[%c24, %c0_26] : memref<64x512xf32, #tpu.memory_space<vmem>>, vector<8x256xf32>
    %c32 = arith.constant 32 : index
    %c256_27 = arith.constant 256 : index
    %105 = vector.load %arg4[%c32, %c256_27] : memref<64x512xf32, #tpu.memory_space<vmem>>, vector<8x256xf32>
    %106 = arith.addf %104, %105 : vector<8x256xf32>
    %cst_28 = arith.constant dense<0.000000e+00> : vector<8x256xf32>
    %107 = tpu.matmul %103, %15, %cst_28 {dimension_numbers = #tpu.dot_dimension_numbers<[1], [0], [0], [1], [0, 0, 1, 1], [], []>} : vector<8x64xf32>, vector<64x256xf32>, vector<8x256xf32> -> vector<8x256xf32>
    %108 = arith.addf %106, %107 : vector<8x256xf32>
    %109 = vector.extract_strided_slice %108 {offsets = [0, 0], sizes = [8, 128], strides = [1, 1]} : vector<8x256xf32> to vector<8x128xf32>
    %110 = arith.negf %109 : vector<8x128xf32>
    %111 = math.exp %110 : vector<8x128xf32>
    %cst_29 = arith.constant 1.000000e+00 : f32
    %112 = vector.broadcast %cst_29 : f32 to vector<8x128xf32>
    %113 = arith.addf %112, %111 : vector<8x128xf32>
    %114 = arith.divf %112, %113 : vector<8x128xf32>
    %115 = vector.extract_strided_slice %108 {offsets = [0, 128], sizes = [8, 128], strides = [1, 1]} : vector<8x256xf32> to vector<8x128xf32>
    %116 = math.tanh %115 : vector<8x128xf32>
    %117 = arith.negf %115 : vector<8x128xf32>
    %118 = math.exp %117 : vector<8x128xf32>
    %cst_30 = arith.constant 1.000000e+00 : f32
    %119 = vector.broadcast %cst_30 : f32 to vector<8x128xf32>
    %120 = arith.addf %119, %118 : vector<8x128xf32>
    %121 = arith.divf %119, %120 : vector<8x128xf32>
    %122 = arith.select %8, %116, %121 : vector<8x128xi1>, vector<8x128xf32>
    %123 = vector.extract_strided_slice %114 {offsets = [0, 0], sizes = [8, 64], strides = [1, 1]} : vector<8x128xf32> to vector<8x64xf32>
    %124 = vector.extract_strided_slice %114 {offsets = [0, 64], sizes = [8, 64], strides = [1, 1]} : vector<8x128xf32> to vector<8x64xf32>
    %125 = vector.extract_strided_slice %122 {offsets = [0, 0], sizes = [8, 64], strides = [1, 1]} : vector<8x128xf32> to vector<8x64xf32>
    %126 = vector.extract_strided_slice %122 {offsets = [0, 64], sizes = [8, 64], strides = [1, 1]} : vector<8x128xf32> to vector<8x64xf32>
    %127 = arith.mulf %123, %101 : vector<8x64xf32>
    %128 = arith.mulf %124, %126 : vector<8x64xf32>
    %129 = arith.addf %127, %128 : vector<8x64xf32>
    %130 = math.tanh %129 : vector<8x64xf32>
    %131 = arith.mulf %125, %130 : vector<8x64xf32>
    %c32_31 = arith.constant 32 : index
    %c0_32 = arith.constant 0 : index
    %132 = vector.load %arg4[%c32_31, %c0_32] : memref<64x512xf32, #tpu.memory_space<vmem>>, vector<8x256xf32>
    %c24_33 = arith.constant 24 : index
    %c256_34 = arith.constant 256 : index
    %133 = vector.load %arg4[%c24_33, %c256_34] : memref<64x512xf32, #tpu.memory_space<vmem>>, vector<8x256xf32>
    %134 = arith.addf %132, %133 : vector<8x256xf32>
    %cst_35 = arith.constant dense<0.000000e+00> : vector<8x256xf32>
    %135 = tpu.matmul %131, %15, %cst_35 {dimension_numbers = #tpu.dot_dimension_numbers<[1], [0], [0], [1], [0, 0, 1, 1], [], []>} : vector<8x64xf32>, vector<64x256xf32>, vector<8x256xf32> -> vector<8x256xf32>
    %136 = arith.addf %134, %135 : vector<8x256xf32>
    %137 = vector.extract_strided_slice %136 {offsets = [0, 0], sizes = [8, 128], strides = [1, 1]} : vector<8x256xf32> to vector<8x128xf32>
    %138 = arith.negf %137 : vector<8x128xf32>
    %139 = math.exp %138 : vector<8x128xf32>
    %cst_36 = arith.constant 1.000000e+00 : f32
    %140 = vector.broadcast %cst_36 : f32 to vector<8x128xf32>
    %141 = arith.addf %140, %139 : vector<8x128xf32>
    %142 = arith.divf %140, %141 : vector<8x128xf32>
    %143 = vector.extract_strided_slice %136 {offsets = [0, 128], sizes = [8, 128], strides = [1, 1]} : vector<8x256xf32> to vector<8x128xf32>
    %144 = math.tanh %143 : vector<8x128xf32>
    %145 = arith.negf %143 : vector<8x128xf32>
    %146 = math.exp %145 : vector<8x128xf32>
    %cst_37 = arith.constant 1.000000e+00 : f32
    %147 = vector.broadcast %cst_37 : f32 to vector<8x128xf32>
    %148 = arith.addf %147, %146 : vector<8x128xf32>
    %149 = arith.divf %147, %148 : vector<8x128xf32>
    %150 = arith.select %8, %144, %149 : vector<8x128xi1>, vector<8x128xf32>
    %151 = vector.extract_strided_slice %142 {offsets = [0, 0], sizes = [8, 64], strides = [1, 1]} : vector<8x128xf32> to vector<8x64xf32>
    %152 = vector.extract_strided_slice %142 {offsets = [0, 64], sizes = [8, 64], strides = [1, 1]} : vector<8x128xf32> to vector<8x64xf32>
    %153 = vector.extract_strided_slice %150 {offsets = [0, 0], sizes = [8, 64], strides = [1, 1]} : vector<8x128xf32> to vector<8x64xf32>
    %154 = vector.extract_strided_slice %150 {offsets = [0, 64], sizes = [8, 64], strides = [1, 1]} : vector<8x128xf32> to vector<8x64xf32>
    %155 = arith.mulf %151, %129 : vector<8x64xf32>
    %156 = arith.mulf %152, %154 : vector<8x64xf32>
    %157 = arith.addf %155, %156 : vector<8x64xf32>
    %158 = math.tanh %157 : vector<8x64xf32>
    %159 = arith.mulf %153, %158 : vector<8x64xf32>
    %c40_38 = arith.constant 40 : index
    %c0_39 = arith.constant 0 : index
    %160 = vector.load %arg4[%c40_38, %c0_39] : memref<64x512xf32, #tpu.memory_space<vmem>>, vector<8x256xf32>
    %c16_40 = arith.constant 16 : index
    %c256_41 = arith.constant 256 : index
    %161 = vector.load %arg4[%c16_40, %c256_41] : memref<64x512xf32, #tpu.memory_space<vmem>>, vector<8x256xf32>
    %162 = arith.addf %160, %161 : vector<8x256xf32>
    %cst_42 = arith.constant dense<0.000000e+00> : vector<8x256xf32>
    %163 = tpu.matmul %159, %15, %cst_42 {dimension_numbers = #tpu.dot_dimension_numbers<[1], [0], [0], [1], [0, 0, 1, 1], [], []>} : vector<8x64xf32>, vector<64x256xf32>, vector<8x256xf32> -> vector<8x256xf32>
    %164 = arith.addf %162, %163 : vector<8x256xf32>
    %165 = vector.extract_strided_slice %164 {offsets = [0, 0], sizes = [8, 128], strides = [1, 1]} : vector<8x256xf32> to vector<8x128xf32>
    %166 = arith.negf %165 : vector<8x128xf32>
    %167 = math.exp %166 : vector<8x128xf32>
    %cst_43 = arith.constant 1.000000e+00 : f32
    %168 = vector.broadcast %cst_43 : f32 to vector<8x128xf32>
    %169 = arith.addf %168, %167 : vector<8x128xf32>
    %170 = arith.divf %168, %169 : vector<8x128xf32>
    %171 = vector.extract_strided_slice %164 {offsets = [0, 128], sizes = [8, 128], strides = [1, 1]} : vector<8x256xf32> to vector<8x128xf32>
    %172 = math.tanh %171 : vector<8x128xf32>
    %173 = arith.negf %171 : vector<8x128xf32>
    %174 = math.exp %173 : vector<8x128xf32>
    %cst_44 = arith.constant 1.000000e+00 : f32
    %175 = vector.broadcast %cst_44 : f32 to vector<8x128xf32>
    %176 = arith.addf %175, %174 : vector<8x128xf32>
    %177 = arith.divf %175, %176 : vector<8x128xf32>
    %178 = arith.select %8, %172, %177 : vector<8x128xi1>, vector<8x128xf32>
    %179 = vector.extract_strided_slice %170 {offsets = [0, 0], sizes = [8, 64], strides = [1, 1]} : vector<8x128xf32> to vector<8x64xf32>
    %180 = vector.extract_strided_slice %170 {offsets = [0, 64], sizes = [8, 64], strides = [1, 1]} : vector<8x128xf32> to vector<8x64xf32>
    %181 = vector.extract_strided_slice %178 {offsets = [0, 0], sizes = [8, 64], strides = [1, 1]} : vector<8x128xf32> to vector<8x64xf32>
    %182 = vector.extract_strided_slice %178 {offsets = [0, 64], sizes = [8, 64], strides = [1, 1]} : vector<8x128xf32> to vector<8x64xf32>
    %183 = arith.mulf %179, %157 : vector<8x64xf32>
    %184 = arith.mulf %180, %182 : vector<8x64xf32>
    %185 = arith.addf %183, %184 : vector<8x64xf32>
    %186 = math.tanh %185 : vector<8x64xf32>
    %187 = arith.mulf %181, %186 : vector<8x64xf32>
    %c48_45 = arith.constant 48 : index
    %c0_46 = arith.constant 0 : index
    %188 = vector.load %arg4[%c48_45, %c0_46] : memref<64x512xf32, #tpu.memory_space<vmem>>, vector<8x256xf32>
    %c8_47 = arith.constant 8 : index
    %c256_48 = arith.constant 256 : index
    %189 = vector.load %arg4[%c8_47, %c256_48] : memref<64x512xf32, #tpu.memory_space<vmem>>, vector<8x256xf32>
    %190 = arith.addf %188, %189 : vector<8x256xf32>
    %cst_49 = arith.constant dense<0.000000e+00> : vector<8x256xf32>
    %191 = tpu.matmul %187, %15, %cst_49 {dimension_numbers = #tpu.dot_dimension_numbers<[1], [0], [0], [1], [0, 0, 1, 1], [], []>} : vector<8x64xf32>, vector<64x256xf32>, vector<8x256xf32> -> vector<8x256xf32>
    %192 = arith.addf %190, %191 : vector<8x256xf32>
    %193 = vector.extract_strided_slice %192 {offsets = [0, 0], sizes = [8, 128], strides = [1, 1]} : vector<8x256xf32> to vector<8x128xf32>
    %194 = arith.negf %193 : vector<8x128xf32>
    %195 = math.exp %194 : vector<8x128xf32>
    %cst_50 = arith.constant 1.000000e+00 : f32
    %196 = vector.broadcast %cst_50 : f32 to vector<8x128xf32>
    %197 = arith.addf %196, %195 : vector<8x128xf32>
    %198 = arith.divf %196, %197 : vector<8x128xf32>
    %199 = vector.extract_strided_slice %192 {offsets = [0, 128], sizes = [8, 128], strides = [1, 1]} : vector<8x256xf32> to vector<8x128xf32>
    %200 = math.tanh %199 : vector<8x128xf32>
    %201 = arith.negf %199 : vector<8x128xf32>
    %202 = math.exp %201 : vector<8x128xf32>
    %cst_51 = arith.constant 1.000000e+00 : f32
    %203 = vector.broadcast %cst_51 : f32 to vector<8x128xf32>
    %204 = arith.addf %203, %202 : vector<8x128xf32>
    %205 = arith.divf %203, %204 : vector<8x128xf32>
    %206 = arith.select %8, %200, %205 : vector<8x128xi1>, vector<8x128xf32>
    %207 = vector.extract_strided_slice %198 {offsets = [0, 0], sizes = [8, 64], strides = [1, 1]} : vector<8x128xf32> to vector<8x64xf32>
    %208 = vector.extract_strided_slice %198 {offsets = [0, 64], sizes = [8, 64], strides = [1, 1]} : vector<8x128xf32> to vector<8x64xf32>
    %209 = vector.extract_strided_slice %206 {offsets = [0, 0], sizes = [8, 64], strides = [1, 1]} : vector<8x128xf32> to vector<8x64xf32>
    %210 = vector.extract_strided_slice %206 {offsets = [0, 64], sizes = [8, 64], strides = [1, 1]} : vector<8x128xf32> to vector<8x64xf32>
    %211 = arith.mulf %207, %185 : vector<8x64xf32>
    %212 = arith.mulf %208, %210 : vector<8x64xf32>
    %213 = arith.addf %211, %212 : vector<8x64xf32>
    %214 = math.tanh %213 : vector<8x64xf32>
    %215 = arith.mulf %209, %214 : vector<8x64xf32>
    %c56_52 = arith.constant 56 : index
    %c0_53 = arith.constant 0 : index
    %216 = vector.load %arg4[%c56_52, %c0_53] : memref<64x512xf32, #tpu.memory_space<vmem>>, vector<8x256xf32>
    %c0_54 = arith.constant 0 : index
    %c256_55 = arith.constant 256 : index
    %217 = vector.load %arg4[%c0_54, %c256_55] : memref<64x512xf32, #tpu.memory_space<vmem>>, vector<8x256xf32>
    %218 = arith.addf %216, %217 : vector<8x256xf32>
    %cst_56 = arith.constant dense<0.000000e+00> : vector<8x256xf32>
    %219 = tpu.matmul %215, %15, %cst_56 {dimension_numbers = #tpu.dot_dimension_numbers<[1], [0], [0], [1], [0, 0, 1, 1], [], []>} : vector<8x64xf32>, vector<64x256xf32>, vector<8x256xf32> -> vector<8x256xf32>
    %220 = arith.addf %218, %219 : vector<8x256xf32>
    %221 = vector.extract_strided_slice %220 {offsets = [0, 0], sizes = [8, 128], strides = [1, 1]} : vector<8x256xf32> to vector<8x128xf32>
    %222 = arith.negf %221 : vector<8x128xf32>
    %223 = math.exp %222 : vector<8x128xf32>
    %cst_57 = arith.constant 1.000000e+00 : f32
    %224 = vector.broadcast %cst_57 : f32 to vector<8x128xf32>
    %225 = arith.addf %224, %223 : vector<8x128xf32>
    %226 = arith.divf %224, %225 : vector<8x128xf32>
    %227 = vector.extract_strided_slice %220 {offsets = [0, 128], sizes = [8, 128], strides = [1, 1]} : vector<8x256xf32> to vector<8x128xf32>
    %228 = math.tanh %227 : vector<8x128xf32>
    %229 = arith.negf %227 : vector<8x128xf32>
    %230 = math.exp %229 : vector<8x128xf32>
    %cst_58 = arith.constant 1.000000e+00 : f32
    %231 = vector.broadcast %cst_58 : f32 to vector<8x128xf32>
    %232 = arith.addf %231, %230 : vector<8x128xf32>
    %233 = arith.divf %231, %232 : vector<8x128xf32>
    %234 = arith.select %8, %228, %233 : vector<8x128xi1>, vector<8x128xf32>
    %235 = vector.extract_strided_slice %226 {offsets = [0, 0], sizes = [8, 64], strides = [1, 1]} : vector<8x128xf32> to vector<8x64xf32>
    %236 = vector.extract_strided_slice %226 {offsets = [0, 64], sizes = [8, 64], strides = [1, 1]} : vector<8x128xf32> to vector<8x64xf32>
    %237 = vector.extract_strided_slice %234 {offsets = [0, 0], sizes = [8, 64], strides = [1, 1]} : vector<8x128xf32> to vector<8x64xf32>
    %238 = vector.extract_strided_slice %234 {offsets = [0, 64], sizes = [8, 64], strides = [1, 1]} : vector<8x128xf32> to vector<8x64xf32>
    %239 = arith.mulf %235, %213 : vector<8x64xf32>
    %240 = arith.mulf %236, %238 : vector<8x64xf32>
    %241 = arith.addf %239, %240 : vector<8x64xf32>
    %242 = math.tanh %241 : vector<8x64xf32>
    %243 = arith.mulf %237, %242 : vector<8x64xf32>
    %244 = tpu.concatenate %243, %241 in 1 : vector<8x64xf32>, vector<8x64xf32> -> vector<8x128xf32>
    %c0_59 = arith.constant 0 : index
    %c0_60 = arith.constant 0 : index
    %c0_61 = arith.constant 0 : index
    %245 = vector.load %arg3[%c0_59, %c0_60, %c0_61] : memref<3x8x128xf32, #tpu.memory_space<vmem>>, vector<1x8x128xf32>
    %246 = vector.shape_cast %245 : vector<1x8x128xf32> to vector<8x128xf32>
    %247 = vector.shape_cast %244 : vector<8x128xf32> to vector<1x8x128xf32>
    tpu.vector_store %arg3[%c0_59, %c0_60, %c0_61], %247 {strides = array<i32>} : memref<3x8x128xf32, #tpu.memory_space<vmem>>, vector<1x8x128xf32>,
    %248 = vector.extract_strided_slice %47 {offsets = [0, 0], sizes = [8, 32], strides = [1, 1]} : vector<8x64xf32> to vector<8x32xf32>
    %249 = vector.extract_strided_slice %75 {offsets = [0, 0], sizes = [8, 32], strides = [1, 1]} : vector<8x64xf32> to vector<8x32xf32>
    %250 = vector.extract_strided_slice %103 {offsets = [0, 0], sizes = [8, 32], strides = [1, 1]} : vector<8x64xf32> to vector<8x32xf32>
    %251 = vector.extract_strided_slice %131 {offsets = [0, 0], sizes = [8, 32], strides = [1, 1]} : vector<8x64xf32> to vector<8x32xf32>
    %252 = vector.extract_strided_slice %159 {offsets = [0, 0], sizes = [8, 32], strides = [1, 1]} : vector<8x64xf32> to vector<8x32xf32>
    %253 = vector.extract_strided_slice %187 {offsets = [0, 0], sizes = [8, 32], strides = [1, 1]} : vector<8x64xf32> to vector<8x32xf32>
    %254 = vector.extract_strided_slice %215 {offsets = [0, 0], sizes = [8, 32], strides = [1, 1]} : vector<8x64xf32> to vector<8x32xf32>
    %255 = vector.extract_strided_slice %243 {offsets = [0, 0], sizes = [8, 32], strides = [1, 1]} : vector<8x64xf32> to vector<8x32xf32>
    %256 = tpu.concatenate %248, %249, %250, %251, %252, %253, %254, %255 in 0 : vector<8x32xf32>, vector<8x32xf32>, vector<8x32xf32>, vector<8x32xf32>, vector<8x32xf32>, vector<8x32xf32>, vector<8x32xf32>, vector<8x32xf32> -> vector<64x32xf32>
    %257 = vector.extract_strided_slice %243 {offsets = [0, 32], sizes = [8, 32], strides = [1, 1]} : vector<8x64xf32> to vector<8x32xf32>
    %258 = vector.extract_strided_slice %215 {offsets = [0, 32], sizes = [8, 32], strides = [1, 1]} : vector<8x64xf32> to vector<8x32xf32>
    %259 = vector.extract_strided_slice %187 {offsets = [0, 32], sizes = [8, 32], strides = [1, 1]} : vector<8x64xf32> to vector<8x32xf32>
    %260 = vector.extract_strided_slice %159 {offsets = [0, 32], sizes = [8, 32], strides = [1, 1]} : vector<8x64xf32> to vector<8x32xf32>
    %261 = vector.extract_strided_slice %131 {offsets = [0, 32], sizes = [8, 32], strides = [1, 1]} : vector<8x64xf32> to vector<8x32xf32>
    %262 = vector.extract_strided_slice %103 {offsets = [0, 32], sizes = [8, 32], strides = [1, 1]} : vector<8x64xf32> to vector<8x32xf32>
    %263 = vector.extract_strided_slice %75 {offsets = [0, 32], sizes = [8, 32], strides = [1, 1]} : vector<8x64xf32> to vector<8x32xf32>
    %264 = vector.extract_strided_slice %47 {offsets = [0, 32], sizes = [8, 32], strides = [1, 1]} : vector<8x64xf32> to vector<8x32xf32>
    %265 = tpu.concatenate %257, %258, %259, %260, %261, %262, %263, %264 in 0 : vector<8x32xf32>, vector<8x32xf32>, vector<8x32xf32>, vector<8x32xf32>, vector<8x32xf32>, vector<8x32xf32>, vector<8x32xf32>, vector<8x32xf32> -> vector<64x32xf32>
    %c128 = arith.constant 128 : index
    %c0_62 = arith.constant 0 : index
    %266 = vector.load %arg2[%c128, %c0_62] : memref<304x512xf32, #tpu.memory_space<vmem>>, vector<32x512xf32>
    %cst_63 = arith.constant dense<0.000000e+00> : vector<64x512xf32>
    %267 = tpu.matmul %256, %266, %cst_63 {dimension_numbers = #tpu.dot_dimension_numbers<[1], [0], [0], [1], [0, 0, 1, 1], [], []>} : vector<64x32xf32>, vector<32x512xf32>, vector<64x512xf32> -> vector<64x512xf32>
    %c160 = arith.constant 160 : index
    %c0_64 = arith.constant 0 : index
    %268 = vector.load %arg2[%c160, %c0_64] : memref<304x512xf32, #tpu.memory_space<vmem>>, vector<32x512xf32>
    %cst_65 = arith.constant dense<0.000000e+00> : vector<64x512xf32>
    %269 = tpu.matmul %265, %268, %cst_65 {dimension_numbers = #tpu.dot_dimension_numbers<[1], [0], [0], [1], [0, 0, 1, 1], [], []>} : vector<64x32xf32>, vector<32x512xf32>, vector<64x512xf32> -> vector<64x512xf32>
    %270 = arith.addf %267, %269 : vector<64x512xf32>
    %c257 = arith.constant 257 : index
    %c0_66 = arith.constant 0 : index
    %271 = vector.load %arg2[%c257, %c0_66] : memref<304x512xf32, #tpu.memory_space<vmem>>, vector<1x512xf32>
    %272 = vector.broadcast %271 : vector<1x512xf32> to vector<64x512xf32>
    %273 = arith.addf %270, %272 : vector<64x512xf32>
    %c0_67 = arith.constant 0 : index
    %c0_68 = arith.constant 0 : index
    %274 = vector.load %arg4[%c0_67, %c0_68] : memref<64x512xf32, #tpu.memory_space<vmem>>, vector<64x512xf32>
    tpu.vector_store %arg4[%c0_67, %c0_68], %273 {strides = array<i32>} : memref<64x512xf32, #tpu.memory_space<vmem>>, vector<64x512xf32>,
    %c192_69 = arith.constant 192 : index
    %c256_70 = arith.constant 256 : index
    %275 = vector.load %arg2[%c192_69, %c256_70] : memref<304x512xf32, #tpu.memory_space<vmem>>, vector<64x256xf32>
    %c1 = arith.constant 1 : index
    %c0_71 = arith.constant 0 : index
    %c0_72 = arith.constant 0 : index
    %276 = vector.load %arg1[%c1, %c0_71, %c0_72] : memref<2x8x128xf32, #tpu.memory_space<vmem>>, vector<1x8x128xf32>
    %277 = vector.shape_cast %276 : vector<1x8x128xf32> to vector<8x128xf32>
    %278 = vector.extract_strided_slice %277 {offsets = [0, 0], sizes = [8, 64], strides = [1, 1]} : vector<8x128xf32> to vector<8x64xf32>
    %279 = vector.extract_strided_slice %277 {offsets = [0, 64], sizes = [8, 64], strides = [1, 1]} : vector<8x128xf32> to vector<8x64xf32>
    %c0_73 = arith.constant 0 : index
    %c0_74 = arith.constant 0 : index
    %280 = vector.load %arg4[%c0_73, %c0_74] : memref<64x512xf32, #tpu.memory_space<vmem>>, vector<8x256xf32>
    %c56_75 = arith.constant 56 : index
    %c256_76 = arith.constant 256 : index
    %281 = vector.load %arg4[%c56_75, %c256_76] : memref<64x512xf32, #tpu.memory_space<vmem>>, vector<8x256xf32>
    %282 = arith.addf %280, %281 : vector<8x256xf32>
    %cst_77 = arith.constant dense<0.000000e+00> : vector<8x256xf32>
    %283 = tpu.matmul %278, %275, %cst_77 {dimension_numbers = #tpu.dot_dimension_numbers<[1], [0], [0], [1], [0, 0, 1, 1], [], []>} : vector<8x64xf32>, vector<64x256xf32>, vector<8x256xf32> -> vector<8x256xf32>
    %284 = arith.addf %282, %283 : vector<8x256xf32>
    %285 = vector.extract_strided_slice %284 {offsets = [0, 0], sizes = [8, 128], strides = [1, 1]} : vector<8x256xf32> to vector<8x128xf32>
    %286 = arith.negf %285 : vector<8x128xf32>
    %287 = math.exp %286 : vector<8x128xf32>
    %cst_78 = arith.constant 1.000000e+00 : f32
    %288 = vector.broadcast %cst_78 : f32 to vector<8x128xf32>
    %289 = arith.addf %288, %287 : vector<8x128xf32>
    %290 = arith.divf %288, %289 : vector<8x128xf32>
    %291 = vector.extract_strided_slice %284 {offsets = [0, 128], sizes = [8, 128], strides = [1, 1]} : vector<8x256xf32> to vector<8x128xf32>
    %292 = math.tanh %291 : vector<8x128xf32>
    %293 = arith.negf %291 : vector<8x128xf32>
    %294 = math.exp %293 : vector<8x128xf32>
    %cst_79 = arith.constant 1.000000e+00 : f32
    %295 = vector.broadcast %cst_79 : f32 to vector<8x128xf32>
    %296 = arith.addf %295, %294 : vector<8x128xf32>
    %297 = arith.divf %295, %296 : vector<8x128xf32>
    %298 = arith.select %8, %292, %297 : vector<8x128xi1>, vector<8x128xf32>
    %299 = vector.extract_strided_slice %290 {offsets = [0, 0], sizes = [8, 64], strides = [1, 1]} : vector<8x128xf32> to vector<8x64xf32>
    %300 = vector.extract_strided_slice %290 {offsets = [0, 64], sizes = [8, 64], strides = [1, 1]} : vector<8x128xf32> to vector<8x64xf32>
    %301 = vector.extract_strided_slice %298 {offsets = [0, 0], sizes = [8, 64], strides = [1, 1]} : vector<8x128xf32> to vector<8x64xf32>
    %302 = vector.extract_strided_slice %298 {offsets = [0, 64], sizes = [8, 64], strides = [1, 1]} : vector<8x128xf32> to vector<8x64xf32>
    %303 = arith.mulf %299, %279 : vector<8x64xf32>
    %304 = arith.mulf %300, %302 : vector<8x64xf32>
    %305 = arith.addf %303, %304 : vector<8x64xf32>
    %306 = math.tanh %305 : vector<8x64xf32>
    %307 = arith.mulf %301, %306 : vector<8x64xf32>
    %308 = vector.extract_strided_slice %307 {offsets = [0, 32], sizes = [8, 32], strides = [1, 1]} : vector<8x64xf32> to vector<8x32xf32>
    %c8_80 = arith.constant 8 : index
    %c0_81 = arith.constant 0 : index
    %309 = vector.load %arg4[%c8_80, %c0_81] : memref<64x512xf32, #tpu.memory_space<vmem>>, vector<8x256xf32>
    %c48_82 = arith.constant 48 : index
    %c256_83 = arith.constant 256 : index
    %310 = vector.load %arg4[%c48_82, %c256_83] : memref<64x512xf32, #tpu.memory_space<vmem>>, vector<8x256xf32>
    %311 = arith.addf %309, %310 : vector<8x256xf32>
    %cst_84 = arith.constant dense<0.000000e+00> : vector<8x256xf32>
    %312 = tpu.matmul %307, %275, %cst_84 {dimension_numbers = #tpu.dot_dimension_numbers<[1], [0], [0], [1], [0, 0, 1, 1], [], []>} : vector<8x64xf32>, vector<64x256xf32>, vector<8x256xf32> -> vector<8x256xf32>
    %313 = arith.addf %311, %312 : vector<8x256xf32>
    %314 = vector.extract_strided_slice %313 {offsets = [0, 0], sizes = [8, 128], strides = [1, 1]} : vector<8x256xf32> to vector<8x128xf32>
    %315 = arith.negf %314 : vector<8x128xf32>
    %316 = math.exp %315 : vector<8x128xf32>
    %cst_85 = arith.constant 1.000000e+00 : f32
    %317 = vector.broadcast %cst_85 : f32 to vector<8x128xf32>
    %318 = arith.addf %317, %316 : vector<8x128xf32>
    %319 = arith.divf %317, %318 : vector<8x128xf32>
    %320 = vector.extract_strided_slice %313 {offsets = [0, 128], sizes = [8, 128], strides = [1, 1]} : vector<8x256xf32> to vector<8x128xf32>
    %321 = math.tanh %320 : vector<8x128xf32>
    %322 = arith.negf %320 : vector<8x128xf32>
    %323 = math.exp %322 : vector<8x128xf32>
    %cst_86 = arith.constant 1.000000e+00 : f32
    %324 = vector.broadcast %cst_86 : f32 to vector<8x128xf32>
    %325 = arith.addf %324, %323 : vector<8x128xf32>
    %326 = arith.divf %324, %325 : vector<8x128xf32>
    %327 = arith.select %8, %321, %326 : vector<8x128xi1>, vector<8x128xf32>
    %328 = vector.extract_strided_slice %319 {offsets = [0, 0], sizes = [8, 64], strides = [1, 1]} : vector<8x128xf32> to vector<8x64xf32>
    %329 = vector.extract_strided_slice %319 {offsets = [0, 64], sizes = [8, 64], strides = [1, 1]} : vector<8x128xf32> to vector<8x64xf32>
    %330 = vector.extract_strided_slice %327 {offsets = [0, 0], sizes = [8, 64], strides = [1, 1]} : vector<8x128xf32> to vector<8x64xf32>
    %331 = vector.extract_strided_slice %327 {offsets = [0, 64], sizes = [8, 64], strides = [1, 1]} : vector<8x128xf32> to vector<8x64xf32>
    %332 = arith.mulf %328, %305 : vector<8x64xf32>
    %333 = arith.mulf %329, %331 : vector<8x64xf32>
    %334 = arith.addf %332, %333 : vector<8x64xf32>
    %335 = math.tanh %334 : vector<8x64xf32>
    %336 = arith.mulf %330, %335 : vector<8x64xf32>
    %c16_87 = arith.constant 16 : index
    %c0_88 = arith.constant 0 : index
    %337 = vector.load %arg4[%c16_87, %c0_88] : memref<64x512xf32, #tpu.memory_space<vmem>>, vector<8x256xf32>
    %c40_89 = arith.constant 40 : index
    %c256_90 = arith.constant 256 : index
    %338 = vector.load %arg4[%c40_89, %c256_90] : memref<64x512xf32, #tpu.memory_space<vmem>>, vector<8x256xf32>
    %339 = arith.addf %337, %338 : vector<8x256xf32>
    %cst_91 = arith.constant dense<0.000000e+00> : vector<8x256xf32>
    %340 = tpu.matmul %336, %275, %cst_91 {dimension_numbers = #tpu.dot_dimension_numbers<[1], [0], [0], [1], [0, 0, 1, 1], [], []>} : vector<8x64xf32>, vector<64x256xf32>, vector<8x256xf32> -> vector<8x256xf32>
    %341 = arith.addf %339, %340 : vector<8x256xf32>
    %342 = vector.extract_strided_slice %341 {offsets = [0, 0], sizes = [8, 128], strides = [1, 1]} : vector<8x256xf32> to vector<8x128xf32>
    %343 = arith.negf %342 : vector<8x128xf32>
    %344 = math.exp %343 : vector<8x128xf32>
    %cst_92 = arith.constant 1.000000e+00 : f32
    %345 = vector.broadcast %cst_92 : f32 to vector<8x128xf32>
    %346 = arith.addf %345, %344 : vector<8x128xf32>
    %347 = arith.divf %345, %346 : vector<8x128xf32>
    %348 = vector.extract_strided_slice %341 {offsets = [0, 128], sizes = [8, 128], strides = [1, 1]} : vector<8x256xf32> to vector<8x128xf32>
    %349 = math.tanh %348 : vector<8x128xf32>
    %350 = arith.negf %348 : vector<8x128xf32>
    %351 = math.exp %350 : vector<8x128xf32>
    %cst_93 = arith.constant 1.000000e+00 : f32
    %352 = vector.broadcast %cst_93 : f32 to vector<8x128xf32>
    %353 = arith.addf %352, %351 : vector<8x128xf32>
    %354 = arith.divf %352, %353 : vector<8x128xf32>
    %355 = arith.select %8, %349, %354 : vector<8x128xi1>, vector<8x128xf32>
    %356 = vector.extract_strided_slice %347 {offsets = [0, 0], sizes = [8, 64], strides = [1, 1]} : vector<8x128xf32> to vector<8x64xf32>
    %357 = vector.extract_strided_slice %347 {offsets = [0, 64], sizes = [8, 64], strides = [1, 1]} : vector<8x128xf32> to vector<8x64xf32>
    %358 = vector.extract_strided_slice %355 {offsets = [0, 0], sizes = [8, 64], strides = [1, 1]} : vector<8x128xf32> to vector<8x64xf32>
    %359 = vector.extract_strided_slice %355 {offsets = [0, 64], sizes = [8, 64], strides = [1, 1]} : vector<8x128xf32> to vector<8x64xf32>
    %360 = arith.mulf %356, %334 : vector<8x64xf32>
    %361 = arith.mulf %357, %359 : vector<8x64xf32>
    %362 = arith.addf %360, %361 : vector<8x64xf32>
    %363 = math.tanh %362 : vector<8x64xf32>
    %364 = arith.mulf %358, %363 : vector<8x64xf32>
    %c24_94 = arith.constant 24 : index
    %c0_95 = arith.constant 0 : index
    %365 = vector.load %arg4[%c24_94, %c0_95] : memref<64x512xf32, #tpu.memory_space<vmem>>, vector<8x256xf32>
    %c32_96 = arith.constant 32 : index
    %c256_97 = arith.constant 256 : index
    %366 = vector.load %arg4[%c32_96, %c256_97] : memref<64x512xf32, #tpu.memory_space<vmem>>, vector<8x256xf32>
    %367 = arith.addf %365, %366 : vector<8x256xf32>
    %cst_98 = arith.constant dense<0.000000e+00> : vector<8x256xf32>
    %368 = tpu.matmul %364, %275, %cst_98 {dimension_numbers = #tpu.dot_dimension_numbers<[1], [0], [0], [1], [0, 0, 1, 1], [], []>} : vector<8x64xf32>, vector<64x256xf32>, vector<8x256xf32> -> vector<8x256xf32>
    %369 = arith.addf %367, %368 : vector<8x256xf32>
    %370 = vector.extract_strided_slice %369 {offsets = [0, 0], sizes = [8, 128], strides = [1, 1]} : vector<8x256xf32> to vector<8x128xf32>
    %371 = arith.negf %370 : vector<8x128xf32>
    %372 = math.exp %371 : vector<8x128xf32>
    %cst_99 = arith.constant 1.000000e+00 : f32
    %373 = vector.broadcast %cst_99 : f32 to vector<8x128xf32>
    %374 = arith.addf %373, %372 : vector<8x128xf32>
    %375 = arith.divf %373, %374 : vector<8x128xf32>
    %376 = vector.extract_strided_slice %369 {offsets = [0, 128], sizes = [8, 128], strides = [1, 1]} : vector<8x256xf32> to vector<8x128xf32>
    %377 = math.tanh %376 : vector<8x128xf32>
    %378 = arith.negf %376 : vector<8x128xf32>
    %379 = math.exp %378 : vector<8x128xf32>
    %cst_100 = arith.constant 1.000000e+00 : f32
    %380 = vector.broadcast %cst_100 : f32 to vector<8x128xf32>
    %381 = arith.addf %380, %379 : vector<8x128xf32>
    %382 = arith.divf %380, %381 : vector<8x128xf32>
    %383 = arith.select %8, %377, %382 : vector<8x128xi1>, vector<8x128xf32>
    %384 = vector.extract_strided_slice %375 {offsets = [0, 0], sizes = [8, 64], strides = [1, 1]} : vector<8x128xf32> to vector<8x64xf32>
    %385 = vector.extract_strided_slice %375 {offsets = [0, 64], sizes = [8, 64], strides = [1, 1]} : vector<8x128xf32> to vector<8x64xf32>
    %386 = vector.extract_strided_slice %383 {offsets = [0, 0], sizes = [8, 64], strides = [1, 1]} : vector<8x128xf32> to vector<8x64xf32>
    %387 = vector.extract_strided_slice %383 {offsets = [0, 64], sizes = [8, 64], strides = [1, 1]} : vector<8x128xf32> to vector<8x64xf32>
    %388 = arith.mulf %384, %362 : vector<8x64xf32>
    %389 = arith.mulf %385, %387 : vector<8x64xf32>
    %390 = arith.addf %388, %389 : vector<8x64xf32>
    %391 = math.tanh %390 : vector<8x64xf32>
    %392 = arith.mulf %386, %391 : vector<8x64xf32>
    %c32_101 = arith.constant 32 : index
    %c0_102 = arith.constant 0 : index
    %393 = vector.load %arg4[%c32_101, %c0_102] : memref<64x512xf32, #tpu.memory_space<vmem>>, vector<8x256xf32>
    %c24_103 = arith.constant 24 : index
    %c256_104 = arith.constant 256 : index
    %394 = vector.load %arg4[%c24_103, %c256_104] : memref<64x512xf32, #tpu.memory_space<vmem>>, vector<8x256xf32>
    %395 = arith.addf %393, %394 : vector<8x256xf32>
    %cst_105 = arith.constant dense<0.000000e+00> : vector<8x256xf32>
    %396 = tpu.matmul %392, %275, %cst_105 {dimension_numbers = #tpu.dot_dimension_numbers<[1], [0], [0], [1], [0, 0, 1, 1], [], []>} : vector<8x64xf32>, vector<64x256xf32>, vector<8x256xf32> -> vector<8x256xf32>
    %397 = arith.addf %395, %396 : vector<8x256xf32>
    %398 = vector.extract_strided_slice %397 {offsets = [0, 0], sizes = [8, 128], strides = [1, 1]} : vector<8x256xf32> to vector<8x128xf32>
    %399 = arith.negf %398 : vector<8x128xf32>
    %400 = math.exp %399 : vector<8x128xf32>
    %cst_106 = arith.constant 1.000000e+00 : f32
    %401 = vector.broadcast %cst_106 : f32 to vector<8x128xf32>
    %402 = arith.addf %401, %400 : vector<8x128xf32>
    %403 = arith.divf %401, %402 : vector<8x128xf32>
    %404 = vector.extract_strided_slice %397 {offsets = [0, 128], sizes = [8, 128], strides = [1, 1]} : vector<8x256xf32> to vector<8x128xf32>
    %405 = math.tanh %404 : vector<8x128xf32>
    %406 = arith.negf %404 : vector<8x128xf32>
    %407 = math.exp %406 : vector<8x128xf32>
    %cst_107 = arith.constant 1.000000e+00 : f32
    %408 = vector.broadcast %cst_107 : f32 to vector<8x128xf32>
    %409 = arith.addf %408, %407 : vector<8x128xf32>
    %410 = arith.divf %408, %409 : vector<8x128xf32>
    %411 = arith.select %8, %405, %410 : vector<8x128xi1>, vector<8x128xf32>
    %412 = vector.extract_strided_slice %403 {offsets = [0, 0], sizes = [8, 64], strides = [1, 1]} : vector<8x128xf32> to vector<8x64xf32>
    %413 = vector.extract_strided_slice %403 {offsets = [0, 64], sizes = [8, 64], strides = [1, 1]} : vector<8x128xf32> to vector<8x64xf32>
    %414 = vector.extract_strided_slice %411 {offsets = [0, 0], sizes = [8, 64], strides = [1, 1]} : vector<8x128xf32> to vector<8x64xf32>
    %415 = vector.extract_strided_slice %411 {offsets = [0, 64], sizes = [8, 64], strides = [1, 1]} : vector<8x128xf32> to vector<8x64xf32>
    %416 = arith.mulf %412, %390 : vector<8x64xf32>
    %417 = arith.mulf %413, %415 : vector<8x64xf32>
    %418 = arith.addf %416, %417 : vector<8x64xf32>
    %419 = math.tanh %418 : vector<8x64xf32>
    %420 = arith.mulf %414, %419 : vector<8x64xf32>
    %c40_108 = arith.constant 40 : index
    %c0_109 = arith.constant 0 : index
    %421 = vector.load %arg4[%c40_108, %c0_109] : memref<64x512xf32, #tpu.memory_space<vmem>>, vector<8x256xf32>
    %c16_110 = arith.constant 16 : index
    %c256_111 = arith.constant 256 : index
    %422 = vector.load %arg4[%c16_110, %c256_111] : memref<64x512xf32, #tpu.memory_space<vmem>>, vector<8x256xf32>
    %423 = arith.addf %421, %422 : vector<8x256xf32>
    %cst_112 = arith.constant dense<0.000000e+00> : vector<8x256xf32>
    %424 = tpu.matmul %420, %275, %cst_112 {dimension_numbers = #tpu.dot_dimension_numbers<[1], [0], [0], [1], [0, 0, 1, 1], [], []>} : vector<8x64xf32>, vector<64x256xf32>, vector<8x256xf32> -> vector<8x256xf32>
    %425 = arith.addf %423, %424 : vector<8x256xf32>
    %426 = vector.extract_strided_slice %425 {offsets = [0, 0], sizes = [8, 128], strides = [1, 1]} : vector<8x256xf32> to vector<8x128xf32>
    %427 = arith.negf %426 : vector<8x128xf32>
    %428 = math.exp %427 : vector<8x128xf32>
    %cst_113 = arith.constant 1.000000e+00 : f32
    %429 = vector.broadcast %cst_113 : f32 to vector<8x128xf32>
    %430 = arith.addf %429, %428 : vector<8x128xf32>
    %431 = arith.divf %429, %430 : vector<8x128xf32>
    %432 = vector.extract_strided_slice %425 {offsets = [0, 128], sizes = [8, 128], strides = [1, 1]} : vector<8x256xf32> to vector<8x128xf32>
    %433 = math.tanh %432 : vector<8x128xf32>
    %434 = arith.negf %432 : vector<8x128xf32>
    %435 = math.exp %434 : vector<8x128xf32>
    %cst_114 = arith.constant 1.000000e+00 : f32
    %436 = vector.broadcast %cst_114 : f32 to vector<8x128xf32>
    %437 = arith.addf %436, %435 : vector<8x128xf32>
    %438 = arith.divf %436, %437 : vector<8x128xf32>
    %439 = arith.select %8, %433, %438 : vector<8x128xi1>, vector<8x128xf32>
    %440 = vector.extract_strided_slice %431 {offsets = [0, 0], sizes = [8, 64], strides = [1, 1]} : vector<8x128xf32> to vector<8x64xf32>
    %441 = vector.extract_strided_slice %431 {offsets = [0, 64], sizes = [8, 64], strides = [1, 1]} : vector<8x128xf32> to vector<8x64xf32>
    %442 = vector.extract_strided_slice %439 {offsets = [0, 0], sizes = [8, 64], strides = [1, 1]} : vector<8x128xf32> to vector<8x64xf32>
    %443 = vector.extract_strided_slice %439 {offsets = [0, 64], sizes = [8, 64], strides = [1, 1]} : vector<8x128xf32> to vector<8x64xf32>
    %444 = arith.mulf %440, %418 : vector<8x64xf32>
    %445 = arith.mulf %441, %443 : vector<8x64xf32>
    %446 = arith.addf %444, %445 : vector<8x64xf32>
    %447 = math.tanh %446 : vector<8x64xf32>
    %448 = arith.mulf %442, %447 : vector<8x64xf32>
    %c48_115 = arith.constant 48 : index
    %c0_116 = arith.constant 0 : index
    %449 = vector.load %arg4[%c48_115, %c0_116] : memref<64x512xf32, #tpu.memory_space<vmem>>, vector<8x256xf32>
    %c8_117 = arith.constant 8 : index
    %c256_118 = arith.constant 256 : index
    %450 = vector.load %arg4[%c8_117, %c256_118] : memref<64x512xf32, #tpu.memory_space<vmem>>, vector<8x256xf32>
    %451 = arith.addf %449, %450 : vector<8x256xf32>
    %cst_119 = arith.constant dense<0.000000e+00> : vector<8x256xf32>
    %452 = tpu.matmul %448, %275, %cst_119 {dimension_numbers = #tpu.dot_dimension_numbers<[1], [0], [0], [1], [0, 0, 1, 1], [], []>} : vector<8x64xf32>, vector<64x256xf32>, vector<8x256xf32> -> vector<8x256xf32>
    %453 = arith.addf %451, %452 : vector<8x256xf32>
    %454 = vector.extract_strided_slice %453 {offsets = [0, 0], sizes = [8, 128], strides = [1, 1]} : vector<8x256xf32> to vector<8x128xf32>
    %455 = arith.negf %454 : vector<8x128xf32>
    %456 = math.exp %455 : vector<8x128xf32>
    %cst_120 = arith.constant 1.000000e+00 : f32
    %457 = vector.broadcast %cst_120 : f32 to vector<8x128xf32>
    %458 = arith.addf %457, %456 : vector<8x128xf32>
    %459 = arith.divf %457, %458 : vector<8x128xf32>
    %460 = vector.extract_strided_slice %453 {offsets = [0, 128], sizes = [8, 128], strides = [1, 1]} : vector<8x256xf32> to vector<8x128xf32>
    %461 = math.tanh %460 : vector<8x128xf32>
    %462 = arith.negf %460 : vector<8x128xf32>
    %463 = math.exp %462 : vector<8x128xf32>
    %cst_121 = arith.constant 1.000000e+00 : f32
    %464 = vector.broadcast %cst_121 : f32 to vector<8x128xf32>
    %465 = arith.addf %464, %463 : vector<8x128xf32>
    %466 = arith.divf %464, %465 : vector<8x128xf32>
    %467 = arith.select %8, %461, %466 : vector<8x128xi1>, vector<8x128xf32>
    %468 = vector.extract_strided_slice %459 {offsets = [0, 0], sizes = [8, 64], strides = [1, 1]} : vector<8x128xf32> to vector<8x64xf32>
    %469 = vector.extract_strided_slice %459 {offsets = [0, 64], sizes = [8, 64], strides = [1, 1]} : vector<8x128xf32> to vector<8x64xf32>
    %470 = vector.extract_strided_slice %467 {offsets = [0, 0], sizes = [8, 64], strides = [1, 1]} : vector<8x128xf32> to vector<8x64xf32>
    %471 = vector.extract_strided_slice %467 {offsets = [0, 64], sizes = [8, 64], strides = [1, 1]} : vector<8x128xf32> to vector<8x64xf32>
    %472 = arith.mulf %468, %446 : vector<8x64xf32>
    %473 = arith.mulf %469, %471 : vector<8x64xf32>
    %474 = arith.addf %472, %473 : vector<8x64xf32>
    %475 = math.tanh %474 : vector<8x64xf32>
    %476 = arith.mulf %470, %475 : vector<8x64xf32>
    %c56_122 = arith.constant 56 : index
    %c0_123 = arith.constant 0 : index
    %477 = vector.load %arg4[%c56_122, %c0_123] : memref<64x512xf32, #tpu.memory_space<vmem>>, vector<8x256xf32>
    %c0_124 = arith.constant 0 : index
    %c256_125 = arith.constant 256 : index
    %478 = vector.load %arg4[%c0_124, %c256_125] : memref<64x512xf32, #tpu.memory_space<vmem>>, vector<8x256xf32>
    %479 = arith.addf %477, %478 : vector<8x256xf32>
    %cst_126 = arith.constant dense<0.000000e+00> : vector<8x256xf32>
    %480 = tpu.matmul %476, %275, %cst_126 {dimension_numbers = #tpu.dot_dimension_numbers<[1], [0], [0], [1], [0, 0, 1, 1], [], []>} : vector<8x64xf32>, vector<64x256xf32>, vector<8x256xf32> -> vector<8x256xf32>
    %481 = arith.addf %479, %480 : vector<8x256xf32>
    %482 = vector.extract_strided_slice %481 {offsets = [0, 0], sizes = [8, 128], strides = [1, 1]} : vector<8x256xf32> to vector<8x128xf32>
    %483 = arith.negf %482 : vector<8x128xf32>
    %484 = math.exp %483 : vector<8x128xf32>
    %cst_127 = arith.constant 1.000000e+00 : f32
    %485 = vector.broadcast %cst_127 : f32 to vector<8x128xf32>
    %486 = arith.addf %485, %484 : vector<8x128xf32>
    %487 = arith.divf %485, %486 : vector<8x128xf32>
    %488 = vector.extract_strided_slice %481 {offsets = [0, 128], sizes = [8, 128], strides = [1, 1]} : vector<8x256xf32> to vector<8x128xf32>
    %489 = math.tanh %488 : vector<8x128xf32>
    %490 = arith.negf %488 : vector<8x128xf32>
    %491 = math.exp %490 : vector<8x128xf32>
    %cst_128 = arith.constant 1.000000e+00 : f32
    %492 = vector.broadcast %cst_128 : f32 to vector<8x128xf32>
    %493 = arith.addf %492, %491 : vector<8x128xf32>
    %494 = arith.divf %492, %493 : vector<8x128xf32>
    %495 = arith.select %8, %489, %494 : vector<8x128xi1>, vector<8x128xf32>
    %496 = vector.extract_strided_slice %487 {offsets = [0, 0], sizes = [8, 64], strides = [1, 1]} : vector<8x128xf32> to vector<8x64xf32>
    %497 = vector.extract_strided_slice %487 {offsets = [0, 64], sizes = [8, 64], strides = [1, 1]} : vector<8x128xf32> to vector<8x64xf32>
    %498 = vector.extract_strided_slice %495 {offsets = [0, 0], sizes = [8, 64], strides = [1, 1]} : vector<8x128xf32> to vector<8x64xf32>
    %499 = vector.extract_strided_slice %495 {offsets = [0, 64], sizes = [8, 64], strides = [1, 1]} : vector<8x128xf32> to vector<8x64xf32>
    %500 = arith.mulf %496, %474 : vector<8x64xf32>
    %501 = arith.mulf %497, %499 : vector<8x64xf32>
    %502 = arith.addf %500, %501 : vector<8x64xf32>
    %503 = math.tanh %502 : vector<8x64xf32>
    %504 = arith.mulf %498, %503 : vector<8x64xf32>
    %505 = tpu.concatenate %504, %502 in 1 : vector<8x64xf32>, vector<8x64xf32> -> vector<8x128xf32>
    %c1_129 = arith.constant 1 : index
    %c0_130 = arith.constant 0 : index
    %c0_131 = arith.constant 0 : index
    %506 = vector.load %arg3[%c1_129, %c0_130, %c0_131] : memref<3x8x128xf32, #tpu.memory_space<vmem>>, vector<1x8x128xf32>
    %507 = vector.shape_cast %506 : vector<1x8x128xf32> to vector<8x128xf32>
    %508 = vector.shape_cast %505 : vector<8x128xf32> to vector<1x8x128xf32>
    tpu.vector_store %arg3[%c1_129, %c0_130, %c0_131], %508 {strides = array<i32>} : memref<3x8x128xf32, #tpu.memory_space<vmem>>, vector<1x8x128xf32>,
    %c264 = arith.constant 264 : index
    %c0_132 = arith.constant 0 : index
    %509 = vector.load %arg2[%c264, %c0_132] : memref<304x512xf32, #tpu.memory_space<vmem>>, vector<32x128xf32>
    %cst_133 = arith.constant dense<0.000000e+00> : vector<8x128xf32>
    %510 = tpu.matmul %308, %509, %cst_133 {dimension_numbers = #tpu.dot_dimension_numbers<[1], [0], [0], [1], [0, 0, 1, 1], [], []>} : vector<8x32xf32>, vector<32x128xf32>, vector<8x128xf32> -> vector<8x128xf32>
    %c296 = arith.constant 296 : index
    %c0_134 = arith.constant 0 : index
    %511 = vector.load %arg2[%c296, %c0_134] : memref<304x512xf32, #tpu.memory_space<vmem>>, vector<1x128xf32>
    %512 = vector.broadcast %511 : vector<1x128xf32> to vector<8x128xf32>
    %513 = arith.addf %510, %512 : vector<8x128xf32>
    %514 = arith.negf %513 : vector<8x128xf32>
    %515 = math.exp %514 : vector<8x128xf32>
    %cst_135 = arith.constant 1.000000e+00 : f32
    %516 = vector.broadcast %cst_135 : f32 to vector<8x128xf32>
    %517 = arith.addf %516, %515 : vector<8x128xf32>
    %518 = arith.divf %516, %517 : vector<8x128xf32>
    %c2 = arith.constant 2 : index
    %c0_136 = arith.constant 0 : index
    %c0_137 = arith.constant 0 : index
    %519 = vector.load %arg3[%c2, %c0_136, %c0_137] : memref<3x8x128xf32, #tpu.memory_space<vmem>>, vector<1x8x128xf32>
    %520 = vector.shape_cast %519 : vector<1x8x128xf32> to vector<8x128xf32>
    %521 = vector.shape_cast %518 : vector<8x128xf32> to vector<1x8x128xf32>
    tpu.vector_store %arg3[%c2, %c0_136, %c0_137], %521 {strides = array<i32>} : memref<3x8x128xf32, #tpu.memory_space<vmem>>, vector<1x8x128xf32>,
    return
  }
}

</mosaic_0001>

<llo_original>
// kernel: bilstm_forward.1
$region0: #{bilstm_forward.1}
  #allocation0 [shape = 'u32[]', space=smem, size = 0x4, offset = 0x4, fixed_abs, tag = 'smem constant byte address 0x4 - core index']
  #allocation1 [shape = 'u32[144,128]{1,0:T(1,128)}', space=vmem, size = 0x12000, scoped, tag = 'internal scratch']
  #allocation2 [shape = 'f32[64,512]{1,0:T(8,128)}', space=vmem, size = 0x20000, scoped, tag = 'scratch operand']
  %s0 = inlined_call_operand.vmem [shape: s32[64,1], index: 0, kind: input, shape index: {}]
  %s1 = inlined_call_operand.vmem [shape: f32[2,8,128], index: 1, kind: input, shape index: {}]
  %s2 = inlined_call_operand.hbm [shape: f32[304,512], index: 2, kind: input, shape index: {}]
  %s3 = inlined_call_operand.vmem [shape: f32[3,8,128], index: 3, kind: output, shape index: {}]
  %s4 = sld [smem:[#allocation0]]
  $region26: #{bilstm_forward.1} parent=0
    _
  %s6 = ssub.s32 1, %s4
  %s7 = scalar_select 0, %s6, %s4
  $region1: #{bilstm_forward.1} parent=0
    #allocation3 [shape = 'u8[622592]{0}', space=vmem, size = 0x98000, scoped, tag = 'input window, operand 2, single buffered']
    #allocation4 [shape = 's32[1]{0}', space=sflag, size = 0x4, scoped, tag = 'scoped memory for bilstm_forward.1']
    %8 = vsyncpa [#allocation4], 0
    // Predicated region
    $region2: #{bilstm_forward.1} parent=1 // pred_check
      _
    $region3: #{bilstm_forward.1} parent=1 // pred_check_branch
      %10 = sbr.rel (0) target = $region5
    $region4: #{bilstm_forward.1} parent=1 // pred_region
      _
    $region5: #{bilstm_forward.1} parent=1 // pred_fallthru
      _
    // Predicated region
    $region6: #{bilstm_forward.1} parent=1 // pred_check
      _
    $region7: #{bilstm_forward.1} parent=1 // pred_check_branch
      %12 = sbr.rel (0) target = $region9
    $region8: #{bilstm_forward.1} parent=1 // pred_region
      _
    $region9: #{bilstm_forward.1} parent=1 // pred_fallthru
      _
    // Predicated region
    $region10: #{bilstm_forward.1} parent=1 // pred_check
      _
    $region11: #{bilstm_forward.1} parent=1 // pred_check_branch
      %14 = sbr.rel (0) target = $region13
    $region12: #{bilstm_forward.1} parent=1 // pred_region
      %s16 = ssub.s32 19456, 19456
      %17 = vsyncadd [#allocation4], %s16
      %s18 = sshll.u32 [#allocation3], 4
      %s19 = int_to_ptr.vmem [resolvable:$true] %s18
      %24 = dma.hbm_to_vmem [thread:$0]  %s2, 19456, %s19, [#allocation4], 512, 512, 32
    $region13: #{bilstm_forward.1} parent=1 // pred_fallthru
      _
    // Predicated region
    $region14: #{bilstm_forward.1} parent=1 // pred_check
      _
    $region15: #{bilstm_forward.1} parent=1 // pred_check_branch
      %26 = sbr.rel (0) target = $region17
    $region16: #{bilstm_forward.1} parent=1 // pred_region
      %27 = dma.done [#allocation4], 19456
    $region17: #{bilstm_forward.1} parent=1 // pred_fallthru
      _
    %v28 = vlaneseq
    %v29 = vand.u32 %v28, 127
    %v30 = vld [vmem:[%s0] sm:$0xff]
    %v31 = vld [vmem:[%s0 + $0x8] sm:$0xff]
    %v32 = vld [vmem:[%s0 + $0x10] sm:$0xff]
    %v33 = vld [vmem:[%s0 + $0x18] sm:$0xff]
    %v34 = vld [vmem:[%s0 + $0x20] sm:$0xff]
    %v35 = vld [vmem:[%s0 + $0x28] sm:$0xff]
    %v36 = vld [vmem:[%s0 + $0x30] sm:$0xff]
    %v37 = vld [vmem:[%s0 + $0x38] sm:$0xff]
    %38 = vset.pattern.permute.xlu0 0
    %39 = vperm.xlu0 %38, %v30
    %v40 = vpop.permute.xlu0 %39
    %41 = vset.pattern.permute.xlu0 0
    %42 = vperm.xlu0 %41, %v31
    %v43 = vpop.permute.xlu0 %42
    %44 = vset.pattern.permute.xlu0 0
    %45 = vperm.xlu0 %44, %v32
    %v46 = vpop.permute.xlu0 %45
    %47 = vset.pattern.permute.xlu0 0
    %48 = vperm.xlu0 %47, %v33
    %v49 = vpop.permute.xlu0 %48
    %50 = vset.pattern.permute.xlu0 0
    %51 = vperm.xlu0 %50, %v34
    %v52 = vpop.permute.xlu0 %51
    %53 = vset.pattern.permute.xlu0 0
    %54 = vperm.xlu0 %53, %v35
    %v55 = vpop.permute.xlu0 %54
    %56 = vset.pattern.permute.xlu0 0
    %57 = vperm.xlu0 %56, %v36
    %v58 = vpop.permute.xlu0 %57
    %59 = vset.pattern.permute.xlu0 0
    %60 = vperm.xlu0 %59, %v37
    %v61 = vpop.permute.xlu0 %60
    %vm62 = vcmp.eq.s32.totalorder %v29, %v40
    %vm63 = vcmp.eq.s32.totalorder %v29, %v43
    %vm64 = vcmp.eq.s32.totalorder %v29, %v46
    %vm65 = vcmp.eq.s32.totalorder %v29, %v49
    %vm66 = vcmp.eq.s32.totalorder %v29, %v52
    %vm67 = vcmp.eq.s32.totalorder %v29, %v55
    %vm68 = vcmp.eq.s32.totalorder %v29, %v58
    %vm69 = vcmp.eq.s32.totalorder %v29, %v61
    %v70 = vsel %vm62, 1, 0
    %v71 = vsel %vm63, 1, 0
    %v72 = vsel %vm64, 1, 0
    %v73 = vsel %vm65, 1, 0
    %v74 = vsel %vm66, 1, 0
    %v75 = vsel %vm67, 1, 0
    %v76 = vsel %vm68, 1, 0
    %v77 = vsel %vm69, 1, 0
    %v78 = vcvt.s32.f32 %v70
    %v79 = vcvt.s32.f32 %v71
    %v80 = vcvt.s32.f32 %v72
    %v81 = vcvt.s32.f32 %v73
    %v82 = vcvt.s32.f32 %v74
    %v83 = vcvt.s32.f32 %v75
    %v84 = vcvt.s32.f32 %v76
    %v85 = vcvt.s32.f32 %v77
    %vm86 = vcmp.ge.s32.totalorder %v29, 64
    %v87 = vld [vmem:[#allocation3] sm:$0xff]
    %v88 = vld [vmem:[#allocation3 + $0x8] sm:$0xff]
    %v89 = vld [vmem:[#allocation3 + $0x10] sm:$0xff]
    %v90 = vld [vmem:[#allocation3 + $0x18] sm:$0xff]
    %v91 = vld [vmem:[#allocation3 + $0x20] sm:$0xff]
    %v92 = vld [vmem:[#allocation3 + $0x28] sm:$0xff]
    %v93 = vld [vmem:[#allocation3 + $0x30] sm:$0xff]
    %v94 = vld [vmem:[#allocation3 + $0x38] sm:$0xff]
    %v95 = vld [vmem:[#allocation3 + $0x40] sm:$0xff]
    %v96 = vld [vmem:[#allocation3 + $0x48] sm:$0xff]
    %v97 = vld [vmem:[#allocation3 + $0x50] sm:$0xff]
    %v98 = vld [vmem:[#allocation3 + $0x58] sm:$0xff]
    %v99 = vld [vmem:[#allocation3 + $0x60] sm:$0xff]
    %v100 = vld [vmem:[#allocation3 + $0x68] sm:$0xff]
    %v101 = vld [vmem:[#allocation3 + $0x70] sm:$0xff]
    %v102 = vld [vmem:[#allocation3 + $0x78] sm:$0xff]
    %v103 = vld [vmem:[#allocation3 + $0x80] sm:$0xff]
    %v104 = vld [vmem:[#allocation3 + $0x88] sm:$0xff]
    %v105 = vld [vmem:[#allocation3 + $0x90] sm:$0xff]
    %v106 = vld [vmem:[#allocation3 + $0x98] sm:$0xff]
    %v107 = vld [vmem:[#allocation3 + $0xa0] sm:$0xff]
    %v108 = vld [vmem:[#allocation3 + $0xa8] sm:$0xff]
    %v109 = vld [vmem:[#allocation3 + $0xb0] sm:$0xff]
    %v110 = vld [vmem:[#allocation3 + $0xb8] sm:$0xff]
    %v111 = vld [vmem:[#allocation3 + $0xc0] sm:$0xff]
    %v112 = vld [vmem:[#allocation3 + $0xc8] sm:$0xff]
    %v113 = vld [vmem:[#allocation3 + $0xd0] sm:$0xff]
    %v114 = vld [vmem:[#allocation3 + $0xd8] sm:$0xff]
    %v115 = vld [vmem:[#allocation3 + $0xe0] sm:$0xff]
    %v116 = vld [vmem:[#allocation3 + $0xe8] sm:$0xff]
    %v117 = vld [vmem:[#allocation3 + $0xf0] sm:$0xff]
    %v118 = vld [vmem:[#allocation3 + $0xf8] sm:$0xff]
    %v119 = vld [vmem:[#allocation3 + $0x100] sm:$0xff]
    %v120 = vld [vmem:[#allocation3 + $0x108] sm:$0xff]
    %v121 = vld [vmem:[#allocation3 + $0x110] sm:$0xff]
    %v122 = vld [vmem:[#allocation3 + $0x118] sm:$0xff]
    %v123 = vld [vmem:[#allocation3 + $0x120] sm:$0xff]
    %v124 = vld [vmem:[#allocation3 + $0x128] sm:$0xff]
    %v125 = vld [vmem:[#allocation3 + $0x130] sm:$0xff]
    %v126 = vld [vmem:[#allocation3 + $0x138] sm:$0xff]
    %v127 = vld [vmem:[#allocation3 + $0x140] sm:$0xff]
    %v128 = vld [vmem:[#allocation3 + $0x148] sm:$0xff]
    %v129 = vld [vmem:[#allocation3 + $0x150] sm:$0xff]
    %v130 = vld [vmem:[#allocation3 + $0x158] sm:$0xff]
    %v131 = vld [vmem:[#allocation3 + $0x160] sm:$0xff]
    %v132 = vld [vmem:[#allocation3 + $0x168] sm:$0xff]
    %v133 = vld [vmem:[#allocation3 + $0x170] sm:$0xff]
    %v134 = vld [vmem:[#allocation3 + $0x178] sm:$0xff]
    %v135 = vld [vmem:[#allocation3 + $0x180] sm:$0xff]
    %v136 = vld [vmem:[#allocation3 + $0x188] sm:$0xff]
    %v137 = vld [vmem:[#allocation3 + $0x190] sm:$0xff]
    %v138 = vld [vmem:[#allocation3 + $0x198] sm:$0xff]
    %v139 = vld [vmem:[#allocation3 + $0x1a0] sm:$0xff]
    %v140 = vld [vmem:[#allocation3 + $0x1a8] sm:$0xff]
    %v141 = vld [vmem:[#allocation3 + $0x1b0] sm:$0xff]
    %v142 = vld [vmem:[#allocation3 + $0x1b8] sm:$0xff]
    %v143 = vld [vmem:[#allocation3 + $0x1c0] sm:$0xff]
    %v144 = vld [vmem:[#allocation3 + $0x1c8] sm:$0xff]
    %v145 = vld [vmem:[#allocation3 + $0x1d0] sm:$0xff]
    %v146 = vld [vmem:[#allocation3 + $0x1d8] sm:$0xff]
    %v147 = vld [vmem:[#allocation3 + $0x1e0] sm:$0xff]
    %v148 = vld [vmem:[#allocation3 + $0x1e8] sm:$0xff]
    %v149 = vld [vmem:[#allocation3 + $0x1f0] sm:$0xff]
    %v150 = vld [vmem:[#allocation3 + $0x1f8] sm:$0xff]
    %s151 = scalar_lea.vmem [#allocation3], 1024
    %v152 = vld [vmem:[%s151] ss:$8 sm:$0xf]
    %v154 = vlaneseq
    %v155 = vshrl.u32 %v154, 7
    %v156 = vsub.s32 0, %v155
    %v157 = vrot.slane %v152, %v156
    %v158 = vlaneseq
    %v159 = vshrl.u32 %v158, 7
    %v160 = vsub.s32 1, %v159
    %v161 = vrot.slane %v152, %v160
    %v162 = vlaneseq
    %v163 = vshrl.u32 %v162, 7
    %v164 = vsub.s32 2, %v163
    %v165 = vrot.slane %v152, %v164
    %v166 = vlaneseq
    %v167 = vshrl.u32 %v166, 7
    %v168 = vsub.s32 3, %v167
    %v169 = vrot.slane %v152, %v168
    %174 = vmatprep.subr.mxu0 %v88
    %175 = vmatpush1.msra.mxu0 %v87
    %176 = vmatprep.subr.mxu0 %v92
    %177 = vmatpush1.msra.mxu0 %v91
    %178 = vmatprep.subr.mxu0 %v96
    %179 = vmatpush1.msra.mxu0 %v95
    %180 = vmatprep.subr.mxu0 %v100
    %181 = vmatpush1.msra.mxu0 %v99
    %182 = vmatprep.subr.mxu0 %v104
    %183 = vmatpush1.msra.mxu0 %v103
    %184 = vmatprep.subr.mxu0 %v108
    %185 = vmatpush1.msra.mxu0 %v107
    %186 = vmatprep.subr.mxu0 %v112
    %187 = vmatpush1.msra.mxu0 %v111
    %188 = vmatprep.subr.mxu0 %v116
    %189 = vmatpush1.msra.mxu0 %v115
    %190 = vmatprep.subr.mxu0 %v120
    %191 = vmatpush1.msra.mxu0 %v119
    %192 = vmatprep.subr.mxu0 %v124
    %193 = vmatpush1.msra.mxu0 %v123
    %194 = vmatprep.subr.mxu0 %v128
    %195 = vmatpush1.msra.mxu0 %v127
    %196 = vmatprep.subr.mxu0 %v132
    %197 = vmatpush1.msra.mxu0 %v131
    %198 = vmatprep.subr.mxu0 %v136
    %199 = vmatpush1.msra.mxu0 %v135
    %200 = vmatprep.subr.mxu0 %v140
    %201 = vmatpush1.msra.mxu0 %v139
    %202 = vmatprep.subr.mxu0 %v144
    %203 = vmatpush1.msra.mxu0 %v143
    %204 = vmatprep.subr.mxu0 %v148
    %205 = vmatpush1.msra.mxu0 %v147
    %206 = vmatprep.subr.mxu0 0.0
    %207 = vmatpush1.msra.mxu0 0.0
    %208 = vmatprep.subr.mxu0 0.0
    %209 = vmatpush1.msra.mxu0 0.0
    %210 = vmatprep.subr.mxu0 0.0
    %211 = vmatpush1.msra.mxu0 0.0
    %212 = vmatprep.subr.mxu0 0.0
    %213 = vmatpush1.msra.mxu0 0.0
    %214 = vmatprep.subr.mxu0 0.0
    %215 = vmatpush1.msra.mxu0 0.0
    %216 = vmatprep.subr.mxu0 0.0
    %217 = vmatpush1.msra.mxu0 0.0
    %218 = vmatprep.subr.mxu0 0.0
    %219 = vmatpush1.msra.mxu0 0.0
    %220 = vmatprep.subr.mxu0 0.0
    %221 = vmatpush1.msra.mxu0 0.0
    %222 = vmatprep.subr.mxu0 0.0
    %223 = vmatpush1.msra.mxu0 0.0
    %224 = vmatprep.subr.mxu0 0.0
    %225 = vmatpush1.msra.mxu0 0.0
    %226 = vmatprep.subr.mxu0 0.0
    %227 = vmatpush1.msra.mxu0 0.0
    %228 = vmatprep.subr.mxu0 0.0
    %229 = vmatpush1.msra.mxu0 0.0
    %230 = vmatprep.subr.mxu0 0.0
    %231 = vmatpush1.msra.mxu0 0.0
    %232 = vmatprep.subr.mxu0 0.0
    %233 = vmatpush1.msra.mxu0 0.0
    %234 = vmatprep.subr.mxu0 0.0
    %235 = vmatpush1.msra.mxu0 0.0
    %236 = vmatprep.subr.mxu0 0.0
    %237 = vmatpush1.msra.mxu0 0.0
    %238 = vmatprep.mubr.f32.mxu0 0.0
    %239 = vmatmul.mubr.f32.gmra.mrb[0].mxu0 %v78
    %v240 = vpop.f32.mrb[0].mxu0
    %v241 = vadd.f32 %v157, %v240
    %v242 = vpop.f32.mrb[0].mxu0
    %v243 = vadd.f32 %v161, %v242
    %244 = vmatprep.mubr.f32.mxu0 0.0
    %245 = vmatmul.mubr.f32.gmra.mrb[0].mxu0 %v79
    %v246 = vpop.f32.mrb[0].mxu0
    %v247 = vadd.f32 %v157, %v246
    %v248 = vpop.f32.mrb[0].mxu0
    %v249 = vadd.f32 %v161, %v248
    %250 = vmatprep.mubr.f32.mxu0 0.0
    %251 = vmatmul.mubr.f32.gmra.mrb[0].mxu0 %v80
    %v252 = vpop.f32.mrb[0].mxu0
    %v253 = vadd.f32 %v157, %v252
    %v254 = vpop.f32.mrb[0].mxu0
    %v255 = vadd.f32 %v161, %v254
    %256 = vmatprep.mubr.f32.mxu0 0.0
    %257 = vmatmul.mubr.f32.gmra.mrb[0].mxu0 %v81
    %v258 = vpop.f32.mrb[0].mxu0
    %v259 = vadd.f32 %v157, %v258
    %v260 = vpop.f32.mrb[0].mxu0
    %v261 = vadd.f32 %v161, %v260
    %262 = vmatprep.mubr.f32.mxu0 0.0
    %263 = vmatmul.mubr.f32.gmra.mrb[0].mxu0 %v82
    %v264 = vpop.f32.mrb[0].mxu0
    %v265 = vadd.f32 %v157, %v264
    %v266 = vpop.f32.mrb[0].mxu0
    %v267 = vadd.f32 %v161, %v266
    %268 = vmatprep.mubr.f32.mxu0 0.0
    %269 = vmatmul.mubr.f32.gmra.mrb[0].mxu0 %v83
    %v270 = vpop.f32.mrb[0].mxu0
    %v271 = vadd.f32 %v157, %v270
    %v272 = vpop.f32.mrb[0].mxu0
    %v273 = vadd.f32 %v161, %v272
    %274 = vmatprep.mubr.f32.mxu0 0.0
    %275 = vmatmul.mubr.f32.gmra.mrb[0].mxu0 %v84
    %v276 = vpop.f32.mrb[0].mxu0
    %v277 = vadd.f32 %v157, %v276
    %v278 = vpop.f32.mrb[0].mxu0
    %v279 = vadd.f32 %v161, %v278
    %280 = vmatprep.mubr.f32.mxu0 0.0
    %281 = vmatmul.mubr.f32.gmra.mrb[0].mxu0 %v85
    %v282 = vpop.f32.mrb[0].mxu0
    %v283 = vadd.f32 %v157, %v282
    %v284 = vpop.f32.mrb[0].mxu0
    %v285 = vadd.f32 %v161, %v284
    %286 = vdwg.mxu0
    %287 = vmatprep.subr.mxu0 %v90
    %288 = vmatpush1.msra.mxu0 %v89
    %289 = vmatprep.subr.mxu0 %v94
    %290 = vmatpush1.msra.mxu0 %v93
    %291 = vmatprep.subr.mxu0 %v98
    %292 = vmatpush1.msra.mxu0 %v97
    %293 = vmatprep.subr.mxu0 %v102
    %294 = vmatpush1.msra.mxu0 %v101
    %295 = vmatprep.subr.mxu0 %v106
    %296 = vmatpush1.msra.mxu0 %v105
    %297 = vmatprep.subr.mxu0 %v110
    %298 = vmatpush1.msra.mxu0 %v109
    %299 = vmatprep.subr.mxu0 %v114
    %300 = vmatpush1.msra.mxu0 %v113
    %301 = vmatprep.subr.mxu0 %v118
    %302 = vmatpush1.msra.mxu0 %v117
    %303 = vmatprep.subr.mxu0 %v122
    %304 = vmatpush1.msra.mxu0 %v121
    %305 = vmatprep.subr.mxu0 %v126
    %306 = vmatpush1.msra.mxu0 %v125
    %307 = vmatprep.subr.mxu0 %v130
    %308 = vmatpush1.msra.mxu0 %v129
    %309 = vmatprep.subr.mxu0 %v134
    %310 = vmatpush1.msra.mxu0 %v133
    %311 = vmatprep.subr.mxu0 %v138
    %312 = vmatpush1.msra.mxu0 %v137
    %313 = vmatprep.subr.mxu0 %v142
    %314 = vmatpush1.msra.mxu0 %v141
    %315 = vmatprep.subr.mxu0 %v146
    %316 = vmatpush1.msra.mxu0 %v145
    %317 = vmatprep.subr.mxu0 %v150
    %318 = vmatpush1.msra.mxu0 %v149
    %319 = vmatprep.subr.mxu0 0.0
    %320 = vmatpush1.msra.mxu0 0.0
    %321 = vmatprep.subr.mxu0 0.0
    %322 = vmatpush1.msra.mxu0 0.0
    %323 = vmatprep.subr.mxu0 0.0
    %324 = vmatpush1.msra.mxu0 0.0
    %325 = vmatprep.subr.mxu0 0.0
    %326 = vmatpush1.msra.mxu0 0.0
    %327 = vmatprep.subr.mxu0 0.0
    %328 = vmatpush1.msra.mxu0 0.0
    %329 = vmatprep.subr.mxu0 0.0
    %330 = vmatpush1.msra.mxu0 0.0
    %331 = vmatprep.subr.mxu0 0.0
    %332 = vmatpush1.msra.mxu0 0.0
    %333 = vmatprep.subr.mxu0 0.0
    %334 = vmatpush1.msra.mxu0 0.0
    %335 = vmatprep.subr.mxu0 0.0
    %336 = vmatpush1.msra.mxu0 0.0
    %337 = vmatprep.subr.mxu0 0.0
    %338 = vmatpush1.msra.mxu0 0.0
    %339 = vmatprep.subr.mxu0 0.0
    %340 = vmatpush1.msra.mxu0 0.0
    %341 = vmatprep.subr.mxu0 0.0
    %342 = vmatpush1.msra.mxu0 0.0
    %343 = vmatprep.subr.mxu0 0.0
    %344 = vmatpush1.msra.mxu0 0.0
    %345 = vmatprep.subr.mxu0 0.0
    %346 = vmatpush1.msra.mxu0 0.0
    %347 = vmatprep.subr.mxu0 0.0
    %348 = vmatpush1.msra.mxu0 0.0
    %349 = vmatprep.subr.mxu0 0.0
    %350 = vmatpush1.msra.mxu0 0.0
    %351 = vmatprep.mubr.f32.mxu0 0.0
    %352 = vmatmul.mubr.f32.gmra.mrb[0].mxu0 %v78
    %v353 = vpop.f32.mrb[0].mxu0
    %v354 = vadd.f32 %v165, %v353
    %v355 = vpop.f32.mrb[0].mxu0
    %v356 = vadd.f32 %v169, %v355
    %357 = vmatprep.mubr.f32.mxu0 0.0
    %358 = vmatmul.mubr.f32.gmra.mrb[0].mxu0 %v79
    %v359 = vpop.f32.mrb[0].mxu0
    %v360 = vadd.f32 %v165, %v359
    %v361 = vpop.f32.mrb[0].mxu0
    %v362 = vadd.f32 %v169, %v361
    %363 = vmatprep.mubr.f32.mxu0 0.0
    %364 = vmatmul.mubr.f32.gmra.mrb[0].mxu0 %v80
    %v365 = vpop.f32.mrb[0].mxu0
    %v366 = vadd.f32 %v165, %v365
    %v367 = vpop.f32.mrb[0].mxu0
    %v368 = vadd.f32 %v169, %v367
    %369 = vmatprep.mubr.f32.mxu0 0.0
    %370 = vmatmul.mubr.f32.gmra.mrb[0].mxu0 %v81
    %v371 = vpop.f32.mrb[0].mxu0
    %v372 = vadd.f32 %v165, %v371
    %v373 = vpop.f32.mrb[0].mxu0
    %v374 = vadd.f32 %v169, %v373
    %375 = vmatprep.mubr.f32.mxu0 0.0
    %376 = vmatmul.mubr.f32.gmra.mrb[0].mxu0 %v82
    %v377 = vpop.f32.mrb[0].mxu0
    %v378 = vadd.f32 %v165, %v377
    %v379 = vpop.f32.mrb[0].mxu0
    %v380 = vadd.f32 %v169, %v379
    %381 = vmatprep.mubr.f32.mxu0 0.0
    %382 = vmatmul.mubr.f32.gmra.mrb[0].mxu0 %v83
    %v383 = vpop.f32.mrb[0].mxu0
    %v384 = vadd.f32 %v165, %v383
    %v385 = vpop.f32.mrb[0].mxu0
    %v386 = vadd.f32 %v169, %v385
    %387 = vmatprep.mubr.f32.mxu0 0.0
    %388 = vmatmul.mubr.f32.gmra.mrb[0].mxu0 %v84
    %v389 = vpop.f32.mrb[0].mxu0
    %v390 = vadd.f32 %v165, %v389
    %v391 = vpop.f32.mrb[0].mxu0
    %v392 = vadd.f32 %v169, %v391
    %393 = vmatprep.mubr.f32.mxu0 0.0
    %394 = vmatmul.mubr.f32.gmra.mrb[0].mxu0 %v85
    %v395 = vpop.f32.mrb[0].mxu0
    %v396 = vadd.f32 %v165, %v395
    %v397 = vpop.f32.mrb[0].mxu0
    %v398 = vadd.f32 %v169, %v397
    %399 = vdwg.mxu0
    %400 = vst [vmem:[#allocation2] sm:$0xff] %v241
    %401 = vst [vmem:[#allocation2 + $0x8] sm:$0xff] %v243
    %402 = vst [vmem:[#allocation2 + $0x10] sm:$0xff] %v354
    %403 = vst [vmem:[#allocation2 + $0x18] sm:$0xff] %v356
    %404 = vst [vmem:[#allocation2 + $0x20] sm:$0xff] %v247
    %405 = vst [vmem:[#allocation2 + $0x28] sm:$0xff] %v249
    %406 = vst [vmem:[#allocation2 + $0x30] sm:$0xff] %v360
    %407 = vst [vmem:[#allocation2 + $0x38] sm:$0xff] %v362
    %408 = vst [vmem:[#allocation2 + $0x40] sm:$0xff] %v253
    %409 = vst [vmem:[#allocation2 + $0x48] sm:$0xff] %v255
    %410 = vst [vmem:[#allocation2 + $0x50] sm:$0xff] %v366
    %411 = vst [vmem:[#allocation2 + $0x58] sm:$0xff] %v368
    %412 = vst [vmem:[#allocation2 + $0x60] sm:$0xff] %v259
    %413 = vst [vmem:[#allocation2 + $0x68] sm:$0xff] %v261
    %414 = vst [vmem:[#allocation2 + $0x70] sm:$0xff] %v372
    %415 = vst [vmem:[#allocation2 + $0x78] sm:$0xff] %v374
    %416 = vst [vmem:[#allocation2 + $0x80] sm:$0xff] %v265
    %417 = vst [vmem:[#allocation2 + $0x88] sm:$0xff] %v267
    %418 = vst [vmem:[#allocation2 + $0x90] sm:$0xff] %v378
    %419 = vst [vmem:[#allocation2 + $0x98] sm:$0xff] %v380
    %420 = vst [vmem:[#allocation2 + $0xa0] sm:$0xff] %v271
    %421 = vst [vmem:[#allocation2 + $0xa8] sm:$0xff] %v273
    %422 = vst [vmem:[#allocation2 + $0xb0] sm:$0xff] %v384
    %423 = vst [vmem:[#allocation2 + $0xb8] sm:$0xff] %v386
    %424 = vst [vmem:[#allocation2 + $0xc0] sm:$0xff] %v277
    %425 = vst [vmem:[#allocation2 + $0xc8] sm:$0xff] %v279
    %426 = vst [vmem:[#allocation2 + $0xd0] sm:$0xff] %v390
    %427 = vst [vmem:[#allocation2 + $0xd8] sm:$0xff] %v392
    %428 = vst [vmem:[#allocation2 + $0xe0] sm:$0xff] %v283
    %429 = vst [vmem:[#allocation2 + $0xe8] sm:$0xff] %v285
    %430 = vst [vmem:[#allocation2 + $0xf0] sm:$0xff] %v396
    %431 = vst [vmem:[#allocation2 + $0xf8] sm:$0xff] %v398
    %v432 = vld [vmem:[#allocation3 + $0x300] sm:$0xff]
    %v433 = vld [vmem:[#allocation3 + $0x308] sm:$0xff]
    %v434 = vld [vmem:[#allocation3 + $0x320] sm:$0xff]
    %v435 = vld [vmem:[#allocation3 + $0x328] sm:$0xff]
    %v436 = vld [vmem:[#allocation3 + $0x340] sm:$0xff]
    %v437 = vld [vmem:[#allocation3 + $0x348] sm:$0xff]
    %v438 = vld [vmem:[#allocation3 + $0x360] sm:$0xff]
    %v439 = vld [vmem:[#allocation3 + $0x368] sm:$0xff]
    %v440 = vld [vmem:[#allocation3 + $0x380] sm:$0xff]
    %v441 = vld [vmem:[#allocation3 + $0x388] sm:$0xff]
    %v442 = vld [vmem:[#allocation3 + $0x3a0] sm:$0xff]
    %v443 = vld [vmem:[#allocation3 + $0x3a8] sm:$0xff]
    %v444 = vld [vmem:[#allocation3 + $0x3c0] sm:$0xff]
    %v445 = vld [vmem:[#allocation3 + $0x3c8] sm:$0xff]
    %v446 = vld [vmem:[#allocation3 + $0x3e0] sm:$0xff]
    %v447 = vld [vmem:[#allocation3 + $0x3e8] sm:$0xff]
    %v448 = vld [vmem:[%s1] sm:$0xff]
    %v449 = vld [vmem:[#allocation2] sm:$0xff]
    %v450 = vld [vmem:[#allocation2 + $0x8] sm:$0xff]
    %v451 = vld [vmem:[#allocation2 + $0xf0] sm:$0xff]
    %v452 = vld [vmem:[#allocation2 + $0xf8] sm:$0xff]
    %v453 = vadd.f32 %v449, %v451
    %v454 = vadd.f32 %v450, %v452
    %vm455 = vcmask 523264
    %v457 = vsel %vm455, %v448, 0
    %459 = vmatprep.subr.mxu0 %v433
    %460 = vmatpush1.msra.mxu0 %v432
    %461 = vmatprep.subr.mxu0 %v435
    %462 = vmatpush1.msra.mxu0 %v434
    %463 = vmatprep.subr.mxu0 %v437
    %464 = vmatpush1.msra.mxu0 %v436
    %465 = vmatprep.subr.mxu0 %v439
    %466 = vmatpush1.msra.mxu0 %v438
    %467 = vmatprep.subr.mxu0 %v441
    %468 = vmatpush1.msra.mxu0 %v440
    %469 = vmatprep.subr.mxu0 %v443
    %470 = vmatpush1.msra.mxu0 %v442
    %471 = vmatprep.subr.mxu0 %v445
    %472 = vmatpush1.msra.mxu0 %v444
    %473 = vmatprep.subr.mxu0 %v447
    %474 = vmatpush1.msra.mxu0 %v446
    %475 = vmatprep.subr.mxu0 0.0
    %476 = vmatpush1.msra.mxu0 0.0
    %477 = vmatprep.subr.mxu0 0.0
    %478 = vmatpush1.msra.mxu0 0.0
    %479 = vmatprep.subr.mxu0 0.0
    %480 = vmatpush1.msra.mxu0 0.0
    %481 = vmatprep.subr.mxu0 0.0
    %482 = vmatpush1.msra.mxu0 0.0
    %483 = vmatprep.subr.mxu0 0.0
    %484 = vmatpush1.msra.mxu0 0.0
    %485 = vmatprep.subr.mxu0 0.0
    %486 = vmatpush1.msra.mxu0 0.0
    %487 = vmatprep.subr.mxu0 0.0
    %488 = vmatpush1.msra.mxu0 0.0
    %489 = vmatprep.subr.mxu0 0.0
    %490 = vmatpush1.msra.mxu0 0.0
    %491 = vmatprep.subr.mxu0 0.0
    %492 = vmatpush1.msra.mxu0 0.0
    %493 = vmatprep.subr.mxu0 0.0
    %494 = vmatpush1.msra.mxu0 0.0
    %495 = vmatprep.subr.mxu0 0.0
    %496 = vmatpush1.msra.mxu0 0.0
    %497 = vmatprep.subr.mxu0 0.0
    %498 = vmatpush1.msra.mxu0 0.0
    %499 = vmatprep.subr.mxu0 0.0
    %500 = vmatpush1.msra.mxu0 0.0
    %501 = vmatprep.subr.mxu0 0.0
    %502 = vmatpush1.msra.mxu0 0.0
    %503 = vmatprep.subr.mxu0 0.0
    %504 = vmatpush1.msra.mxu0 0.0
    %505 = vmatprep.subr.mxu0 0.0
    %506 = vmatpush1.msra.mxu0 0.0
    %507 = vmatprep.subr.mxu0 0.0
    %508 = vmatpush1.msra.mxu0 0.0
    %509 = vmatprep.subr.mxu0 0.0
    %510 = vmatpush1.msra.mxu0 0.0
    %511 = vmatprep.subr.mxu0 0.0
    %512 = vmatpush1.msra.mxu0 0.0
    %513 = vmatprep.subr.mxu0 0.0
    %514 = vmatpush1.msra.mxu0 0.0
    %515 = vmatprep.subr.mxu0 0.0
    %516 = vmatpush1.msra.mxu0 0.0
    %517 = vmatprep.subr.mxu0 0.0
    %518 = vmatpush1.msra.mxu0 0.0
    %519 = vmatprep.subr.mxu0 0.0
    %520 = vmatpush1.msra.mxu0 0.0
    %521 = vmatprep.subr.mxu0 0.0
    %522 = vmatpush1.msra.mxu0 0.0
    %523 = vmatprep.mubr.f32.mxu0 0.0
    %524 = vmatmul.mubr.f32.gmra.mrb[0].mxu0 %v457
    %v525 = vpop.f32.mrb[0].mxu0
    %v526 = vadd.f32 0.0, %v525
    %v527 = vpop.f32.mrb[0].mxu0
    %v528 = vadd.f32 0.0, %v527
    %529 = vdwg.mxu0
    %v530 = vadd.f32 %v453, %v526
    %v531 = vadd.f32 %v454, %v528
    %v532 = vxor.u32 %v530, 2147483648
    %v533 = vmul.f32 %v532, 1.442695
    %v534 = vpow.pop %v533
    %v535 = vadd.f32 %v534, 1.0
    %v536 = vrcp.pop %v535
    %v537 = vmul.f32 1.0, %v536
    %v538 = vtanh.pop %v531
    %v539 = vxor.u32 %v531, 2147483648
    %v540 = vmul.f32 %v539, 1.442695
    %v541 = vpow.pop %v540
    %v542 = vadd.f32 %v541, 1.0
    %v543 = vrcp.pop %v542
    %v544 = vmul.f32 1.0, %v543
    %v545 = vsel %vm86, %v538, %v544
    %546 = vrot.lane.b32.xlu0 %v448, 64
    %v547 = vpop.permute.xlu0 %546
    %v549 = vmul.f32 %v537, %v547
    %v550 = vmul.f32 %v537, %v545
    %552 = vrot.lane.b32.xlu0 %v550, 64
    %v553 = vpop.permute.xlu0 %552
    %v555 = vadd.f32 %v549, %v553
    %v556 = vtanh.pop %v555
    %v557 = vmul.f32 %v545, %v556
    %v558 = vld [vmem:[#allocation2 + $0x20] sm:$0xff]
    %v559 = vld [vmem:[#allocation2 + $0x28] sm:$0xff]
    %v560 = vld [vmem:[#allocation2 + $0xd0] sm:$0xff]
    %v561 = vld [vmem:[#allocation2 + $0xd8] sm:$0xff]
    %v562 = vadd.f32 %v558, %v560
    %v563 = vadd.f32 %v559, %v561
    %v565 = vsel %vm455, %v557, 0
    %567 = vmatprep.subr.mxu0 %v433
    %568 = vmatpush1.msra.mxu0 %v432
    %569 = vmatprep.subr.mxu0 %v435
    %570 = vmatpush1.msra.mxu0 %v434
    %571 = vmatprep.subr.mxu0 %v437
    %572 = vmatpush1.msra.mxu0 %v436
    %573 = vmatprep.subr.mxu0 %v439
    %574 = vmatpush1.msra.mxu0 %v438
    %575 = vmatprep.subr.mxu0 %v441
    %576 = vmatpush1.msra.mxu0 %v440
    %577 = vmatprep.subr.mxu0 %v443
    %578 = vmatpush1.msra.mxu0 %v442
    %579 = vmatprep.subr.mxu0 %v445
    %580 = vmatpush1.msra.mxu0 %v444
    %581 = vmatprep.subr.mxu0 %v447
    %582 = vmatpush1.msra.mxu0 %v446
    %583 = vmatprep.subr.mxu0 0.0
    %584 = vmatpush1.msra.mxu0 0.0
    %585 = vmatprep.subr.mxu0 0.0
    %586 = vmatpush1.msra.mxu0 0.0
    %587 = vmatprep.subr.mxu0 0.0
    %588 = vmatpush1.msra.mxu0 0.0
    %589 = vmatprep.subr.mxu0 0.0
    %590 = vmatpush1.msra.mxu0 0.0
    %591 = vmatprep.subr.mxu0 0.0
    %592 = vmatpush1.msra.mxu0 0.0
    %593 = vmatprep.subr.mxu0 0.0
    %594 = vmatpush1.msra.mxu0 0.0
    %595 = vmatprep.subr.mxu0 0.0
    %596 = vmatpush1.msra.mxu0 0.0
    %597 = vmatprep.subr.mxu0 0.0
    %598 = vmatpush1.msra.mxu0 0.0
    %599 = vmatprep.subr.mxu0 0.0
    %600 = vmatpush1.msra.mxu0 0.0
    %601 = vmatprep.subr.mxu0 0.0
    %602 = vmatpush1.msra.mxu0 0.0
    %603 = vmatprep.subr.mxu0 0.0
    %604 = vmatpush1.msra.mxu0 0.0
    %605 = vmatprep.subr.mxu0 0.0
    %606 = vmatpush1.msra.mxu0 0.0
    %607 = vmatprep.subr.mxu0 0.0
    %608 = vmatpush1.msra.mxu0 0.0
    %609 = vmatprep.subr.mxu0 0.0
    %610 = vmatpush1.msra.mxu0 0.0
    %611 = vmatprep.subr.mxu0 0.0
    %612 = vmatpush1.msra.mxu0 0.0
    %613 = vmatprep.subr.mxu0 0.0
    %614 = vmatpush1.msra.mxu0 0.0
    %615 = vmatprep.subr.mxu0 0.0
    %616 = vmatpush1.msra.mxu0 0.0
    %617 = vmatprep.subr.mxu0 0.0
    %618 = vmatpush1.msra.mxu0 0.0
    %619 = vmatprep.subr.mxu0 0.0
    %620 = vmatpush1.msra.mxu0 0.0
    %621 = vmatprep.subr.mxu0 0.0
    %622 = vmatpush1.msra.mxu0 0.0
    %623 = vmatprep.subr.mxu0 0.0
    %624 = vmatpush1.msra.mxu0 0.0
    %625 = vmatprep.subr.mxu0 0.0
    %626 = vmatpush1.msra.mxu0 0.0
    %627 = vmatprep.subr.mxu0 0.0
    %628 = vmatpush1.msra.mxu0 0.0
    %629 = vmatprep.subr.mxu0 0.0
    %630 = vmatpush1.msra.mxu0 0.0
    %631 = vmatprep.mubr.f32.mxu0 0.0
    %632 = vmatmul.mubr.f32.gmra.mrb[0].mxu0 %v565
    %v633 = vpop.f32.mrb[0].mxu0
    %v634 = vadd.f32 0.0, %v633
    %v635 = vpop.f32.mrb[0].mxu0
    %v636 = vadd.f32 0.0, %v635
    %637 = vdwg.mxu0
    %v638 = vadd.f32 %v562, %v634
    %v639 = vadd.f32 %v563, %v636
    %v640 = vxor.u32 %v638, 2147483648
    %v641 = vmul.f32 %v640, 1.442695
    %v642 = vpow.pop %v641
    %v643 = vadd.f32 %v642, 1.0
    %v644 = vrcp.pop %v643
    %v645 = vmul.f32 1.0, %v644
    %v646 = vtanh.pop %v639
    %v647 = vxor.u32 %v639, 2147483648
    %v648 = vmul.f32 %v647, 1.442695
    %v649 = vpow.pop %v648
    %v650 = vadd.f32 %v649, 1.0
    %v651 = vrcp.pop %v650
    %v652 = vmul.f32 1.0, %v651
    %v653 = vsel %vm86, %v646, %v652
    %v654 = vmul.f32 %v645, %v555
    %v655 = vmul.f32 %v645, %v653
    %657 = vrot.lane.b32.xlu0 %v655, 64
    %v658 = vpop.permute.xlu0 %657
    %v660 = vadd.f32 %v654, %v658
    %v661 = vtanh.pop %v660
    %v662 = vmul.f32 %v653, %v661
    %v663 = vld [vmem:[#allocation2 + $0x40] sm:$0xff]
    %v664 = vld [vmem:[#allocation2 + $0x48] sm:$0xff]
    %v665 = vld [vmem:[#allocation2 + $0xb0] sm:$0xff]
    %v666 = vld [vmem:[#allocation2 + $0xb8] sm:$0xff]
    %v667 = vadd.f32 %v663, %v665
    %v668 = vadd.f32 %v664, %v666
    %v670 = vsel %vm455, %v662, 0
    %672 = vmatprep.subr.mxu0 %v433
    %673 = vmatpush1.msra.mxu0 %v432
    %674 = vmatprep.subr.mxu0 %v435
    %675 = vmatpush1.msra.mxu0 %v434
    %676 = vmatprep.subr.mxu0 %v437
    %677 = vmatpush1.msra.mxu0 %v436
    %678 = vmatprep.subr.mxu0 %v439
    %679 = vmatpush1.msra.mxu0 %v438
    %680 = vmatprep.subr.mxu0 %v441
    %681 = vmatpush1.msra.mxu0 %v440
    %682 = vmatprep.subr.mxu0 %v443
    %683 = vmatpush1.msra.mxu0 %v442
    %684 = vmatprep.subr.mxu0 %v445
    %685 = vmatpush1.msra.mxu0 %v444
    %686 = vmatprep.subr.mxu0 %v447
    %687 = vmatpush1.msra.mxu0 %v446
    %688 = vmatprep.subr.mxu0 0.0
    %689 = vmatpush1.msra.mxu0 0.0
    %690 = vmatprep.subr.mxu0 0.0
    %691 = vmatpush1.msra.mxu0 0.0
    %692 = vmatprep.subr.mxu0 0.0
    %693 = vmatpush1.msra.mxu0 0.0
    %694 = vmatprep.subr.mxu0 0.0
    %695 = vmatpush1.msra.mxu0 0.0
    %696 = vmatprep.subr.mxu0 0.0
    %697 = vmatpush1.msra.mxu0 0.0
    %698 = vmatprep.subr.mxu0 0.0
    %699 = vmatpush1.msra.mxu0 0.0
    %700 = vmatprep.subr.mxu0 0.0
    %701 = vmatpush1.msra.mxu0 0.0
    %702 = vmatprep.subr.mxu0 0.0
    %703 = vmatpush1.msra.mxu0 0.0
    %704 = vmatprep.subr.mxu0 0.0
    %705 = vmatpush1.msra.mxu0 0.0
    %706 = vmatprep.subr.mxu0 0.0
    %707 = vmatpush1.msra.mxu0 0.0
    %708 = vmatprep.subr.mxu0 0.0
    %709 = vmatpush1.msra.mxu0 0.0
    %710 = vmatprep.subr.mxu0 0.0
    %711 = vmatpush1.msra.mxu0 0.0
    %712 = vmatprep.subr.mxu0 0.0
    %713 = vmatpush1.msra.mxu0 0.0
    %714 = vmatprep.subr.mxu0 0.0
    %715 = vmatpush1.msra.mxu0 0.0
    %716 = vmatprep.subr.mxu0 0.0
    %717 = vmatpush1.msra.mxu0 0.0
    %718 = vmatprep.subr.mxu0 0.0
    %719 = vmatpush1.msra.mxu0 0.0
    %720 = vmatprep.subr.mxu0 0.0
    %721 = vmatpush1.msra.mxu0 0.0
    %722 = vmatprep.subr.mxu0 0.0
    %723 = vmatpush1.msra.mxu0 0.0
    %724 = vmatprep.subr.mxu0 0.0
    %725 = vmatpush1.msra.mxu0 0.0
    %726 = vmatprep.subr.mxu0 0.0
    %727 = vmatpush1.msra.mxu0 0.0
    %728 = vmatprep.subr.mxu0 0.0
    %729 = vmatpush1.msra.mxu0 0.0
    %730 = vmatprep.subr.mxu0 0.0
    %731 = vmatpush1.msra.mxu0 0.0
    %732 = vmatprep.subr.mxu0 0.0
    %733 = vmatpush1.msra.mxu0 0.0
    %734 = vmatprep.subr.mxu0 0.0
    %735 = vmatpush1.msra.mxu0 0.0
    %736 = vmatprep.mubr.f32.mxu0 0.0
    %737 = vmatmul.mubr.f32.gmra.mrb[0].mxu0 %v670
    %v738 = vpop.f32.mrb[0].mxu0
    %v739 = vadd.f32 0.0, %v738
    %v740 = vpop.f32.mrb[0].mxu0
    %v741 = vadd.f32 0.0, %v740
    %742 = vdwg.mxu0
    %v743 = vadd.f32 %v667, %v739
    %v744 = vadd.f32 %v668, %v741
    %v745 = vxor.u32 %v743, 2147483648
    %v746 = vmul.f32 %v745, 1.442695
    %v747 = vpow.pop %v746
    %v748 = vadd.f32 %v747, 1.0
    %v749 = vrcp.pop %v748
    %v750 = vmul.f32 1.0, %v749
    %v751 = vtanh.pop %v744
    %v752 = vxor.u32 %v744, 2147483648
    %v753 = vmul.f32 %v752, 1.442695
    %v754 = vpow.pop %v753
    %v755 = vadd.f32 %v754, 1.0
    %v756 = vrcp.pop %v755
    %v757 = vmul.f32 1.0, %v756
    %v758 = vsel %vm86, %v751, %v757
    %v759 = vmul.f32 %v750, %v660
    %v760 = vmul.f32 %v750, %v758
    %762 = vrot.lane.b32.xlu0 %v760, 64
    %v763 = vpop.permute.xlu0 %762
    %v765 = vadd.f32 %v759, %v763
    %v766 = vtanh.pop %v765
    %v767 = vmul.f32 %v758, %v766
    %v768 = vld [vmem:[#allocation2 + $0x60] sm:$0xff]
    %v769 = vld [vmem:[#allocation2 + $0x68] sm:$0xff]
    %v770 = vld [vmem:[#allocation2 + $0x90] sm:$0xff]
    %v771 = vld [vmem:[#allocation2 + $0x98] sm:$0xff]
    %v772 = vadd.f32 %v768, %v770
    %v773 = vadd.f32 %v769, %v771
    %v775 = vsel %vm455, %v767, 0
    %777 = vmatprep.subr.mxu0 %v433
    %778 = vmatpush1.msra.mxu0 %v432
    %779 = vmatprep.subr.mxu0 %v435
    %780 = vmatpush1.msra.mxu0 %v434
    %781 = vmatprep.subr.mxu0 %v437
    %782 = vmatpush1.msra.mxu0 %v436
    %783 = vmatprep.subr.mxu0 %v439
    %784 = vmatpush1.msra.mxu0 %v438
    %785 = vmatprep.subr.mxu0 %v441
    %786 = vmatpush1.msra.mxu0 %v440
    %787 = vmatprep.subr.mxu0 %v443
    %788 = vmatpush1.msra.mxu0 %v442
    %789 = vmatprep.subr.mxu0 %v445
    %790 = vmatpush1.msra.mxu0 %v444
    %791 = vmatprep.subr.mxu0 %v447
    %792 = vmatpush1.msra.mxu0 %v446
    %793 = vmatprep.subr.mxu0 0.0
    %794 = vmatpush1.msra.mxu0 0.0
    %795 = vmatprep.subr.mxu0 0.0
    %796 = vmatpush1.msra.mxu0 0.0
    %797 = vmatprep.subr.mxu0 0.0
    %798 = vmatpush1.msra.mxu0 0.0
    %799 = vmatprep.subr.mxu0 0.0
    %800 = vmatpush1.msra.mxu0 0.0
    %801 = vmatprep.subr.mxu0 0.0
    %802 = vmatpush1.msra.mxu0 0.0
    %803 = vmatprep.subr.mxu0 0.0
    %804 = vmatpush1.msra.mxu0 0.0
    %805 = vmatprep.subr.mxu0 0.0
    %806 = vmatpush1.msra.mxu0 0.0
    %807 = vmatprep.subr.mxu0 0.0
    %808 = vmatpush1.msra.mxu0 0.0
    %809 = vmatprep.subr.mxu0 0.0
    %810 = vmatpush1.msra.mxu0 0.0
    %811 = vmatprep.subr.mxu0 0.0
    %812 = vmatpush1.msra.mxu0 0.0
    %813 = vmatprep.subr.mxu0 0.0
    %814 = vmatpush1.msra.mxu0 0.0
    %815 = vmatprep.subr.mxu0 0.0
    %816 = vmatpush1.msra.mxu0 0.0
    %817 = vmatprep.subr.mxu0 0.0
    %818 = vmatpush1.msra.mxu0 0.0
    %819 = vmatprep.subr.mxu0 0.0
    %820 = vmatpush1.msra.mxu0 0.0
    %821 = vmatprep.subr.mxu0 0.0
    %822 = vmatpush1.msra.mxu0 0.0
    %823 = vmatprep.subr.mxu0 0.0
    %824 = vmatpush1.msra.mxu0 0.0
    %825 = vmatprep.subr.mxu0 0.0
    %826 = vmatpush1.msra.mxu0 0.0
    %827 = vmatprep.subr.mxu0 0.0
    %828 = vmatpush1.msra.mxu0 0.0
    %829 = vmatprep.subr.mxu0 0.0
    %830 = vmatpush1.msra.mxu0 0.0
    %831 = vmatprep.subr.mxu0 0.0
    %832 = vmatpush1.msra.mxu0 0.0
    %833 = vmatprep.subr.mxu0 0.0
    %834 = vmatpush1.msra.mxu0 0.0
    %835 = vmatprep.subr.mxu0 0.0
    %836 = vmatpush1.msra.mxu0 0.0
    %837 = vmatprep.subr.mxu0 0.0
    %838 = vmatpush1.msra.mxu0 0.0
    %839 = vmatprep.subr.mxu0 0.0
    %840 = vmatpush1.msra.mxu0 0.0
    %841 = vmatprep.mubr.f32.mxu0 0.0
    %842 = vmatmul.mubr.f32.gmra.mrb[0].mxu0 %v775
    %v843 = vpop.f32.mrb[0].mxu0
    %v844 = vadd.f32 0.0, %v843
    %v845 = vpop.f32.mrb[0].mxu0
    %v846 = vadd.f32 0.0, %v845
    %847 = vdwg.mxu0
    %v848 = vadd.f32 %v772, %v844
    %v849 = vadd.f32 %v773, %v846
    %v850 = vxor.u32 %v848, 2147483648
    %v851 = vmul.f32 %v850, 1.442695
    %v852 = vpow.pop %v851
    %v853 = vadd.f32 %v852, 1.0
    %v854 = vrcp.pop %v853
    %v855 = vmul.f32 1.0, %v854
    %v856 = vtanh.pop %v849
    %v857 = vxor.u32 %v849, 2147483648
    %v858 = vmul.f32 %v857, 1.442695
    %v859 = vpow.pop %v858
    %v860 = vadd.f32 %v859, 1.0
    %v861 = vrcp.pop %v860
    %v862 = vmul.f32 1.0, %v861
    %v863 = vsel %vm86, %v856, %v862
    %v864 = vmul.f32 %v855, %v765
    %v865 = vmul.f32 %v855, %v863
    %867 = vrot.lane.b32.xlu0 %v865, 64
    %v868 = vpop.permute.xlu0 %867
    %v870 = vadd.f32 %v864, %v868
    %v871 = vtanh.pop %v870
    %v872 = vmul.f32 %v863, %v871
    %v873 = vld [vmem:[#allocation2 + $0x80] sm:$0xff]
    %v874 = vld [vmem:[#allocation2 + $0x88] sm:$0xff]
    %v875 = vld [vmem:[#allocation2 + $0x70] sm:$0xff]
    %v876 = vld [vmem:[#allocation2 + $0x78] sm:$0xff]
    %v877 = vadd.f32 %v873, %v875
    %v878 = vadd.f32 %v874, %v876
    %v880 = vsel %vm455, %v872, 0
    %882 = vmatprep.subr.mxu0 %v433
    %883 = vmatpush1.msra.mxu0 %v432
    %884 = vmatprep.subr.mxu0 %v435
    %885 = vmatpush1.msra.mxu0 %v434
    %886 = vmatprep.subr.mxu0 %v437
    %887 = vmatpush1.msra.mxu0 %v436
    %888 = vmatprep.subr.mxu0 %v439
    %889 = vmatpush1.msra.mxu0 %v438
    %890 = vmatprep.subr.mxu0 %v441
    %891 = vmatpush1.msra.mxu0 %v440
    %892 = vmatprep.subr.mxu0 %v443
    %893 = vmatpush1.msra.mxu0 %v442
    %894 = vmatprep.subr.mxu0 %v445
    %895 = vmatpush1.msra.mxu0 %v444
    %896 = vmatprep.subr.mxu0 %v447
    %897 = vmatpush1.msra.mxu0 %v446
    %898 = vmatprep.subr.mxu0 0.0
    %899 = vmatpush1.msra.mxu0 0.0
    %900 = vmatprep.subr.mxu0 0.0
    %901 = vmatpush1.msra.mxu0 0.0
    %902 = vmatprep.subr.mxu0 0.0
    %903 = vmatpush1.msra.mxu0 0.0
    %904 = vmatprep.subr.mxu0 0.0
    %905 = vmatpush1.msra.mxu0 0.0
    %906 = vmatprep.subr.mxu0 0.0
    %907 = vmatpush1.msra.mxu0 0.0
    %908 = vmatprep.subr.mxu0 0.0
    %909 = vmatpush1.msra.mxu0 0.0
    %910 = vmatprep.subr.mxu0 0.0
    %911 = vmatpush1.msra.mxu0 0.0
    %912 = vmatprep.subr.mxu0 0.0
    %913 = vmatpush1.msra.mxu0 0.0
    %914 = vmatprep.subr.mxu0 0.0
    %915 = vmatpush1.msra.mxu0 0.0
    %916 = vmatprep.subr.mxu0 0.0
    %917 = vmatpush1.msra.mxu0 0.0
    %918 = vmatprep.subr.mxu0 0.0
    %919 = vmatpush1.msra.mxu0 0.0
    %920 = vmatprep.subr.mxu0 0.0
    %921 = vmatpush1.msra.mxu0 0.0
    %922 = vmatprep.subr.mxu0 0.0
    %923 = vmatpush1.msra.mxu0 0.0
    %924 = vmatprep.subr.mxu0 0.0
    %925 = vmatpush1.msra.mxu0 0.0
    %926 = vmatprep.subr.mxu0 0.0
    %927 = vmatpush1.msra.mxu0 0.0
    %928 = vmatprep.subr.mxu0 0.0
    %929 = vmatpush1.msra.mxu0 0.0
    %930 = vmatprep.subr.mxu0 0.0
    %931 = vmatpush1.msra.mxu0 0.0
    %932 = vmatprep.subr.mxu0 0.0
    %933 = vmatpush1.msra.mxu0 0.0
    %934 = vmatprep.subr.mxu0 0.0
    %935 = vmatpush1.msra.mxu0 0.0
    %936 = vmatprep.subr.mxu0 0.0
    %937 = vmatpush1.msra.mxu0 0.0
    %938 = vmatprep.subr.mxu0 0.0
    %939 = vmatpush1.msra.mxu0 0.0
    %940 = vmatprep.subr.mxu0 0.0
    %941 = vmatpush1.msra.mxu0 0.0
    %942 = vmatprep.subr.mxu0 0.0
    %943 = vmatpush1.msra.mxu0 0.0
    %944 = vmatprep.subr.mxu0 0.0
    %945 = vmatpush1.msra.mxu0 0.0
    %946 = vmatprep.mubr.f32.mxu0 0.0
    %947 = vmatmul.mubr.f32.gmra.mrb[0].mxu0 %v880
    %v948 = vpop.f32.mrb[0].mxu0
    %v949 = vadd.f32 0.0, %v948
    %v950 = vpop.f32.mrb[0].mxu0
    %v951 = vadd.f32 0.0, %v950
    %952 = vdwg.mxu0
    %v953 = vadd.f32 %v877, %v949
    %v954 = vadd.f32 %v878, %v951
    %v955 = vxor.u32 %v953, 2147483648
    %v956 = vmul.f32 %v955, 1.442695
    %v957 = vpow.pop %v956
    %v958 = vadd.f32 %v957, 1.0
    %v959 = vrcp.pop %v958
    %v960 = vmul.f32 1.0, %v959
    %v961 = vtanh.pop %v954
    %v962 = vxor.u32 %v954, 2147483648
    %v963 = vmul.f32 %v962, 1.442695
    %v964 = vpow.pop %v963
    %v965 = vadd.f32 %v964, 1.0
    %v966 = vrcp.pop %v965
    %v967 = vmul.f32 1.0, %v966
    %v968 = vsel %vm86, %v961, %v967
    %v969 = vmul.f32 %v960, %v870
    %v970 = vmul.f32 %v960, %v968
    %972 = vrot.lane.b32.xlu0 %v970, 64
    %v973 = vpop.permute.xlu0 %972
    %v975 = vadd.f32 %v969, %v973
    %v976 = vtanh.pop %v975
    %v977 = vmul.f32 %v968, %v976
    %v978 = vld [vmem:[#allocation2 + $0xa0] sm:$0xff]
    %v979 = vld [vmem:[#allocation2 + $0xa8] sm:$0xff]
    %v980 = vld [vmem:[#allocation2 + $0x50] sm:$0xff]
    %v981 = vld [vmem:[#allocation2 + $0x58] sm:$0xff]
    %v982 = vadd.f32 %v978, %v980
    %v983 = vadd.f32 %v979, %v981
    %v985 = vsel %vm455, %v977, 0
    %987 = vmatprep.subr.mxu0 %v433
    %988 = vmatpush1.msra.mxu0 %v432
    %989 = vmatprep.subr.mxu0 %v435
    %990 = vmatpush1.msra.mxu0 %v434
    %991 = vmatprep.subr.mxu0 %v437
    %992 = vmatpush1.msra.mxu0 %v436
    %993 = vmatprep.subr.mxu0 %v439
    %994 = vmatpush1.msra.mxu0 %v438
    %995 = vmatprep.subr.mxu0 %v441
    %996 = vmatpush1.msra.mxu0 %v440
    %997 = vmatprep.subr.mxu0 %v443
    %998 = vmatpush1.msra.mxu0 %v442
    %999 = vmatprep.subr.mxu0 %v445
    %1000 = vmatpush1.msra.mxu0 %v444
    %1001 = vmatprep.subr.mxu0 %v447
    %1002 = vmatpush1.msra.mxu0 %v446
    %1003 = vmatprep.subr.mxu0 0.0
    %1004 = vmatpush1.msra.mxu0 0.0
    %1005 = vmatprep.subr.mxu0 0.0
    %1006 = vmatpush1.msra.mxu0 0.0
    %1007 = vmatprep.subr.mxu0 0.0
    %1008 = vmatpush1.msra.mxu0 0.0
    %1009 = vmatprep.subr.mxu0 0.0
    %1010 = vmatpush1.msra.mxu0 0.0
    %1011 = vmatprep.subr.mxu0 0.0
    %1012 = vmatpush1.msra.mxu0 0.0
    %1013 = vmatprep.subr.mxu0 0.0
    %1014 = vmatpush1.msra.mxu0 0.0
    %1015 = vmatprep.subr.mxu0 0.0
    %1016 = vmatpush1.msra.mxu0 0.0
    %1017 = vmatprep.subr.mxu0 0.0
    %1018 = vmatpush1.msra.mxu0 0.0
    %1019 = vmatprep.subr.mxu0 0.0
    %1020 = vmatpush1.msra.mxu0 0.0
    %1021 = vmatprep.subr.mxu0 0.0
    %1022 = vmatpush1.msra.mxu0 0.0
    %1023 = vmatprep.subr.mxu0 0.0
    %1024 = vmatpush1.msra.mxu0 0.0
    %1025 = vmatprep.subr.mxu0 0.0
    %1026 = vmatpush1.msra.mxu0 0.0
    %1027 = vmatprep.subr.mxu0 0.0
    %1028 = vmatpush1.msra.mxu0 0.0
    %1029 = vmatprep.subr.mxu0 0.0
    %1030 = vmatpush1.msra.mxu0 0.0
    %1031 = vmatprep.subr.mxu0 0.0
    %1032 = vmatpush1.msra.mxu0 0.0
    %1033 = vmatprep.subr.mxu0 0.0
    %1034 = vmatpush1.msra.mxu0 0.0
    %1035 = vmatprep.subr.mxu0 0.0
    %1036 = vmatpush1.msra.mxu0 0.0
    %1037 = vmatprep.subr.mxu0 0.0
    %1038 = vmatpush1.msra.mxu0 0.0
    %1039 = vmatprep.subr.mxu0 0.0
    %1040 = vmatpush1.msra.mxu0 0.0
    %1041 = vmatprep.subr.mxu0 0.0
    %1042 = vmatpush1.msra.mxu0 0.0
    %1043 = vmatprep.subr.mxu0 0.0
    %1044 = vmatpush1.msra.mxu0 0.0
    %1045 = vmatprep.subr.mxu0 0.0
    %1046 = vmatpush1.msra.mxu0 0.0
    %1047 = vmatprep.subr.mxu0 0.0
    %1048 = vmatpush1.msra.mxu0 0.0
    %1049 = vmatprep.subr.mxu0 0.0
    %1050 = vmatpush1.msra.mxu0 0.0
    %1051 = vmatprep.mubr.f32.mxu0 0.0
    %1052 = vmatmul.mubr.f32.gmra.mrb[0].mxu0 %v985
    %v1053 = vpop.f32.mrb[0].mxu0
    %v1054 = vadd.f32 0.0, %v1053
    %v1055 = vpop.f32.mrb[0].mxu0
    %v1056 = vadd.f32 0.0, %v1055
    %1057 = vdwg.mxu0
    %v1058 = vadd.f32 %v982, %v1054
    %v1059 = vadd.f32 %v983, %v1056
    %v1060 = vxor.u32 %v1058, 2147483648
    %v1061 = vmul.f32 %v1060, 1.442695
    %v1062 = vpow.pop %v1061
    %v1063 = vadd.f32 %v1062, 1.0
    %v1064 = vrcp.pop %v1063
    %v1065 = vmul.f32 1.0, %v1064
    %v1066 = vtanh.pop %v1059
    %v1067 = vxor.u32 %v1059, 2147483648
    %v1068 = vmul.f32 %v1067, 1.442695
    %v1069 = vpow.pop %v1068
    %v1070 = vadd.f32 %v1069, 1.0
    %v1071 = vrcp.pop %v1070
    %v1072 = vmul.f32 1.0, %v1071
    %v1073 = vsel %vm86, %v1066, %v1072
    %v1074 = vmul.f32 %v1065, %v975
    %v1075 = vmul.f32 %v1065, %v1073
    %1077 = vrot.lane.b32.xlu0 %v1075, 64
    %v1078 = vpop.permute.xlu0 %1077
    %v1080 = vadd.f32 %v1074, %v1078
    %v1081 = vtanh.pop %v1080
    %v1082 = vmul.f32 %v1073, %v1081
    %v1083 = vld [vmem:[#allocation2 + $0xc0] sm:$0xff]
    %v1084 = vld [vmem:[#allocation2 + $0xc8] sm:$0xff]
    %v1085 = vld [vmem:[#allocation2 + $0x30] sm:$0xff]
    %v1086 = vld [vmem:[#allocation2 + $0x38] sm:$0xff]
    %v1087 = vadd.f32 %v1083, %v1085
    %v1088 = vadd.f32 %v1084, %v1086
    %v1090 = vsel %vm455, %v1082, 0
    %1092 = vmatprep.subr.mxu0 %v433
    %1093 = vmatpush1.msra.mxu0 %v432
    %1094 = vmatprep.subr.mxu0 %v435
    %1095 = vmatpush1.msra.mxu0 %v434
    %1096 = vmatprep.subr.mxu0 %v437
    %1097 = vmatpush1.msra.mxu0 %v436
    %1098 = vmatprep.subr.mxu0 %v439
    %1099 = vmatpush1.msra.mxu0 %v438
    %1100 = vmatprep.subr.mxu0 %v441
    %1101 = vmatpush1.msra.mxu0 %v440
    %1102 = vmatprep.subr.mxu0 %v443
    %1103 = vmatpush1.msra.mxu0 %v442
    %1104 = vmatprep.subr.mxu0 %v445
    %1105 = vmatpush1.msra.mxu0 %v444
    %1106 = vmatprep.subr.mxu0 %v447
    %1107 = vmatpush1.msra.mxu0 %v446
    %1108 = vmatprep.subr.mxu0 0.0
    %1109 = vmatpush1.msra.mxu0 0.0
    %1110 = vmatprep.subr.mxu0 0.0
    %1111 = vmatpush1.msra.mxu0 0.0
    %1112 = vmatprep.subr.mxu0 0.0
    %1113 = vmatpush1.msra.mxu0 0.0
    %1114 = vmatprep.subr.mxu0 0.0
    %1115 = vmatpush1.msra.mxu0 0.0
    %1116 = vmatprep.subr.mxu0 0.0
    %1117 = vmatpush1.msra.mxu0 0.0
    %1118 = vmatprep.subr.mxu0 0.0
    %1119 = vmatpush1.msra.mxu0 0.0
    %1120 = vmatprep.subr.mxu0 0.0
    %1121 = vmatpush1.msra.mxu0 0.0
    %1122 = vmatprep.subr.mxu0 0.0
    %1123 = vmatpush1.msra.mxu0 0.0
    %1124 = vmatprep.subr.mxu0 0.0
    %1125 = vmatpush1.msra.mxu0 0.0
    %1126 = vmatprep.subr.mxu0 0.0
    %1127 = vmatpush1.msra.mxu0 0.0
    %1128 = vmatprep.subr.mxu0 0.0
    %1129 = vmatpush1.msra.mxu0 0.0
    %1130 = vmatprep.subr.mxu0 0.0
    %1131 = vmatpush1.msra.mxu0 0.0
    %1132 = vmatprep.subr.mxu0 0.0
    %1133 = vmatpush1.msra.mxu0 0.0
    %1134 = vmatprep.subr.mxu0 0.0
    %1135 = vmatpush1.msra.mxu0 0.0
    %1136 = vmatprep.subr.mxu0 0.0
    %1137 = vmatpush1.msra.mxu0 0.0
    %1138 = vmatprep.subr.mxu0 0.0
    %1139 = vmatpush1.msra.mxu0 0.0
    %1140 = vmatprep.subr.mxu0 0.0
    %1141 = vmatpush1.msra.mxu0 0.0
    %1142 = vmatprep.subr.mxu0 0.0
    %1143 = vmatpush1.msra.mxu0 0.0
    %1144 = vmatprep.subr.mxu0 0.0
    %1145 = vmatpush1.msra.mxu0 0.0
    %1146 = vmatprep.subr.mxu0 0.0
    %1147 = vmatpush1.msra.mxu0 0.0
    %1148 = vmatprep.subr.mxu0 0.0
    %1149 = vmatpush1.msra.mxu0 0.0
    %1150 = vmatprep.subr.mxu0 0.0
    %1151 = vmatpush1.msra.mxu0 0.0
    %1152 = vmatprep.subr.mxu0 0.0
    %1153 = vmatpush1.msra.mxu0 0.0
    %1154 = vmatprep.subr.mxu0 0.0
    %1155 = vmatpush1.msra.mxu0 0.0
    %1156 = vmatprep.mubr.f32.mxu0 0.0
    %1157 = vmatmul.mubr.f32.gmra.mrb[0].mxu0 %v1090
    %v1158 = vpop.f32.mrb[0].mxu0
    %v1159 = vadd.f32 0.0, %v1158
    %v1160 = vpop.f32.mrb[0].mxu0
    %v1161 = vadd.f32 0.0, %v1160
    %1162 = vdwg.mxu0
    %v1163 = vadd.f32 %v1087, %v1159
    %v1164 = vadd.f32 %v1088, %v1161
    %v1165 = vxor.u32 %v1163, 2147483648
    %v1166 = vmul.f32 %v1165, 1.442695
    %v1167 = vpow.pop %v1166
    %v1168 = vadd.f32 %v1167, 1.0
    %v1169 = vrcp.pop %v1168
    %v1170 = vmul.f32 1.0, %v1169
    %v1171 = vtanh.pop %v1164
    %v1172 = vxor.u32 %v1164, 2147483648
    %v1173 = vmul.f32 %v1172, 1.442695
    %v1174 = vpow.pop %v1173
    %v1175 = vadd.f32 %v1174, 1.0
    %v1176 = vrcp.pop %v1175
    %v1177 = vmul.f32 1.0, %v1176
    %v1178 = vsel %vm86, %v1171, %v1177
    %v1179 = vmul.f32 %v1170, %v1080
    %v1180 = vmul.f32 %v1170, %v1178
    %1182 = vrot.lane.b32.xlu0 %v1180, 64
    %v1183 = vpop.permute.xlu0 %1182
    %v1185 = vadd.f32 %v1179, %v1183
    %v1186 = vtanh.pop %v1185
    %v1187 = vmul.f32 %v1178, %v1186
    %v1188 = vld [vmem:[#allocation2 + $0xe0] sm:$0xff]
    %v1189 = vld [vmem:[#allocation2 + $0xe8] sm:$0xff]
    %v1190 = vld [vmem:[#allocation2 + $0x10] sm:$0xff]
    %v1191 = vld [vmem:[#allocation2 + $0x18] sm:$0xff]
    %v1192 = vadd.f32 %v1188, %v1190
    %v1193 = vadd.f32 %v1189, %v1191
    %v1195 = vsel %vm455, %v1187, 0
    %1197 = vmatprep.subr.mxu0 %v433
    %1198 = vmatpush1.msra.mxu0 %v432
    %1199 = vmatprep.subr.mxu0 %v435
    %1200 = vmatpush1.msra.mxu0 %v434
    %1201 = vmatprep.subr.mxu0 %v437
    %1202 = vmatpush1.msra.mxu0 %v436
    %1203 = vmatprep.subr.mxu0 %v439
    %1204 = vmatpush1.msra.mxu0 %v438
    %1205 = vmatprep.subr.mxu0 %v441
    %1206 = vmatpush1.msra.mxu0 %v440
    %1207 = vmatprep.subr.mxu0 %v443
    %1208 = vmatpush1.msra.mxu0 %v442
    %1209 = vmatprep.subr.mxu0 %v445
    %1210 = vmatpush1.msra.mxu0 %v444
    %1211 = vmatprep.subr.mxu0 %v447
    %1212 = vmatpush1.msra.mxu0 %v446
    %1213 = vmatprep.subr.mxu0 0.0
    %1214 = vmatpush1.msra.mxu0 0.0
    %1215 = vmatprep.subr.mxu0 0.0
    %1216 = vmatpush1.msra.mxu0 0.0
    %1217 = vmatprep.subr.mxu0 0.0
    %1218 = vmatpush1.msra.mxu0 0.0
    %1219 = vmatprep.subr.mxu0 0.0
    %1220 = vmatpush1.msra.mxu0 0.0
    %1221 = vmatprep.subr.mxu0 0.0
    %1222 = vmatpush1.msra.mxu0 0.0
    %1223 = vmatprep.subr.mxu0 0.0
    %1224 = vmatpush1.msra.mxu0 0.0
    %1225 = vmatprep.subr.mxu0 0.0
    %1226 = vmatpush1.msra.mxu0 0.0
    %1227 = vmatprep.subr.mxu0 0.0
    %1228 = vmatpush1.msra.mxu0 0.0
    %1229 = vmatprep.subr.mxu0 0.0
    %1230 = vmatpush1.msra.mxu0 0.0
    %1231 = vmatprep.subr.mxu0 0.0
    %1232 = vmatpush1.msra.mxu0 0.0
    %1233 = vmatprep.subr.mxu0 0.0
    %1234 = vmatpush1.msra.mxu0 0.0
    %1235 = vmatprep.subr.mxu0 0.0
    %1236 = vmatpush1.msra.mxu0 0.0
    %1237 = vmatprep.subr.mxu0 0.0
    %1238 = vmatpush1.msra.mxu0 0.0
    %1239 = vmatprep.subr.mxu0 0.0
    %1240 = vmatpush1.msra.mxu0 0.0
    %1241 = vmatprep.subr.mxu0 0.0
    %1242 = vmatpush1.msra.mxu0 0.0
    %1243 = vmatprep.subr.mxu0 0.0
    %1244 = vmatpush1.msra.mxu0 0.0
    %1245 = vmatprep.subr.mxu0 0.0
    %1246 = vmatpush1.msra.mxu0 0.0
    %1247 = vmatprep.subr.mxu0 0.0
    %1248 = vmatpush1.msra.mxu0 0.0
    %1249 = vmatprep.subr.mxu0 0.0
    %1250 = vmatpush1.msra.mxu0 0.0
    %1251 = vmatprep.subr.mxu0 0.0
    %1252 = vmatpush1.msra.mxu0 0.0
    %1253 = vmatprep.subr.mxu0 0.0
    %1254 = vmatpush1.msra.mxu0 0.0
    %1255 = vmatprep.subr.mxu0 0.0
    %1256 = vmatpush1.msra.mxu0 0.0
    %1257 = vmatprep.subr.mxu0 0.0
    %1258 = vmatpush1.msra.mxu0 0.0
    %1259 = vmatprep.subr.mxu0 0.0
    %1260 = vmatpush1.msra.mxu0 0.0
    %1261 = vmatprep.mubr.f32.mxu0 0.0
    %1262 = vmatmul.mubr.f32.gmra.mrb[0].mxu0 %v1195
    %v1263 = vpop.f32.mrb[0].mxu0
    %v1264 = vadd.f32 0.0, %v1263
    %v1265 = vpop.f32.mrb[0].mxu0
    %v1266 = vadd.f32 0.0, %v1265
    %1267 = vdwg.mxu0
    %v1268 = vadd.f32 %v1192, %v1264
    %v1269 = vadd.f32 %v1193, %v1266
    %v1270 = vxor.u32 %v1268, 2147483648
    %v1271 = vmul.f32 %v1270, 1.442695
    %v1272 = vpow.pop %v1271
    %v1273 = vadd.f32 %v1272, 1.0
    %v1274 = vrcp.pop %v1273
    %v1275 = vmul.f32 1.0, %v1274
    %v1276 = vtanh.pop %v1269
    %v1277 = vxor.u32 %v1269, 2147483648
    %v1278 = vmul.f32 %v1277, 1.442695
    %v1279 = vpow.pop %v1278
    %v1280 = vadd.f32 %v1279, 1.0
    %v1281 = vrcp.pop %v1280
    %v1282 = vmul.f32 1.0, %v1281
    %v1283 = vsel %vm86, %v1276, %v1282
    %v1284 = vmul.f32 %v1275, %v1185
    %v1285 = vmul.f32 %v1275, %v1283
    %1287 = vrot.lane.b32.xlu0 %v1285, 64
    %v1288 = vpop.permute.xlu0 %1287
    %v1290 = vadd.f32 %v1284, %v1288
    %v1291 = vtanh.pop %v1290
    %v1292 = vmul.f32 %v1283, %v1291
    %1294 = vrot.lane.b32.xlu0 %v1290, 64
    %v1295 = vpop.permute.xlu0 %1294
    %v1297 = vsel %vm455, %v1292, %v1295
    %1298 = vst [vmem:[%s3] sm:$0xff] %v1297
    %v1299 = vld [vmem:[#allocation3 + $0x200] sm:$0xff]
    %v1300 = vld [vmem:[#allocation3 + $0x208] sm:$0xff]
    %v1301 = vld [vmem:[#allocation3 + $0x210] sm:$0xff]
    %v1302 = vld [vmem:[#allocation3 + $0x218] sm:$0xff]
    %v1303 = vld [vmem:[#allocation3 + $0x220] sm:$0xff]
    %v1304 = vld [vmem:[#allocation3 + $0x228] sm:$0xff]
    %v1305 = vld [vmem:[#allocation3 + $0x230] sm:$0xff]
    %v1306 = vld [vmem:[#allocation3 + $0x238] sm:$0xff]
    %v1307 = vld [vmem:[#allocation3 + $0x240] sm:$0xff]
    %v1308 = vld [vmem:[#allocation3 + $0x248] sm:$0xff]
    %v1309 = vld [vmem:[#allocation3 + $0x250] sm:$0xff]
    %v1310 = vld [vmem:[#allocation3 + $0x258] sm:$0xff]
    %v1311 = vld [vmem:[#allocation3 + $0x260] sm:$0xff]
    %v1312 = vld [vmem:[#allocation3 + $0x268] sm:$0xff]
    %v1313 = vld [vmem:[#allocation3 + $0x270] sm:$0xff]
    %v1314 = vld [vmem:[#allocation3 + $0x278] sm:$0xff]
    %v1315 = vld [vmem:[#allocation3 + $0x280] sm:$0xff]
    %v1316 = vld [vmem:[#allocation3 + $0x288] sm:$0xff]
    %v1317 = vld [vmem:[#allocation3 + $0x290] sm:$0xff]
    %v1318 = vld [vmem:[#allocation3 + $0x298] sm:$0xff]
    %v1319 = vld [vmem:[#allocation3 + $0x2a0] sm:$0xff]
    %v1320 = vld [vmem:[#allocation3 + $0x2a8] sm:$0xff]
    %v1321 = vld [vmem:[#allocation3 + $0x2b0] sm:$0xff]
    %v1322 = vld [vmem:[#allocation3 + $0x2b8] sm:$0xff]
    %v1323 = vld [vmem:[#allocation3 + $0x2c0] sm:$0xff]
    %v1324 = vld [vmem:[#allocation3 + $0x2c8] sm:$0xff]
    %v1325 = vld [vmem:[#allocation3 + $0x2d0] sm:$0xff]
    %v1326 = vld [vmem:[#allocation3 + $0x2d8] sm:$0xff]
    %v1327 = vld [vmem:[#allocation3 + $0x2e0] sm:$0xff]
    %v1328 = vld [vmem:[#allocation3 + $0x2e8] sm:$0xff]
    %v1329 = vld [vmem:[#allocation3 + $0x2f0] sm:$0xff]
    %v1330 = vld [vmem:[#allocation3 + $0x2f8] sm:$0xff]
    %1332 = vrot.lane.b32.xlu0 %v1292, 96
    %v1333 = vpop.permute.xlu0 %1332
    %1334 = vrot.lane.b32.xlu0 %v1187, 96
    %v1335 = vpop.permute.xlu0 %1334
    %1336 = vrot.lane.b32.xlu0 %v1082, 96
    %v1337 = vpop.permute.xlu0 %1336
    %1338 = vrot.lane.b32.xlu0 %v977, 96
    %v1339 = vpop.permute.xlu0 %1338
    %1340 = vrot.lane.b32.xlu0 %v872, 96
    %v1341 = vpop.permute.xlu0 %1340
    %1342 = vrot.lane.b32.xlu0 %v767, 96
    %v1343 = vpop.permute.xlu0 %1342
    %1344 = vrot.lane.b32.xlu0 %v662, 96
    %v1345 = vpop.permute.xlu0 %1344
    %1346 = vrot.lane.b32.xlu0 %v557, 96
    %v1347 = vpop.permute.xlu0 %1346
    %vm1348 = vcmask 261120
    %v1349 = vsel %vm1348, %v1333, 0
    %v1351 = vsel %vm1348, %v1335, 0
    %v1353 = vsel %vm1348, %v1337, 0
    %v1355 = vsel %vm1348, %v1339, 0
    %v1357 = vsel %vm1348, %v1341, 0
    %v1359 = vsel %vm1348, %v1343, 0
    %v1361 = vsel %vm1348, %v1345, 0
    %v1363 = vsel %vm1348, %v1347, 0
    %1365 = vmatprep.subr.mxu0 %v1316
    %1366 = vmatpush1.msra.mxu0 %v1315
    %1367 = vmatprep.subr.mxu0 %v1320
    %1368 = vmatpush1.msra.mxu0 %v1319
    %1369 = vmatprep.subr.mxu0 %v1324
    %1370 = vmatpush1.msra.mxu0 %v1323
    %1371 = vmatprep.subr.mxu0 %v1328
    %1372 = vmatpush1.msra.mxu0 %v1327
    %1373 = vmatprep.subr.mxu0 0.0
    %1374 = vmatpush1.msra.mxu0 0.0
    %1375 = vmatprep.subr.mxu0 0.0
    %1376 = vmatpush1.msra.mxu0 0.0
    %1377 = vmatprep.subr.mxu0 0.0
    %1378 = vmatpush1.msra.mxu0 0.0
    %1379 = vmatprep.subr.mxu0 0.0
    %1380 = vmatpush1.msra.mxu0 0.0
    %1381 = vmatprep.subr.mxu0 0.0
    %1382 = vmatpush1.msra.mxu0 0.0
    %1383 = vmatprep.subr.mxu0 0.0
    %1384 = vmatpush1.msra.mxu0 0.0
    %1385 = vmatprep.subr.mxu0 0.0
    %1386 = vmatpush1.msra.mxu0 0.0
    %1387 = vmatprep.subr.mxu0 0.0
    %1388 = vmatpush1.msra.mxu0 0.0
    %1389 = vmatprep.subr.mxu0 0.0
    %1390 = vmatpush1.msra.mxu0 0.0
    %1391 = vmatprep.subr.mxu0 0.0
    %1392 = vmatpush1.msra.mxu0 0.0
    %1393 = vmatprep.subr.mxu0 0.0
    %1394 = vmatpush1.msra.mxu0 0.0
    %1395 = vmatprep.subr.mxu0 0.0
    %1396 = vmatpush1.msra.mxu0 0.0
    %1397 = vmatprep.subr.mxu0 0.0
    %1398 = vmatpush1.msra.mxu0 0.0
    %1399 = vmatprep.subr.mxu0 0.0
    %1400 = vmatpush1.msra.mxu0 0.0
    %1401 = vmatprep.subr.mxu0 0.0
    %1402 = vmatpush1.msra.mxu0 0.0
    %1403 = vmatprep.subr.mxu0 0.0
    %1404 = vmatpush1.msra.mxu0 0.0
    %1405 = vmatprep.subr.mxu0 0.0
    %1406 = vmatpush1.msra.mxu0 0.0
    %1407 = vmatprep.subr.mxu0 0.0
    %1408 = vmatpush1.msra.mxu0 0.0
    %1409 = vmatprep.subr.mxu0 0.0
    %1410 = vmatpush1.msra.mxu0 0.0
    %1411 = vmatprep.subr.mxu0 0.0
    %1412 = vmatpush1.msra.mxu0 0.0
    %1413 = vmatprep.subr.mxu0 0.0
    %1414 = vmatpush1.msra.mxu0 0.0
    %1415 = vmatprep.subr.mxu0 0.0
    %1416 = vmatpush1.msra.mxu0 0.0
    %1417 = vmatprep.subr.mxu0 0.0
    %1418 = vmatpush1.msra.mxu0 0.0
    %1419 = vmatprep.subr.mxu0 0.0
    %1420 = vmatpush1.msra.mxu0 0.0
    %1421 = vmatprep.subr.mxu0 0.0
    %1422 = vmatpush1.msra.mxu0 0.0
    %1423 = vmatprep.subr.mxu0 0.0
    %1424 = vmatpush1.msra.mxu0 0.0
    %1425 = vmatprep.subr.mxu0 0.0
    %1426 = vmatpush1.msra.mxu0 0.0
    %1427 = vmatprep.subr.mxu0 0.0
    %1428 = vmatpush1.msra.mxu0 0.0
    %1429 = vmatprep.mubr.f32.mxu0 0.0
    %1430 = vmatmul.mubr.f32.gmra.mrb[0].mxu0 %v1349
    %v1431 = vpop.f32.mrb[0].mxu0
    %v1432 = vadd.f32 0.0, %v1431
    %v1433 = vpop.f32.mrb[0].mxu0
    %v1434 = vadd.f32 0.0, %v1433
    %1435 = vmatprep.mubr.f32.mxu0 0.0
    %1436 = vmatmul.mubr.f32.gmra.mrb[0].mxu0 %v1351
    %v1437 = vpop.f32.mrb[0].mxu0
    %v1438 = vadd.f32 0.0, %v1437
    %v1439 = vpop.f32.mrb[0].mxu0
    %v1440 = vadd.f32 0.0, %v1439
    %1441 = vmatprep.mubr.f32.mxu0 0.0
    %1442 = vmatmul.mubr.f32.gmra.mrb[0].mxu0 %v1353
    %v1443 = vpop.f32.mrb[0].mxu0
    %v1444 = vadd.f32 0.0, %v1443
    %v1445 = vpop.f32.mrb[0].mxu0
    %v1446 = vadd.f32 0.0, %v1445
    %1447 = vmatprep.mubr.f32.mxu0 0.0
    %1448 = vmatmul.mubr.f32.gmra.mrb[0].mxu0 %v1355
    %v1449 = vpop.f32.mrb[0].mxu0
    %v1450 = vadd.f32 0.0, %v1449
    %v1451 = vpop.f32.mrb[0].mxu0
    %v1452 = vadd.f32 0.0, %v1451
    %1453 = vmatprep.mubr.f32.mxu0 0.0
    %1454 = vmatmul.mubr.f32.gmra.mrb[0].mxu0 %v1357
    %v1455 = vpop.f32.mrb[0].mxu0
    %v1456 = vadd.f32 0.0, %v1455
    %v1457 = vpop.f32.mrb[0].mxu0
    %v1458 = vadd.f32 0.0, %v1457
    %1459 = vmatprep.mubr.f32.mxu0 0.0
    %1460 = vmatmul.mubr.f32.gmra.mrb[0].mxu0 %v1359
    %v1461 = vpop.f32.mrb[0].mxu0
    %v1462 = vadd.f32 0.0, %v1461
    %v1463 = vpop.f32.mrb[0].mxu0
    %v1464 = vadd.f32 0.0, %v1463
    %1465 = vmatprep.mubr.f32.mxu0 0.0
    %1466 = vmatmul.mubr.f32.gmra.mrb[0].mxu0 %v1361
    %v1467 = vpop.f32.mrb[0].mxu0
    %v1468 = vadd.f32 0.0, %v1467
    %v1469 = vpop.f32.mrb[0].mxu0
    %v1470 = vadd.f32 0.0, %v1469
    %1471 = vmatprep.mubr.f32.mxu0 0.0
    %1472 = vmatmul.mubr.f32.gmra.mrb[0].mxu0 %v1363
    %v1473 = vpop.f32.mrb[0].mxu0
    %v1474 = vadd.f32 0.0, %v1473
    %v1475 = vpop.f32.mrb[0].mxu0
    %v1476 = vadd.f32 0.0, %v1475
    %1477 = vdwg.mxu0
    %1478 = vmatprep.subr.mxu0 %v1318
    %1479 = vmatpush1.msra.mxu0 %v1317
    %1480 = vmatprep.subr.mxu0 %v1322
    %1481 = vmatpush1.msra.mxu0 %v1321
    %1482 = vmatprep.subr.mxu0 %v1326
    %1483 = vmatpush1.msra.mxu0 %v1325
    %1484 = vmatprep.subr.mxu0 %v1330
    %1485 = vmatpush1.msra.mxu0 %v1329
    %1486 = vmatprep.subr.mxu0 0.0
    %1487 = vmatpush1.msra.mxu0 0.0
    %1488 = vmatprep.subr.mxu0 0.0
    %1489 = vmatpush1.msra.mxu0 0.0
    %1490 = vmatprep.subr.mxu0 0.0
    %1491 = vmatpush1.msra.mxu0 0.0
    %1492 = vmatprep.subr.mxu0 0.0
    %1493 = vmatpush1.msra.mxu0 0.0
    %1494 = vmatprep.subr.mxu0 0.0
    %1495 = vmatpush1.msra.mxu0 0.0
    %1496 = vmatprep.subr.mxu0 0.0
    %1497 = vmatpush1.msra.mxu0 0.0
    %1498 = vmatprep.subr.mxu0 0.0
    %1499 = vmatpush1.msra.mxu0 0.0
    %1500 = vmatprep.subr.mxu0 0.0
    %1501 = vmatpush1.msra.mxu0 0.0
    %1502 = vmatprep.subr.mxu0 0.0
    %1503 = vmatpush1.msra.mxu0 0.0
    %1504 = vmatprep.subr.mxu0 0.0
    %1505 = vmatpush1.msra.mxu0 0.0
    %1506 = vmatprep.subr.mxu0 0.0
    %1507 = vmatpush1.msra.mxu0 0.0
    %1508 = vmatprep.subr.mxu0 0.0
    %1509 = vmatpush1.msra.mxu0 0.0
    %1510 = vmatprep.subr.mxu0 0.0
    %1511 = vmatpush1.msra.mxu0 0.0
    %1512 = vmatprep.subr.mxu0 0.0
    %1513 = vmatpush1.msra.mxu0 0.0
    %1514 = vmatprep.subr.mxu0 0.0
    %1515 = vmatpush1.msra.mxu0 0.0
    %1516 = vmatprep.subr.mxu0 0.0
    %1517 = vmatpush1.msra.mxu0 0.0
    %1518 = vmatprep.subr.mxu0 0.0
    %1519 = vmatpush1.msra.mxu0 0.0
    %1520 = vmatprep.subr.mxu0 0.0
    %1521 = vmatpush1.msra.mxu0 0.0
    %1522 = vmatprep.subr.mxu0 0.0
    %1523 = vmatpush1.msra.mxu0 0.0
    %1524 = vmatprep.subr.mxu0 0.0
    %1525 = vmatpush1.msra.mxu0 0.0
    %1526 = vmatprep.subr.mxu0 0.0
    %1527 = vmatpush1.msra.mxu0 0.0
    %1528 = vmatprep.subr.mxu0 0.0
    %1529 = vmatpush1.msra.mxu0 0.0
    %1530 = vmatprep.subr.mxu0 0.0
    %1531 = vmatpush1.msra.mxu0 0.0
    %1532 = vmatprep.subr.mxu0 0.0
    %1533 = vmatpush1.msra.mxu0 0.0
    %1534 = vmatprep.subr.mxu0 0.0
    %1535 = vmatpush1.msra.mxu0 0.0
    %1536 = vmatprep.subr.mxu0 0.0
    %1537 = vmatpush1.msra.mxu0 0.0
    %1538 = vmatprep.subr.mxu0 0.0
    %1539 = vmatpush1.msra.mxu0 0.0
    %1540 = vmatprep.subr.mxu0 0.0
    %1541 = vmatpush1.msra.mxu0 0.0
    %1542 = vmatprep.mubr.f32.mxu0 0.0
    %1543 = vmatmul.mubr.f32.gmra.mrb[0].mxu0 %v1349
    %v1544 = vpop.f32.mrb[0].mxu0
    %v1545 = vadd.f32 0.0, %v1544
    %v1546 = vpop.f32.mrb[0].mxu0
    %v1547 = vadd.f32 0.0, %v1546
    %1548 = vmatprep.mubr.f32.mxu0 0.0
    %1549 = vmatmul.mubr.f32.gmra.mrb[0].mxu0 %v1351
    %v1550 = vpop.f32.mrb[0].mxu0
    %v1551 = vadd.f32 0.0, %v1550
    %v1552 = vpop.f32.mrb[0].mxu0
    %v1553 = vadd.f32 0.0, %v1552
    %1554 = vmatprep.mubr.f32.mxu0 0.0
    %1555 = vmatmul.mubr.f32.gmra.mrb[0].mxu0 %v1353
    %v1556 = vpop.f32.mrb[0].mxu0
    %v1557 = vadd.f32 0.0, %v1556
    %v1558 = vpop.f32.mrb[0].mxu0
    %v1559 = vadd.f32 0.0, %v1558
    %1560 = vmatprep.mubr.f32.mxu0 0.0
    %1561 = vmatmul.mubr.f32.gmra.mrb[0].mxu0 %v1355
    %v1562 = vpop.f32.mrb[0].mxu0
    %v1563 = vadd.f32 0.0, %v1562
    %v1564 = vpop.f32.mrb[0].mxu0
    %v1565 = vadd.f32 0.0, %v1564
    %1566 = vmatprep.mubr.f32.mxu0 0.0
    %1567 = vmatmul.mubr.f32.gmra.mrb[0].mxu0 %v1357
    %v1568 = vpop.f32.mrb[0].mxu0
    %v1569 = vadd.f32 0.0, %v1568
    %v1570 = vpop.f32.mrb[0].mxu0
    %v1571 = vadd.f32 0.0, %v1570
    %1572 = vmatprep.mubr.f32.mxu0 0.0
    %1573 = vmatmul.mubr.f32.gmra.mrb[0].mxu0 %v1359
    %v1574 = vpop.f32.mrb[0].mxu0
    %v1575 = vadd.f32 0.0, %v1574
    %v1576 = vpop.f32.mrb[0].mxu0
    %v1577 = vadd.f32 0.0, %v1576
    %1578 = vmatprep.mubr.f32.mxu0 0.0
    %1579 = vmatmul.mubr.f32.gmra.mrb[0].mxu0 %v1361
    %v1580 = vpop.f32.mrb[0].mxu0
    %v1581 = vadd.f32 0.0, %v1580
    %v1582 = vpop.f32.mrb[0].mxu0
    %v1583 = vadd.f32 0.0, %v1582
    %1584 = vmatprep.mubr.f32.mxu0 0.0
    %1585 = vmatmul.mubr.f32.gmra.mrb[0].mxu0 %v1363
    %v1586 = vpop.f32.mrb[0].mxu0
    %v1587 = vadd.f32 0.0, %v1586
    %v1588 = vpop.f32.mrb[0].mxu0
    %v1589 = vadd.f32 0.0, %v1588
    %1590 = vdwg.mxu0
    %v1591 = vsel %vm1348, %v557, 0
    %v1593 = vsel %vm1348, %v662, 0
    %v1595 = vsel %vm1348, %v767, 0
    %v1597 = vsel %vm1348, %v872, 0
    %v1599 = vsel %vm1348, %v977, 0
    %v1601 = vsel %vm1348, %v1082, 0
    %v1603 = vsel %vm1348, %v1187, 0
    %v1605 = vsel %vm1348, %v1292, 0
    %1607 = vmatprep.subr.mxu0 %v1300
    %1608 = vmatpush1.msra.mxu0 %v1299
    %1609 = vmatprep.subr.mxu0 %v1304
    %1610 = vmatpush1.msra.mxu0 %v1303
    %1611 = vmatprep.subr.mxu0 %v1308
    %1612 = vmatpush1.msra.mxu0 %v1307
    %1613 = vmatprep.subr.mxu0 %v1312
    %1614 = vmatpush1.msra.mxu0 %v1311
    %1615 = vmatprep.subr.mxu0 0.0
    %1616 = vmatpush1.msra.mxu0 0.0
    %1617 = vmatprep.subr.mxu0 0.0
    %1618 = vmatpush1.msra.mxu0 0.0
    %1619 = vmatprep.subr.mxu0 0.0
    %1620 = vmatpush1.msra.mxu0 0.0
    %1621 = vmatprep.subr.mxu0 0.0
    %1622 = vmatpush1.msra.mxu0 0.0
    %1623 = vmatprep.subr.mxu0 0.0
    %1624 = vmatpush1.msra.mxu0 0.0
    %1625 = vmatprep.subr.mxu0 0.0
    %1626 = vmatpush1.msra.mxu0 0.0
    %1627 = vmatprep.subr.mxu0 0.0
    %1628 = vmatpush1.msra.mxu0 0.0
    %1629 = vmatprep.subr.mxu0 0.0
    %1630 = vmatpush1.msra.mxu0 0.0
    %1631 = vmatprep.subr.mxu0 0.0
    %1632 = vmatpush1.msra.mxu0 0.0
    %1633 = vmatprep.subr.mxu0 0.0
    %1634 = vmatpush1.msra.mxu0 0.0
    %1635 = vmatprep.subr.mxu0 0.0
    %1636 = vmatpush1.msra.mxu0 0.0
    %1637 = vmatprep.subr.mxu0 0.0
    %1638 = vmatpush1.msra.mxu0 0.0
    %1639 = vmatprep.subr.mxu0 0.0
    %1640 = vmatpush1.msra.mxu0 0.0
    %1641 = vmatprep.subr.mxu0 0.0
    %1642 = vmatpush1.msra.mxu0 0.0
    %1643 = vmatprep.subr.mxu0 0.0
    %1644 = vmatpush1.msra.mxu0 0.0
    %1645 = vmatprep.subr.mxu0 0.0
    %1646 = vmatpush1.msra.mxu0 0.0
    %1647 = vmatprep.subr.mxu0 0.0
    %1648 = vmatpush1.msra.mxu0 0.0
    %1649 = vmatprep.subr.mxu0 0.0
    %1650 = vmatpush1.msra.mxu0 0.0
    %1651 = vmatprep.subr.mxu0 0.0
    %1652 = vmatpush1.msra.mxu0 0.0
    %1653 = vmatprep.subr.mxu0 0.0
    %1654 = vmatpush1.msra.mxu0 0.0
    %1655 = vmatprep.subr.mxu0 0.0
    %1656 = vmatpush1.msra.mxu0 0.0
    %1657 = vmatprep.subr.mxu0 0.0
    %1658 = vmatpush1.msra.mxu0 0.0
    %1659 = vmatprep.subr.mxu0 0.0
    %1660 = vmatpush1.msra.mxu0 0.0
    %1661 = vmatprep.subr.mxu0 0.0
    %1662 = vmatpush1.msra.mxu0 0.0
    %1663 = vmatprep.subr.mxu0 0.0
    %1664 = vmatpush1.msra.mxu0 0.0
    %1665 = vmatprep.subr.mxu0 0.0
    %1666 = vmatpush1.msra.mxu0 0.0
    %1667 = vmatprep.subr.mxu0 0.0
    %1668 = vmatpush1.msra.mxu0 0.0
    %1669 = vmatprep.subr.mxu0 0.0
    %1670 = vmatpush1.msra.mxu0 0.0
    %1671 = vmatprep.mubr.f32.mxu0 0.0
    %1672 = vmatmul.mubr.f32.gmra.mrb[0].mxu0 %v1591
    %v1673 = vpop.f32.mrb[0].mxu0
    %v1674 = vadd.f32 %v1432, %v1673
    %v1675 = vpop.f32.mrb[0].mxu0
    %v1676 = vadd.f32 %v1434, %v1675
    %1677 = vmatprep.mubr.f32.mxu0 0.0
    %1678 = vmatmul.mubr.f32.gmra.mrb[0].mxu0 %v1593
    %v1679 = vpop.f32.mrb[0].mxu0
    %v1680 = vadd.f32 %v1438, %v1679
    %v1681 = vpop.f32.mrb[0].mxu0
    %v1682 = vadd.f32 %v1440, %v1681
    %1683 = vmatprep.mubr.f32.mxu0 0.0
    %1684 = vmatmul.mubr.f32.gmra.mrb[0].mxu0 %v1595
    %v1685 = vpop.f32.mrb[0].mxu0
    %v1686 = vadd.f32 %v1444, %v1685
    %v1687 = vpop.f32.mrb[0].mxu0
    %v1688 = vadd.f32 %v1446, %v1687
    %1689 = vmatprep.mubr.f32.mxu0 0.0
    %1690 = vmatmul.mubr.f32.gmra.mrb[0].mxu0 %v1597
    %v1691 = vpop.f32.mrb[0].mxu0
    %v1692 = vadd.f32 %v1450, %v1691
    %v1693 = vpop.f32.mrb[0].mxu0
    %v1694 = vadd.f32 %v1452, %v1693
    %1695 = vmatprep.mubr.f32.mxu0 0.0
    %1696 = vmatmul.mubr.f32.gmra.mrb[0].mxu0 %v1599
    %v1697 = vpop.f32.mrb[0].mxu0
    %v1698 = vadd.f32 %v1456, %v1697
    %v1699 = vpop.f32.mrb[0].mxu0
    %v1700 = vadd.f32 %v1458, %v1699
    %1701 = vmatprep.mubr.f32.mxu0 0.0
    %1702 = vmatmul.mubr.f32.gmra.mrb[0].mxu0 %v1601
    %v1703 = vpop.f32.mrb[0].mxu0
    %v1704 = vadd.f32 %v1462, %v1703
    %v1705 = vpop.f32.mrb[0].mxu0
    %v1706 = vadd.f32 %v1464, %v1705
    %1707 = vmatprep.mubr.f32.mxu0 0.0
    %1708 = vmatmul.mubr.f32.gmra.mrb[0].mxu0 %v1603
    %v1709 = vpop.f32.mrb[0].mxu0
    %v1710 = vadd.f32 %v1468, %v1709
    %v1711 = vpop.f32.mrb[0].mxu0
    %v1712 = vadd.f32 %v1470, %v1711
    %1713 = vmatprep.mubr.f32.mxu0 0.0
    %1714 = vmatmul.mubr.f32.gmra.mrb[0].mxu0 %v1605
    %v1715 = vpop.f32.mrb[0].mxu0
    %v1716 = vadd.f32 %v1474, %v1715
    %v1717 = vpop.f32.mrb[0].mxu0
    %v1718 = vadd.f32 %v1476, %v1717
    %1719 = vdwg.mxu0
    %1720 = vmatprep.subr.mxu0 %v1302
    %1721 = vmatpush1.msra.mxu0 %v1301
    %1722 = vmatprep.subr.mxu0 %v1306
    %1723 = vmatpush1.msra.mxu0 %v1305
    %1724 = vmatprep.subr.mxu0 %v1310
    %1725 = vmatpush1.msra.mxu0 %v1309
    %1726 = vmatprep.subr.mxu0 %v1314
    %1727 = vmatpush1.msra.mxu0 %v1313
    %1728 = vmatprep.subr.mxu0 0.0
    %1729 = vmatpush1.msra.mxu0 0.0
    %1730 = vmatprep.subr.mxu0 0.0
    %1731 = vmatpush1.msra.mxu0 0.0
    %1732 = vmatprep.subr.mxu0 0.0
    %1733 = vmatpush1.msra.mxu0 0.0
    %1734 = vmatprep.subr.mxu0 0.0
    %1735 = vmatpush1.msra.mxu0 0.0
    %1736 = vmatprep.subr.mxu0 0.0
    %1737 = vmatpush1.msra.mxu0 0.0
    %1738 = vmatprep.subr.mxu0 0.0
    %1739 = vmatpush1.msra.mxu0 0.0
    %1740 = vmatprep.subr.mxu0 0.0
    %1741 = vmatpush1.msra.mxu0 0.0
    %1742 = vmatprep.subr.mxu0 0.0
    %1743 = vmatpush1.msra.mxu0 0.0
    %1744 = vmatprep.subr.mxu0 0.0
    %1745 = vmatpush1.msra.mxu0 0.0
    %1746 = vmatprep.subr.mxu0 0.0
    %1747 = vmatpush1.msra.mxu0 0.0
    %1748 = vmatprep.subr.mxu0 0.0
    %1749 = vmatpush1.msra.mxu0 0.0
    %1750 = vmatprep.subr.mxu0 0.0
    %1751 = vmatpush1.msra.mxu0 0.0
    %1752 = vmatprep.subr.mxu0 0.0
    %1753 = vmatpush1.msra.mxu0 0.0
    %1754 = vmatprep.subr.mxu0 0.0
    %1755 = vmatpush1.msra.mxu0 0.0
    %1756 = vmatprep.subr.mxu0 0.0
    %1757 = vmatpush1.msra.mxu0 0.0
    %1758 = vmatprep.subr.mxu0 0.0
    %1759 = vmatpush1.msra.mxu0 0.0
    %1760 = vmatprep.subr.mxu0 0.0
    %1761 = vmatpush1.msra.mxu0 0.0
    %1762 = vmatprep.subr.mxu0 0.0
    %1763 = vmatpush1.msra.mxu0 0.0
    %1764 = vmatprep.subr.mxu0 0.0
    %1765 = vmatpush1.msra.mxu0 0.0
    %1766 = vmatprep.subr.mxu0 0.0
    %1767 = vmatpush1.msra.mxu0 0.0
    %1768 = vmatprep.subr.mxu0 0.0
    %1769 = vmatpush1.msra.mxu0 0.0
    %1770 = vmatprep.subr.mxu0 0.0
    %1771 = vmatpush1.msra.mxu0 0.0
    %1772 = vmatprep.subr.mxu0 0.0
    %1773 = vmatpush1.msra.mxu0 0.0
    %1774 = vmatprep.subr.mxu0 0.0
    %1775 = vmatpush1.msra.mxu0 0.0
    %1776 = vmatprep.subr.mxu0 0.0
    %1777 = vmatpush1.msra.mxu0 0.0
    %1778 = vmatprep.subr.mxu0 0.0
    %1779 = vmatpush1.msra.mxu0 0.0
    %1780 = vmatprep.subr.mxu0 0.0
    %1781 = vmatpush1.msra.mxu0 0.0
    %1782 = vmatprep.subr.mxu0 0.0
    %1783 = vmatpush1.msra.mxu0 0.0
    %1784 = vmatprep.mubr.f32.mxu0 0.0
    %1785 = vmatmul.mubr.f32.gmra.mrb[0].mxu0 %v1591
    %v1786 = vpop.f32.mrb[0].mxu0
    %v1787 = vadd.f32 %v1545, %v1786
    %v1788 = vpop.f32.mrb[0].mxu0
    %v1789 = vadd.f32 %v1547, %v1788
    %1790 = vmatprep.mubr.f32.mxu0 0.0
    %1791 = vmatmul.mubr.f32.gmra.mrb[0].mxu0 %v1593
    %v1792 = vpop.f32.mrb[0].mxu0
    %v1793 = vadd.f32 %v1551, %v1792
    %v1794 = vpop.f32.mrb[0].mxu0
    %v1795 = vadd.f32 %v1553, %v1794
    %1796 = vmatprep.mubr.f32.mxu0 0.0
    %1797 = vmatmul.mubr.f32.gmra.mrb[0].mxu0 %v1595
    %v1798 = vpop.f32.mrb[0].mxu0
    %v1799 = vadd.f32 %v1557, %v1798
    %v1800 = vpop.f32.mrb[0].mxu0
    %v1801 = vadd.f32 %v1559, %v1800
    %1802 = vmatprep.mubr.f32.mxu0 0.0
    %1803 = vmatmul.mubr.f32.gmra.mrb[0].mxu0 %v1597
    %v1804 = vpop.f32.mrb[0].mxu0
    %v1805 = vadd.f32 %v1563, %v1804
    %v1806 = vpop.f32.mrb[0].mxu0
    %v1807 = vadd.f32 %v1565, %v1806
    %1808 = vmatprep.mubr.f32.mxu0 0.0
    %1809 = vmatmul.mubr.f32.gmra.mrb[0].mxu0 %v1599
    %v1810 = vpop.f32.mrb[0].mxu0
    %v1811 = vadd.f32 %v1569, %v1810
    %v1812 = vpop.f32.mrb[0].mxu0
    %v1813 = vadd.f32 %v1571, %v1812
    %1814 = vmatprep.mubr.f32.mxu0 0.0
    %1815 = vmatmul.mubr.f32.gmra.mrb[0].mxu0 %v1601
    %v1816 = vpop.f32.mrb[0].mxu0
    %v1817 = vadd.f32 %v1575, %v1816
    %v1818 = vpop.f32.mrb[0].mxu0
    %v1819 = vadd.f32 %v1577, %v1818
    %1820 = vmatprep.mubr.f32.mxu0 0.0
    %1821 = vmatmul.mubr.f32.gmra.mrb[0].mxu0 %v1603
    %v1822 = vpop.f32.mrb[0].mxu0
    %v1823 = vadd.f32 %v1581, %v1822
    %v1824 = vpop.f32.mrb[0].mxu0
    %v1825 = vadd.f32 %v1583, %v1824
    %1826 = vmatprep.mubr.f32.mxu0 0.0
    %1827 = vmatmul.mubr.f32.gmra.mrb[0].mxu0 %v1605
    %v1828 = vpop.f32.mrb[0].mxu0
    %v1829 = vadd.f32 %v1587, %v1828
    %v1830 = vpop.f32.mrb[0].mxu0
    %v1831 = vadd.f32 %v1589, %v1830
    %1832 = vdwg.mxu0
    %s1833 = scalar_lea.vmem [#allocation3], 1025
    %v1834 = vld [vmem:[%s1833] ss:$8 sm:$0xf]
    %v1836 = vlaneseq
    %v1837 = vshrl.u32 %v1836, 7
    %v1838 = vsub.s32 0, %v1837
    %v1839 = vrot.slane %v1834, %v1838
    %v1840 = vlaneseq
    %v1841 = vshrl.u32 %v1840, 7
    %v1842 = vsub.s32 1, %v1841
    %v1843 = vrot.slane %v1834, %v1842
    %v1844 = vlaneseq
    %v1845 = vshrl.u32 %v1844, 7
    %v1846 = vsub.s32 2, %v1845
    %v1847 = vrot.slane %v1834, %v1846
    %v1848 = vlaneseq
    %v1849 = vshrl.u32 %v1848, 7
    %v1850 = vsub.s32 3, %v1849
    %v1851 = vrot.slane %v1834, %v1850
    %v1856 = vadd.f32 %v1674, %v1839
    %v1857 = vadd.f32 %v1676, %v1843
    %v1858 = vadd.f32 %v1787, %v1847
    %v1859 = vadd.f32 %v1789, %v1851
    %v1860 = vadd.f32 %v1680, %v1839
    %v1861 = vadd.f32 %v1682, %v1843
    %v1862 = vadd.f32 %v1793, %v1847
    %v1863 = vadd.f32 %v1795, %v1851
    %v1864 = vadd.f32 %v1686, %v1839
    %v1865 = vadd.f32 %v1688, %v1843
    %v1866 = vadd.f32 %v1799, %v1847
    %v1867 = vadd.f32 %v1801, %v1851
    %v1868 = vadd.f32 %v1692, %v1839
    %v1869 = vadd.f32 %v1694, %v1843
    %v1870 = vadd.f32 %v1805, %v1847
    %v1871 = vadd.f32 %v1807, %v1851
    %v1872 = vadd.f32 %v1698, %v1839
    %v1873 = vadd.f32 %v1700, %v1843
    %v1874 = vadd.f32 %v1811, %v1847
    %v1875 = vadd.f32 %v1813, %v1851
    %v1876 = vadd.f32 %v1704, %v1839
    %v1877 = vadd.f32 %v1706, %v1843
    %v1878 = vadd.f32 %v1817, %v1847
    %v1879 = vadd.f32 %v1819, %v1851
    %v1880 = vadd.f32 %v1710, %v1839
    %v1881 = vadd.f32 %v1712, %v1843
    %v1882 = vadd.f32 %v1823, %v1847
    %v1883 = vadd.f32 %v1825, %v1851
    %v1884 = vadd.f32 %v1716, %v1839
    %v1885 = vadd.f32 %v1718, %v1843
    %v1886 = vadd.f32 %v1829, %v1847
    %v1887 = vadd.f32 %v1831, %v1851
    %1888 = vst [vmem:[#allocation2] sm:$0xff] %v1856
    %1889 = vst [vmem:[#allocation2 + $0x8] sm:$0xff] %v1857
    %1890 = vst [vmem:[#allocation2 + $0x10] sm:$0xff] %v1858
    %1891 = vst [vmem:[#allocation2 + $0x18] sm:$0xff] %v1859
    %1892 = vst [vmem:[#allocation2 + $0x20] sm:$0xff] %v1860
    %1893 = vst [vmem:[#allocation2 + $0x28] sm:$0xff] %v1861
    %1894 = vst [vmem:[#allocation2 + $0x30] sm:$0xff] %v1862
    %1895 = vst [vmem:[#allocation2 + $0x38] sm:$0xff] %v1863
    %1896 = vst [vmem:[#allocation2 + $0x40] sm:$0xff] %v1864
    %1897 = vst [vmem:[#allocation2 + $0x48] sm:$0xff] %v1865
    %1898 = vst [vmem:[#allocation2 + $0x50] sm:$0xff] %v1866
    %1899 = vst [vmem:[#allocation2 + $0x58] sm:$0xff] %v1867
    %1900 = vst [vmem:[#allocation2 + $0x60] sm:$0xff] %v1868
    %1901 = vst [vmem:[#allocation2 + $0x68] sm:$0xff] %v1869
    %1902 = vst [vmem:[#allocation2 + $0x70] sm:$0xff] %v1870
    %1903 = vst [vmem:[#allocation2 + $0x78] sm:$0xff] %v1871
    %1904 = vst [vmem:[#allocation2 + $0x80] sm:$0xff] %v1872
    %1905 = vst [vmem:[#allocation2 + $0x88] sm:$0xff] %v1873
    %1906 = vst [vmem:[#allocation2 + $0x90] sm:$0xff] %v1874
    %1907 = vst [vmem:[#allocation2 + $0x98] sm:$0xff] %v1875
    %1908 = vst [vmem:[#allocation2 + $0xa0] sm:$0xff] %v1876
    %1909 = vst [vmem:[#allocation2 + $0xa8] sm:$0xff] %v1877
    %1910 = vst [vmem:[#allocation2 + $0xb0] sm:$0xff] %v1878
    %1911 = vst [vmem:[#allocation2 + $0xb8] sm:$0xff] %v1879
    %1912 = vst [vmem:[#allocation2 + $0xc0] sm:$0xff] %v1880
    %1913 = vst [vmem:[#allocation2 + $0xc8] sm:$0xff] %v1881
    %1914 = vst [vmem:[#allocation2 + $0xd0] sm:$0xff] %v1882
    %1915 = vst [vmem:[#allocation2 + $0xd8] sm:$0xff] %v1883
    %1916 = vst [vmem:[#allocation2 + $0xe0] sm:$0xff] %v1884
    %1917 = vst [vmem:[#allocation2 + $0xe8] sm:$0xff] %v1885
    %1918 = vst [vmem:[#allocation2 + $0xf0] sm:$0xff] %v1886
    %1919 = vst [vmem:[#allocation2 + $0xf8] sm:$0xff] %v1887
    %v1920 = vld [vmem:[#allocation3 + $0x310] sm:$0xff]
    %v1921 = vld [vmem:[#allocation3 + $0x318] sm:$0xff]
    %v1922 = vld [vmem:[#allocation3 + $0x330] sm:$0xff]
    %v1923 = vld [vmem:[#allocation3 + $0x338] sm:$0xff]
    %v1924 = vld [vmem:[#allocation3 + $0x350] sm:$0xff]
    %v1925 = vld [vmem:[#allocation3 + $0x358] sm:$0xff]
    %v1926 = vld [vmem:[#allocation3 + $0x370] sm:$0xff]
    %v1927 = vld [vmem:[#allocation3 + $0x378] sm:$0xff]
    %v1928 = vld [vmem:[#allocation3 + $0x390] sm:$0xff]
    %v1929 = vld [vmem:[#allocation3 + $0x398] sm:$0xff]
    %v1930 = vld [vmem:[#allocation3 + $0x3b0] sm:$0xff]
    %v1931 = vld [vmem:[#allocation3 + $0x3b8] sm:$0xff]
    %v1932 = vld [vmem:[#allocation3 + $0x3d0] sm:$0xff]
    %v1933 = vld [vmem:[#allocation3 + $0x3d8] sm:$0xff]
    %v1934 = vld [vmem:[#allocation3 + $0x3f0] sm:$0xff]
    %v1935 = vld [vmem:[#allocation3 + $0x3f8] sm:$0xff]
    %s1936 = scalar_lea.vmem %s1, 8
    %v1937 = vld [vmem:[%s1936] sm:$0xff]
    %v1938 = vld [vmem:[#allocation2] sm:$0xff]
    %v1939 = vld [vmem:[#allocation2 + $0x8] sm:$0xff]
    %v1940 = vld [vmem:[#allocation2 + $0xf0] sm:$0xff]
    %v1941 = vld [vmem:[#allocation2 + $0xf8] sm:$0xff]
    %v1942 = vadd.f32 %v1938, %v1940
    %v1943 = vadd.f32 %v1939, %v1941
    %v1945 = vsel %vm455, %v1937, 0
    %1947 = vmatprep.subr.mxu0 %v1921
    %1948 = vmatpush1.msra.mxu0 %v1920
    %1949 = vmatprep.subr.mxu0 %v1923
    %1950 = vmatpush1.msra.mxu0 %v1922
    %1951 = vmatprep.subr.mxu0 %v1925
    %1952 = vmatpush1.msra.mxu0 %v1924
    %1953 = vmatprep.subr.mxu0 %v1927
    %1954 = vmatpush1.msra.mxu0 %v1926
    %1955 = vmatprep.subr.mxu0 %v1929
    %1956 = vmatpush1.msra.mxu0 %v1928
    %1957 = vmatprep.subr.mxu0 %v1931
    %1958 = vmatpush1.msra.mxu0 %v1930
    %1959 = vmatprep.subr.mxu0 %v1933
    %1960 = vmatpush1.msra.mxu0 %v1932
    %1961 = vmatprep.subr.mxu0 %v1935
    %1962 = vmatpush1.msra.mxu0 %v1934
    %1963 = vmatprep.subr.mxu0 0.0
    %1964 = vmatpush1.msra.mxu0 0.0
    %1965 = vmatprep.subr.mxu0 0.0
    %1966 = vmatpush1.msra.mxu0 0.0
    %1967 = vmatprep.subr.mxu0 0.0
    %1968 = vmatpush1.msra.mxu0 0.0
    %1969 = vmatprep.subr.mxu0 0.0
    %1970 = vmatpush1.msra.mxu0 0.0
    %1971 = vmatprep.subr.mxu0 0.0
    %1972 = vmatpush1.msra.mxu0 0.0
    %1973 = vmatprep.subr.mxu0 0.0
    %1974 = vmatpush1.msra.mxu0 0.0
    %1975 = vmatprep.subr.mxu0 0.0
    %1976 = vmatpush1.msra.mxu0 0.0
    %1977 = vmatprep.subr.mxu0 0.0
    %1978 = vmatpush1.msra.mxu0 0.0
    %1979 = vmatprep.subr.mxu0 0.0
    %1980 = vmatpush1.msra.mxu0 0.0
    %1981 = vmatprep.subr.mxu0 0.0
    %1982 = vmatpush1.msra.mxu0 0.0
    %1983 = vmatprep.subr.mxu0 0.0
    %1984 = vmatpush1.msra.mxu0 0.0
    %1985 = vmatprep.subr.mxu0 0.0
    %1986 = vmatpush1.msra.mxu0 0.0
    %1987 = vmatprep.subr.mxu0 0.0
    %1988 = vmatpush1.msra.mxu0 0.0
    %1989 = vmatprep.subr.mxu0 0.0
    %1990 = vmatpush1.msra.mxu0 0.0
    %1991 = vmatprep.subr.mxu0 0.0
    %1992 = vmatpush1.msra.mxu0 0.0
    %1993 = vmatprep.subr.mxu0 0.0
    %1994 = vmatpush1.msra.mxu0 0.0
    %1995 = vmatprep.subr.mxu0 0.0
    %1996 = vmatpush1.msra.mxu0 0.0
    %1997 = vmatprep.subr.mxu0 0.0
    %1998 = vmatpush1.msra.mxu0 0.0
    %1999 = vmatprep.subr.mxu0 0.0
    %2000 = vmatpush1.msra.mxu0 0.0
    %2001 = vmatprep.subr.mxu0 0.0
    %2002 = vmatpush1.msra.mxu0 0.0
    %2003 = vmatprep.subr.mxu0 0.0
    %2004 = vmatpush1.msra.mxu0 0.0
    %2005 = vmatprep.subr.mxu0 0.0
    %2006 = vmatpush1.msra.mxu0 0.0
    %2007 = vmatprep.subr.mxu0 0.0
    %2008 = vmatpush1.msra.mxu0 0.0
    %2009 = vmatprep.subr.mxu0 0.0
    %2010 = vmatpush1.msra.mxu0 0.0
    %2011 = vmatprep.mubr.f32.mxu0 0.0
    %2012 = vmatmul.mubr.f32.gmra.mrb[0].mxu0 %v1945
    %v2013 = vpop.f32.mrb[0].mxu0
    %v2014 = vadd.f32 0.0, %v2013
    %v2015 = vpop.f32.mrb[0].mxu0
    %v2016 = vadd.f32 0.0, %v2015
    %2017 = vdwg.mxu0
    %v2018 = vadd.f32 %v1942, %v2014
    %v2019 = vadd.f32 %v1943, %v2016
    %v2020 = vxor.u32 %v2018, 2147483648
    %v2021 = vmul.f32 %v2020, 1.442695
    %v2022 = vpow.pop %v2021
    %v2023 = vadd.f32 %v2022, 1.0
    %v2024 = vrcp.pop %v2023
    %v2025 = vmul.f32 1.0, %v2024
    %v2026 = vtanh.pop %v2019
    %v2027 = vxor.u32 %v2019, 2147483648
    %v2028 = vmul.f32 %v2027, 1.442695
    %v2029 = vpow.pop %v2028
    %v2030 = vadd.f32 %v2029, 1.0
    %v2031 = vrcp.pop %v2030
    %v2032 = vmul.f32 1.0, %v2031
    %v2033 = vsel %vm86, %v2026, %v2032
    %2034 = vrot.lane.b32.xlu0 %v1937, 64
    %v2035 = vpop.permute.xlu0 %2034
    %v2037 = vmul.f32 %v2025, %v2035
    %v2038 = vmul.f32 %v2025, %v2033
    %2040 = vrot.lane.b32.xlu0 %v2038, 64
    %v2041 = vpop.permute.xlu0 %2040
    %v2043 = vadd.f32 %v2037, %v2041
    %v2044 = vtanh.pop %v2043
    %v2045 = vmul.f32 %v2033, %v2044
    %v2046 = vld [vmem:[#allocation2 + $0x20] sm:$0xff]
    %v2047 = vld [vmem:[#allocation2 + $0x28] sm:$0xff]
    %v2048 = vld [vmem:[#allocation2 + $0xd0] sm:$0xff]
    %v2049 = vld [vmem:[#allocation2 + $0xd8] sm:$0xff]
    %v2050 = vadd.f32 %v2046, %v2048
    %v2051 = vadd.f32 %v2047, %v2049
    %v2053 = vsel %vm455, %v2045, 0
    %2055 = vmatprep.subr.mxu0 %v1921
    %2056 = vmatpush1.msra.mxu0 %v1920
    %2057 = vmatprep.subr.mxu0 %v1923
    %2058 = vmatpush1.msra.mxu0 %v1922
    %2059 = vmatprep.subr.mxu0 %v1925
    %2060 = vmatpush1.msra.mxu0 %v1924
    %2061 = vmatprep.subr.mxu0 %v1927
    %2062 = vmatpush1.msra.mxu0 %v1926
    %2063 = vmatprep.subr.mxu0 %v1929
    %2064 = vmatpush1.msra.mxu0 %v1928
    %2065 = vmatprep.subr.mxu0 %v1931
    %2066 = vmatpush1.msra.mxu0 %v1930
    %2067 = vmatprep.subr.mxu0 %v1933
    %2068 = vmatpush1.msra.mxu0 %v1932
    %2069 = vmatprep.subr.mxu0 %v1935
    %2070 = vmatpush1.msra.mxu0 %v1934
    %2071 = vmatprep.subr.mxu0 0.0
    %2072 = vmatpush1.msra.mxu0 0.0
    %2073 = vmatprep.subr.mxu0 0.0
    %2074 = vmatpush1.msra.mxu0 0.0
    %2075 = vmatprep.subr.mxu0 0.0
    %2076 = vmatpush1.msra.mxu0 0.0
    %2077 = vmatprep.subr.mxu0 0.0
    %2078 = vmatpush1.msra.mxu0 0.0
    %2079 = vmatprep.subr.mxu0 0.0
    %2080 = vmatpush1.msra.mxu0 0.0
    %2081 = vmatprep.subr.mxu0 0.0
    %2082 = vmatpush1.msra.mxu0 0.0
    %2083 = vmatprep.subr.mxu0 0.0
    %2084 = vmatpush1.msra.mxu0 0.0
    %2085 = vmatprep.subr.mxu0 0.0
    %2086 = vmatpush1.msra.mxu0 0.0
    %2087 = vmatprep.subr.mxu0 0.0
    %2088 = vmatpush1.msra.mxu0 0.0
    %2089 = vmatprep.subr.mxu0 0.0
    %2090 = vmatpush1.msra.mxu0 0.0
    %2091 = vmatprep.subr.mxu0 0.0
    %2092 = vmatpush1.msra.mxu0 0.0
    %2093 = vmatprep.subr.mxu0 0.0
    %2094 = vmatpush1.msra.mxu0 0.0
    %2095 = vmatprep.subr.mxu0 0.0
    %2096 = vmatpush1.msra.mxu0 0.0
    %2097 = vmatprep.subr.mxu0 0.0
    %2098 = vmatpush1.msra.mxu0 0.0
    %2099 = vmatprep.subr.mxu0 0.0
    %2100 = vmatpush1.msra.mxu0 0.0
    %2101 = vmatprep.subr.mxu0 0.0
    %2102 = vmatpush1.msra.mxu0 0.0
    %2103 = vmatprep.subr.mxu0 0.0
    %2104 = vmatpush1.msra.mxu0 0.0
    %2105 = vmatprep.subr.mxu0 0.0
    %2106 = vmatpush1.msra.mxu0 0.0
    %2107 = vmatprep.subr.mxu0 0.0
    %2108 = vmatpush1.msra.mxu0 0.0
    %2109 = vmatprep.subr.mxu0 0.0
    %2110 = vmatpush1.msra.mxu0 0.0
    %2111 = vmatprep.subr.mxu0 0.0
    %2112 = vmatpush1.msra.mxu0 0.0
    %2113 = vmatprep.subr.mxu0 0.0
    %2114 = vmatpush1.msra.mxu0 0.0
    %2115 = vmatprep.subr.mxu0 0.0
    %2116 = vmatpush1.msra.mxu0 0.0
    %2117 = vmatprep.subr.mxu0 0.0
    %2118 = vmatpush1.msra.mxu0 0.0
    %2119 = vmatprep.mubr.f32.mxu0 0.0
    %2120 = vmatmul.mubr.f32.gmra.mrb[0].mxu0 %v2053
    %v2121 = vpop.f32.mrb[0].mxu0
    %v2122 = vadd.f32 0.0, %v2121
    %v2123 = vpop.f32.mrb[0].mxu0
    %v2124 = vadd.f32 0.0, %v2123
    %2125 = vdwg.mxu0
    %v2126 = vadd.f32 %v2050, %v2122
    %v2127 = vadd.f32 %v2051, %v2124
    %v2128 = vxor.u32 %v2126, 2147483648
    %v2129 = vmul.f32 %v2128, 1.442695
    %v2130 = vpow.pop %v2129
    %v2131 = vadd.f32 %v2130, 1.0
    %v2132 = vrcp.pop %v2131
    %v2133 = vmul.f32 1.0, %v2132
    %v2134 = vtanh.pop %v2127
    %v2135 = vxor.u32 %v2127, 2147483648
    %v2136 = vmul.f32 %v2135, 1.442695
    %v2137 = vpow.pop %v2136
    %v2138 = vadd.f32 %v2137, 1.0
    %v2139 = vrcp.pop %v2138
    %v2140 = vmul.f32 1.0, %v2139
    %v2141 = vsel %vm86, %v2134, %v2140
    %v2142 = vmul.f32 %v2133, %v2043
    %v2143 = vmul.f32 %v2133, %v2141
    %2145 = vrot.lane.b32.xlu0 %v2143, 64
    %v2146 = vpop.permute.xlu0 %2145
    %v2148 = vadd.f32 %v2142, %v2146
    %v2149 = vtanh.pop %v2148
    %v2150 = vmul.f32 %v2141, %v2149
    %v2151 = vld [vmem:[#allocation2 + $0x40] sm:$0xff]
    %v2152 = vld [vmem:[#allocation2 + $0x48] sm:$0xff]
    %v2153 = vld [vmem:[#allocation2 + $0xb0] sm:$0xff]
    %v2154 = vld [vmem:[#allocation2 + $0xb8] sm:$0xff]
    %v2155 = vadd.f32 %v2151, %v2153
    %v2156 = vadd.f32 %v2152, %v2154
    %v2158 = vsel %vm455, %v2150, 0
    %2160 = vmatprep.subr.mxu0 %v1921
    %2161 = vmatpush1.msra.mxu0 %v1920
    %2162 = vmatprep.subr.mxu0 %v1923
    %2163 = vmatpush1.msra.mxu0 %v1922
    %2164 = vmatprep.subr.mxu0 %v1925
    %2165 = vmatpush1.msra.mxu0 %v1924
    %2166 = vmatprep.subr.mxu0 %v1927
    %2167 = vmatpush1.msra.mxu0 %v1926
    %2168 = vmatprep.subr.mxu0 %v1929
    %2169 = vmatpush1.msra.mxu0 %v1928
    %2170 = vmatprep.subr.mxu0 %v1931
    %2171 = vmatpush1.msra.mxu0 %v1930
    %2172 = vmatprep.subr.mxu0 %v1933
    %2173 = vmatpush1.msra.mxu0 %v1932
    %2174 = vmatprep.subr.mxu0 %v1935
    %2175 = vmatpush1.msra.mxu0 %v1934
    %2176 = vmatprep.subr.mxu0 0.0
    %2177 = vmatpush1.msra.mxu0 0.0
    %2178 = vmatprep.subr.mxu0 0.0
    %2179 = vmatpush1.msra.mxu0 0.0
    %2180 = vmatprep.subr.mxu0 0.0
    %2181 = vmatpush1.msra.mxu0 0.0
    %2182 = vmatprep.subr.mxu0 0.0
    %2183 = vmatpush1.msra.mxu0 0.0
    %2184 = vmatprep.subr.mxu0 0.0
    %2185 = vmatpush1.msra.mxu0 0.0
    %2186 = vmatprep.subr.mxu0 0.0
    %2187 = vmatpush1.msra.mxu0 0.0
    %2188 = vmatprep.subr.mxu0 0.0
    %2189 = vmatpush1.msra.mxu0 0.0
    %2190 = vmatprep.subr.mxu0 0.0
    %2191 = vmatpush1.msra.mxu0 0.0
    %2192 = vmatprep.subr.mxu0 0.0
    %2193 = vmatpush1.msra.mxu0 0.0
    %2194 = vmatprep.subr.mxu0 0.0
    %2195 = vmatpush1.msra.mxu0 0.0
    %2196 = vmatprep.subr.mxu0 0.0
    %2197 = vmatpush1.msra.mxu0 0.0
    %2198 = vmatprep.subr.mxu0 0.0
    %2199 = vmatpush1.msra.mxu0 0.0
    %2200 = vmatprep.subr.mxu0 0.0
    %2201 = vmatpush1.msra.mxu0 0.0
    %2202 = vmatprep.subr.mxu0 0.0
    %2203 = vmatpush1.msra.mxu0 0.0
    %2204 = vmatprep.subr.mxu0 0.0
    %2205 = vmatpush1.msra.mxu0 0.0
    %2206 = vmatprep.subr.mxu0 0.0
    %2207 = vmatpush1.msra.mxu0 0.0
    %2208 = vmatprep.subr.mxu0 0.0
    %2209 = vmatpush1.msra.mxu0 0.0
    %2210 = vmatprep.subr.mxu0 0.0
    %2211 = vmatpush1.msra.mxu0 0.0
    %2212 = vmatprep.subr.mxu0 0.0
    %2213 = vmatpush1.msra.mxu0 0.0
    %2214 = vmatprep.subr.mxu0 0.0
    %2215 = vmatpush1.msra.mxu0 0.0
    %2216 = vmatprep.subr.mxu0 0.0
    %2217 = vmatpush1.msra.mxu0 0.0
    %2218 = vmatprep.subr.mxu0 0.0
    %2219 = vmatpush1.msra.mxu0 0.0
    %2220 = vmatprep.subr.mxu0 0.0
    %2221 = vmatpush1.msra.mxu0 0.0
    %2222 = vmatprep.subr.mxu0 0.0
    %2223 = vmatpush1.msra.mxu0 0.0
    %2224 = vmatprep.mubr.f32.mxu0 0.0
    %2225 = vmatmul.mubr.f32.gmra.mrb[0].mxu0 %v2158
    %v2226 = vpop.f32.mrb[0].mxu0
    %v2227 = vadd.f32 0.0, %v2226
    %v2228 = vpop.f32.mrb[0].mxu0
    %v2229 = vadd.f32 0.0, %v2228
    %2230 = vdwg.mxu0
    %v2231 = vadd.f32 %v2155, %v2227
    %v2232 = vadd.f32 %v2156, %v2229
    %v2233 = vxor.u32 %v2231, 2147483648
    %v2234 = vmul.f32 %v2233, 1.442695
    %v2235 = vpow.pop %v2234
    %v2236 = vadd.f32 %v2235, 1.0
    %v2237 = vrcp.pop %v2236
    %v2238 = vmul.f32 1.0, %v2237
    %v2239 = vtanh.pop %v2232
    %v2240 = vxor.u32 %v2232, 2147483648
    %v2241 = vmul.f32 %v2240, 1.442695
    %v2242 = vpow.pop %v2241
    %v2243 = vadd.f32 %v2242, 1.0
    %v2244 = vrcp.pop %v2243
    %v2245 = vmul.f32 1.0, %v2244
    %v2246 = vsel %vm86, %v2239, %v2245
    %v2247 = vmul.f32 %v2238, %v2148
    %v2248 = vmul.f32 %v2238, %v2246
    %2250 = vrot.lane.b32.xlu0 %v2248, 64
    %v2251 = vpop.permute.xlu0 %2250
    %v2253 = vadd.f32 %v2247, %v2251
    %v2254 = vtanh.pop %v2253
    %v2255 = vmul.f32 %v2246, %v2254
    %v2256 = vld [vmem:[#allocation2 + $0x60] sm:$0xff]
    %v2257 = vld [vmem:[#allocation2 + $0x68] sm:$0xff]
    %v2258 = vld [vmem:[#allocation2 + $0x90] sm:$0xff]
    %v2259 = vld [vmem:[#allocation2 + $0x98] sm:$0xff]
    %v2260 = vadd.f32 %v2256, %v2258
    %v2261 = vadd.f32 %v2257, %v2259
    %v2263 = vsel %vm455, %v2255, 0
    %2265 = vmatprep.subr.mxu0 %v1921
    %2266 = vmatpush1.msra.mxu0 %v1920
    %2267 = vmatprep.subr.mxu0 %v1923
    %2268 = vmatpush1.msra.mxu0 %v1922
    %2269 = vmatprep.subr.mxu0 %v1925
    %2270 = vmatpush1.msra.mxu0 %v1924
    %2271 = vmatprep.subr.mxu0 %v1927
    %2272 = vmatpush1.msra.mxu0 %v1926
    %2273 = vmatprep.subr.mxu0 %v1929
    %2274 = vmatpush1.msra.mxu0 %v1928
    %2275 = vmatprep.subr.mxu0 %v1931
    %2276 = vmatpush1.msra.mxu0 %v1930
    %2277 = vmatprep.subr.mxu0 %v1933
    %2278 = vmatpush1.msra.mxu0 %v1932
    %2279 = vmatprep.subr.mxu0 %v1935
    %2280 = vmatpush1.msra.mxu0 %v1934
    %2281 = vmatprep.subr.mxu0 0.0
    %2282 = vmatpush1.msra.mxu0 0.0
    %2283 = vmatprep.subr.mxu0 0.0
    %2284 = vmatpush1.msra.mxu0 0.0
    %2285 = vmatprep.subr.mxu0 0.0
    %2286 = vmatpush1.msra.mxu0 0.0
    %2287 = vmatprep.subr.mxu0 0.0
    %2288 = vmatpush1.msra.mxu0 0.0
    %2289 = vmatprep.subr.mxu0 0.0
    %2290 = vmatpush1.msra.mxu0 0.0
    %2291 = vmatprep.subr.mxu0 0.0
    %2292 = vmatpush1.msra.mxu0 0.0
    %2293 = vmatprep.subr.mxu0 0.0
    %2294 = vmatpush1.msra.mxu0 0.0
    %2295 = vmatprep.subr.mxu0 0.0
    %2296 = vmatpush1.msra.mxu0 0.0
    %2297 = vmatprep.subr.mxu0 0.0
    %2298 = vmatpush1.msra.mxu0 0.0
    %2299 = vmatprep.subr.mxu0 0.0
    %2300 = vmatpush1.msra.mxu0 0.0
    %2301 = vmatprep.subr.mxu0 0.0
    %2302 = vmatpush1.msra.mxu0 0.0
    %2303 = vmatprep.subr.mxu0 0.0
    %2304 = vmatpush1.msra.mxu0 0.0
    %2305 = vmatprep.subr.mxu0 0.0
    %2306 = vmatpush1.msra.mxu0 0.0
    %2307 = vmatprep.subr.mxu0 0.0
    %2308 = vmatpush1.msra.mxu0 0.0
    %2309 = vmatprep.subr.mxu0 0.0
    %2310 = vmatpush1.msra.mxu0 0.0
    %2311 = vmatprep.subr.mxu0 0.0
    %2312 = vmatpush1.msra.mxu0 0.0
    %2313 = vmatprep.subr.mxu0 0.0
    %2314 = vmatpush1.msra.mxu0 0.0
    %2315 = vmatprep.subr.mxu0 0.0
    %2316 = vmatpush1.msra.mxu0 0.0
    %2317 = vmatprep.subr.mxu0 0.0
    %2318 = vmatpush1.msra.mxu0 0.0
    %2319 = vmatprep.subr.mxu0 0.0
    %2320 = vmatpush1.msra.mxu0 0.0
    %2321 = vmatprep.subr.mxu0 0.0
    %2322 = vmatpush1.msra.mxu0 0.0
    %2323 = vmatprep.subr.mxu0 0.0
    %2324 = vmatpush1.msra.mxu0 0.0
    %2325 = vmatprep.subr.mxu0 0.0
    %2326 = vmatpush1.msra.mxu0 0.0
    %2327 = vmatprep.subr.mxu0 0.0
    %2328 = vmatpush1.msra.mxu0 0.0
    %2329 = vmatprep.mubr.f32.mxu0 0.0
    %2330 = vmatmul.mubr.f32.gmra.mrb[0].mxu0 %v2263
    %v2331 = vpop.f32.mrb[0].mxu0
    %v2332 = vadd.f32 0.0, %v2331
    %v2333 = vpop.f32.mrb[0].mxu0
    %v2334 = vadd.f32 0.0, %v2333
    %2335 = vdwg.mxu0
    %v2336 = vadd.f32 %v2260, %v2332
    %v2337 = vadd.f32 %v2261, %v2334
    %v2338 = vxor.u32 %v2336, 2147483648
    %v2339 = vmul.f32 %v2338, 1.442695
    %v2340 = vpow.pop %v2339
    %v2341 = vadd.f32 %v2340, 1.0
    %v2342 = vrcp.pop %v2341
    %v2343 = vmul.f32 1.0, %v2342
    %v2344 = vtanh.pop %v2337
    %v2345 = vxor.u32 %v2337, 2147483648
    %v2346 = vmul.f32 %v2345, 1.442695
    %v2347 = vpow.pop %v2346
    %v2348 = vadd.f32 %v2347, 1.0
    %v2349 = vrcp.pop %v2348
    %v2350 = vmul.f32 1.0, %v2349
    %v2351 = vsel %vm86, %v2344, %v2350
    %v2352 = vmul.f32 %v2343, %v2253
    %v2353 = vmul.f32 %v2343, %v2351
    %2355 = vrot.lane.b32.xlu0 %v2353, 64
    %v2356 = vpop.permute.xlu0 %2355
    %v2358 = vadd.f32 %v2352, %v2356
    %v2359 = vtanh.pop %v2358
    %v2360 = vmul.f32 %v2351, %v2359
    %v2361 = vld [vmem:[#allocation2 + $0x80] sm:$0xff]
    %v2362 = vld [vmem:[#allocation2 + $0x88] sm:$0xff]
    %v2363 = vld [vmem:[#allocation2 + $0x70] sm:$0xff]
    %v2364 = vld [vmem:[#allocation2 + $0x78] sm:$0xff]
    %v2365 = vadd.f32 %v2361, %v2363
    %v2366 = vadd.f32 %v2362, %v2364
    %v2368 = vsel %vm455, %v2360, 0
    %2370 = vmatprep.subr.mxu0 %v1921
    %2371 = vmatpush1.msra.mxu0 %v1920
    %2372 = vmatprep.subr.mxu0 %v1923
    %2373 = vmatpush1.msra.mxu0 %v1922
    %2374 = vmatprep.subr.mxu0 %v1925
    %2375 = vmatpush1.msra.mxu0 %v1924
    %2376 = vmatprep.subr.mxu0 %v1927
    %2377 = vmatpush1.msra.mxu0 %v1926
    %2378 = vmatprep.subr.mxu0 %v1929
    %2379 = vmatpush1.msra.mxu0 %v1928
    %2380 = vmatprep.subr.mxu0 %v1931
    %2381 = vmatpush1.msra.mxu0 %v1930
    %2382 = vmatprep.subr.mxu0 %v1933
    %2383 = vmatpush1.msra.mxu0 %v1932
    %2384 = vmatprep.subr.mxu0 %v1935
    %2385 = vmatpush1.msra.mxu0 %v1934
    %2386 = vmatprep.subr.mxu0 0.0
    %2387 = vmatpush1.msra.mxu0 0.0
    %2388 = vmatprep.subr.mxu0 0.0
    %2389 = vmatpush1.msra.mxu0 0.0
    %2390 = vmatprep.subr.mxu0 0.0
    %2391 = vmatpush1.msra.mxu0 0.0
    %2392 = vmatprep.subr.mxu0 0.0
    %2393 = vmatpush1.msra.mxu0 0.0
    %2394 = vmatprep.subr.mxu0 0.0
    %2395 = vmatpush1.msra.mxu0 0.0
    %2396 = vmatprep.subr.mxu0 0.0
    %2397 = vmatpush1.msra.mxu0 0.0
    %2398 = vmatprep.subr.mxu0 0.0
    %2399 = vmatpush1.msra.mxu0 0.0
    %2400 = vmatprep.subr.mxu0 0.0
    %2401 = vmatpush1.msra.mxu0 0.0
    %2402 = vmatprep.subr.mxu0 0.0
    %2403 = vmatpush1.msra.mxu0 0.0
    %2404 = vmatprep.subr.mxu0 0.0
    %2405 = vmatpush1.msra.mxu0 0.0
    %2406 = vmatprep.subr.mxu0 0.0
    %2407 = vmatpush1.msra.mxu0 0.0
    %2408 = vmatprep.subr.mxu0 0.0
    %2409 = vmatpush1.msra.mxu0 0.0
    %2410 = vmatprep.subr.mxu0 0.0
    %2411 = vmatpush1.msra.mxu0 0.0
    %2412 = vmatprep.subr.mxu0 0.0
    %2413 = vmatpush1.msra.mxu0 0.0
    %2414 = vmatprep.subr.mxu0 0.0
    %2415 = vmatpush1.msra.mxu0 0.0
    %2416 = vmatprep.subr.mxu0 0.0
    %2417 = vmatpush1.msra.mxu0 0.0
    %2418 = vmatprep.subr.mxu0 0.0
    %2419 = vmatpush1.msra.mxu0 0.0
    %2420 = vmatprep.subr.mxu0 0.0
    %2421 = vmatpush1.msra.mxu0 0.0
    %2422 = vmatprep.subr.mxu0 0.0
    %2423 = vmatpush1.msra.mxu0 0.0
    %2424 = vmatprep.subr.mxu0 0.0
    %2425 = vmatpush1.msra.mxu0 0.0
    %2426 = vmatprep.subr.mxu0 0.0
    %2427 = vmatpush1.msra.mxu0 0.0
    %2428 = vmatprep.subr.mxu0 0.0
    %2429 = vmatpush1.msra.mxu0 0.0
    %2430 = vmatprep.subr.mxu0 0.0
    %2431 = vmatpush1.msra.mxu0 0.0
    %2432 = vmatprep.subr.mxu0 0.0
    %2433 = vmatpush1.msra.mxu0 0.0
    %2434 = vmatprep.mubr.f32.mxu0 0.0
    %2435 = vmatmul.mubr.f32.gmra.mrb[0].mxu0 %v2368
    %v2436 = vpop.f32.mrb[0].mxu0
    %v2437 = vadd.f32 0.0, %v2436
    %v2438 = vpop.f32.mrb[0].mxu0
    %v2439 = vadd.f32 0.0, %v2438
    %2440 = vdwg.mxu0
    %v2441 = vadd.f32 %v2365, %v2437
    %v2442 = vadd.f32 %v2366, %v2439
    %v2443 = vxor.u32 %v2441, 2147483648
    %v2444 = vmul.f32 %v2443, 1.442695
    %v2445 = vpow.pop %v2444
    %v2446 = vadd.f32 %v2445, 1.0
    %v2447 = vrcp.pop %v2446
    %v2448 = vmul.f32 1.0, %v2447
    %v2449 = vtanh.pop %v2442
    %v2450 = vxor.u32 %v2442, 2147483648
    %v2451 = vmul.f32 %v2450, 1.442695
    %v2452 = vpow.pop %v2451
    %v2453 = vadd.f32 %v2452, 1.0
    %v2454 = vrcp.pop %v2453
    %v2455 = vmul.f32 1.0, %v2454
    %v2456 = vsel %vm86, %v2449, %v2455
    %v2457 = vmul.f32 %v2448, %v2358
    %v2458 = vmul.f32 %v2448, %v2456
    %2460 = vrot.lane.b32.xlu0 %v2458, 64
    %v2461 = vpop.permute.xlu0 %2460
    %v2463 = vadd.f32 %v2457, %v2461
    %v2464 = vtanh.pop %v2463
    %v2465 = vmul.f32 %v2456, %v2464
    %v2466 = vld [vmem:[#allocation2 + $0xa0] sm:$0xff]
    %v2467 = vld [vmem:[#allocation2 + $0xa8] sm:$0xff]
    %v2468 = vld [vmem:[#allocation2 + $0x50] sm:$0xff]
    %v2469 = vld [vmem:[#allocation2 + $0x58] sm:$0xff]
    %v2470 = vadd.f32 %v2466, %v2468
    %v2471 = vadd.f32 %v2467, %v2469
    %v2473 = vsel %vm455, %v2465, 0
    %2475 = vmatprep.subr.mxu0 %v1921
    %2476 = vmatpush1.msra.mxu0 %v1920
    %2477 = vmatprep.subr.mxu0 %v1923
    %2478 = vmatpush1.msra.mxu0 %v1922
    %2479 = vmatprep.subr.mxu0 %v1925
    %2480 = vmatpush1.msra.mxu0 %v1924
    %2481 = vmatprep.subr.mxu0 %v1927
    %2482 = vmatpush1.msra.mxu0 %v1926
    %2483 = vmatprep.subr.mxu0 %v1929
    %2484 = vmatpush1.msra.mxu0 %v1928
    %2485 = vmatprep.subr.mxu0 %v1931
    %2486 = vmatpush1.msra.mxu0 %v1930
    %2487 = vmatprep.subr.mxu0 %v1933
    %2488 = vmatpush1.msra.mxu0 %v1932
    %2489 = vmatprep.subr.mxu0 %v1935
    %2490 = vmatpush1.msra.mxu0 %v1934
    %2491 = vmatprep.subr.mxu0 0.0
    %2492 = vmatpush1.msra.mxu0 0.0
    %2493 = vmatprep.subr.mxu0 0.0
    %2494 = vmatpush1.msra.mxu0 0.0
    %2495 = vmatprep.subr.mxu0 0.0
    %2496 = vmatpush1.msra.mxu0 0.0
    %2497 = vmatprep.subr.mxu0 0.0
    %2498 = vmatpush1.msra.mxu0 0.0
    %2499 = vmatprep.subr.mxu0 0.0
    %2500 = vmatpush1.msra.mxu0 0.0
    %2501 = vmatprep.subr.mxu0 0.0
    %2502 = vmatpush1.msra.mxu0 0.0
    %2503 = vmatprep.subr.mxu0 0.0
    %2504 = vmatpush1.msra.mxu0 0.0
    %2505 = vmatprep.subr.mxu0 0.0
    %2506 = vmatpush1.msra.mxu0 0.0
    %2507 = vmatprep.subr.mxu0 0.0
    %2508 = vmatpush1.msra.mxu0 0.0
    %2509 = vmatprep.subr.mxu0 0.0
    %2510 = vmatpush1.msra.mxu0 0.0
    %2511 = vmatprep.subr.mxu0 0.0
    %2512 = vmatpush1.msra.mxu0 0.0
    %2513 = vmatprep.subr.mxu0 0.0
    %2514 = vmatpush1.msra.mxu0 0.0
    %2515 = vmatprep.subr.mxu0 0.0
    %2516 = vmatpush1.msra.mxu0 0.0
    %2517 = vmatprep.subr.mxu0 0.0
    %2518 = vmatpush1.msra.mxu0 0.0
    %2519 = vmatprep.subr.mxu0 0.0
    %2520 = vmatpush1.msra.mxu0 0.0
    %2521 = vmatprep.subr.mxu0 0.0
    %2522 = vmatpush1.msra.mxu0 0.0
    %2523 = vmatprep.subr.mxu0 0.0
    %2524 = vmatpush1.msra.mxu0 0.0
    %2525 = vmatprep.subr.mxu0 0.0
    %2526 = vmatpush1.msra.mxu0 0.0
    %2527 = vmatprep.subr.mxu0 0.0
    %2528 = vmatpush1.msra.mxu0 0.0
    %2529 = vmatprep.subr.mxu0 0.0
    %2530 = vmatpush1.msra.mxu0 0.0
    %2531 = vmatprep.subr.mxu0 0.0
    %2532 = vmatpush1.msra.mxu0 0.0
    %2533 = vmatprep.subr.mxu0 0.0
    %2534 = vmatpush1.msra.mxu0 0.0
    %2535 = vmatprep.subr.mxu0 0.0
    %2536 = vmatpush1.msra.mxu0 0.0
    %2537 = vmatprep.subr.mxu0 0.0
    %2538 = vmatpush1.msra.mxu0 0.0
    %2539 = vmatprep.mubr.f32.mxu0 0.0
    %2540 = vmatmul.mubr.f32.gmra.mrb[0].mxu0 %v2473
    %v2541 = vpop.f32.mrb[0].mxu0
    %v2542 = vadd.f32 0.0, %v2541
    %v2543 = vpop.f32.mrb[0].mxu0
    %v2544 = vadd.f32 0.0, %v2543
    %2545 = vdwg.mxu0
    %v2546 = vadd.f32 %v2470, %v2542
    %v2547 = vadd.f32 %v2471, %v2544
    %v2548 = vxor.u32 %v2546, 2147483648
    %v2549 = vmul.f32 %v2548, 1.442695
    %v2550 = vpow.pop %v2549
    %v2551 = vadd.f32 %v2550, 1.0
    %v2552 = vrcp.pop %v2551
    %v2553 = vmul.f32 1.0, %v2552
    %v2554 = vtanh.pop %v2547
    %v2555 = vxor.u32 %v2547, 2147483648
    %v2556 = vmul.f32 %v2555, 1.442695
    %v2557 = vpow.pop %v2556
    %v2558 = vadd.f32 %v2557, 1.0
    %v2559 = vrcp.pop %v2558
    %v2560 = vmul.f32 1.0, %v2559
    %v2561 = vsel %vm86, %v2554, %v2560
    %v2562 = vmul.f32 %v2553, %v2463
    %v2563 = vmul.f32 %v2553, %v2561
    %2565 = vrot.lane.b32.xlu0 %v2563, 64
    %v2566 = vpop.permute.xlu0 %2565
    %v2568 = vadd.f32 %v2562, %v2566
    %v2569 = vtanh.pop %v2568
    %v2570 = vmul.f32 %v2561, %v2569
    %v2571 = vld [vmem:[#allocation2 + $0xc0] sm:$0xff]
    %v2572 = vld [vmem:[#allocation2 + $0xc8] sm:$0xff]
    %v2573 = vld [vmem:[#allocation2 + $0x30] sm:$0xff]
    %v2574 = vld [vmem:[#allocation2 + $0x38] sm:$0xff]
    %v2575 = vadd.f32 %v2571, %v2573
    %v2576 = vadd.f32 %v2572, %v2574
    %v2578 = vsel %vm455, %v2570, 0
    %2580 = vmatprep.subr.mxu0 %v1921
    %2581 = vmatpush1.msra.mxu0 %v1920
    %2582 = vmatprep.subr.mxu0 %v1923
    %2583 = vmatpush1.msra.mxu0 %v1922
    %2584 = vmatprep.subr.mxu0 %v1925
    %2585 = vmatpush1.msra.mxu0 %v1924
    %2586 = vmatprep.subr.mxu0 %v1927
    %2587 = vmatpush1.msra.mxu0 %v1926
    %2588 = vmatprep.subr.mxu0 %v1929
    %2589 = vmatpush1.msra.mxu0 %v1928
    %2590 = vmatprep.subr.mxu0 %v1931
    %2591 = vmatpush1.msra.mxu0 %v1930
    %2592 = vmatprep.subr.mxu0 %v1933
    %2593 = vmatpush1.msra.mxu0 %v1932
    %2594 = vmatprep.subr.mxu0 %v1935
    %2595 = vmatpush1.msra.mxu0 %v1934
    %2596 = vmatprep.subr.mxu0 0.0
    %2597 = vmatpush1.msra.mxu0 0.0
    %2598 = vmatprep.subr.mxu0 0.0
    %2599 = vmatpush1.msra.mxu0 0.0
    %2600 = vmatprep.subr.mxu0 0.0
    %2601 = vmatpush1.msra.mxu0 0.0
    %2602 = vmatprep.subr.mxu0 0.0
    %2603 = vmatpush1.msra.mxu0 0.0
    %2604 = vmatprep.subr.mxu0 0.0
    %2605 = vmatpush1.msra.mxu0 0.0
    %2606 = vmatprep.subr.mxu0 0.0
    %2607 = vmatpush1.msra.mxu0 0.0
    %2608 = vmatprep.subr.mxu0 0.0
    %2609 = vmatpush1.msra.mxu0 0.0
    %2610 = vmatprep.subr.mxu0 0.0
    %2611 = vmatpush1.msra.mxu0 0.0
    %2612 = vmatprep.subr.mxu0 0.0
    %2613 = vmatpush1.msra.mxu0 0.0
    %2614 = vmatprep.subr.mxu0 0.0
    %2615 = vmatpush1.msra.mxu0 0.0
    %2616 = vmatprep.subr.mxu0 0.0
    %2617 = vmatpush1.msra.mxu0 0.0
    %2618 = vmatprep.subr.mxu0 0.0
    %2619 = vmatpush1.msra.mxu0 0.0
    %2620 = vmatprep.subr.mxu0 0.0
    %2621 = vmatpush1.msra.mxu0 0.0
    %2622 = vmatprep.subr.mxu0 0.0
    %2623 = vmatpush1.msra.mxu0 0.0
    %2624 = vmatprep.subr.mxu0 0.0
    %2625 = vmatpush1.msra.mxu0 0.0
    %2626 = vmatprep.subr.mxu0 0.0
    %2627 = vmatpush1.msra.mxu0 0.0
    %2628 = vmatprep.subr.mxu0 0.0
    %2629 = vmatpush1.msra.mxu0 0.0
    %2630 = vmatprep.subr.mxu0 0.0
    %2631 = vmatpush1.msra.mxu0 0.0
    %2632 = vmatprep.subr.mxu0 0.0
    %2633 = vmatpush1.msra.mxu0 0.0
    %2634 = vmatprep.subr.mxu0 0.0
    %2635 = vmatpush1.msra.mxu0 0.0
    %2636 = vmatprep.subr.mxu0 0.0
    %2637 = vmatpush1.msra.mxu0 0.0
    %2638 = vmatprep.subr.mxu0 0.0
    %2639 = vmatpush1.msra.mxu0 0.0
    %2640 = vmatprep.subr.mxu0 0.0
    %2641 = vmatpush1.msra.mxu0 0.0
    %2642 = vmatprep.subr.mxu0 0.0
    %2643 = vmatpush1.msra.mxu0 0.0
    %2644 = vmatprep.mubr.f32.mxu0 0.0
    %2645 = vmatmul.mubr.f32.gmra.mrb[0].mxu0 %v2578
    %v2646 = vpop.f32.mrb[0].mxu0
    %v2647 = vadd.f32 0.0, %v2646
    %v2648 = vpop.f32.mrb[0].mxu0
    %v2649 = vadd.f32 0.0, %v2648
    %2650 = vdwg.mxu0
    %v2651 = vadd.f32 %v2575, %v2647
    %v2652 = vadd.f32 %v2576, %v2649
    %v2653 = vxor.u32 %v2651, 2147483648
    %v2654 = vmul.f32 %v2653, 1.442695
    %v2655 = vpow.pop %v2654
    %v2656 = vadd.f32 %v2655, 1.0
    %v2657 = vrcp.pop %v2656
    %v2658 = vmul.f32 1.0, %v2657
    %v2659 = vtanh.pop %v2652
    %v2660 = vxor.u32 %v2652, 2147483648
    %v2661 = vmul.f32 %v2660, 1.442695
    %v2662 = vpow.pop %v2661
    %v2663 = vadd.f32 %v2662, 1.0
    %v2664 = vrcp.pop %v2663
    %v2665 = vmul.f32 1.0, %v2664
    %v2666 = vsel %vm86, %v2659, %v2665
    %v2667 = vmul.f32 %v2658, %v2568
    %v2668 = vmul.f32 %v2658, %v2666
    %2670 = vrot.lane.b32.xlu0 %v2668, 64
    %v2671 = vpop.permute.xlu0 %2670
    %v2673 = vadd.f32 %v2667, %v2671
    %v2674 = vtanh.pop %v2673
    %v2675 = vmul.f32 %v2666, %v2674
    %v2676 = vld [vmem:[#allocation2 + $0xe0] sm:$0xff]
    %v2677 = vld [vmem:[#allocation2 + $0xe8] sm:$0xff]
    %v2678 = vld [vmem:[#allocation2 + $0x10] sm:$0xff]
    %v2679 = vld [vmem:[#allocation2 + $0x18] sm:$0xff]
    %v2680 = vadd.f32 %v2676, %v2678
    %v2681 = vadd.f32 %v2677, %v2679
    %v2683 = vsel %vm455, %v2675, 0
    %2685 = vmatprep.subr.mxu0 %v1921
    %2686 = vmatpush1.msra.mxu0 %v1920
    %2687 = vmatprep.subr.mxu0 %v1923
    %2688 = vmatpush1.msra.mxu0 %v1922
    %2689 = vmatprep.subr.mxu0 %v1925
    %2690 = vmatpush1.msra.mxu0 %v1924
    %2691 = vmatprep.subr.mxu0 %v1927
    %2692 = vmatpush1.msra.mxu0 %v1926
    %2693 = vmatprep.subr.mxu0 %v1929
    %2694 = vmatpush1.msra.mxu0 %v1928
    %2695 = vmatprep.subr.mxu0 %v1931
    %2696 = vmatpush1.msra.mxu0 %v1930
    %2697 = vmatprep.subr.mxu0 %v1933
    %2698 = vmatpush1.msra.mxu0 %v1932
    %2699 = vmatprep.subr.mxu0 %v1935
    %2700 = vmatpush1.msra.mxu0 %v1934
    %2701 = vmatprep.subr.mxu0 0.0
    %2702 = vmatpush1.msra.mxu0 0.0
    %2703 = vmatprep.subr.mxu0 0.0
    %2704 = vmatpush1.msra.mxu0 0.0
    %2705 = vmatprep.subr.mxu0 0.0
    %2706 = vmatpush1.msra.mxu0 0.0
    %2707 = vmatprep.subr.mxu0 0.0
    %2708 = vmatpush1.msra.mxu0 0.0
    %2709 = vmatprep.subr.mxu0 0.0
    %2710 = vmatpush1.msra.mxu0 0.0
    %2711 = vmatprep.subr.mxu0 0.0
    %2712 = vmatpush1.msra.mxu0 0.0
    %2713 = vmatprep.subr.mxu0 0.0
    %2714 = vmatpush1.msra.mxu0 0.0
    %2715 = vmatprep.subr.mxu0 0.0
    %2716 = vmatpush1.msra.mxu0 0.0
    %2717 = vmatprep.subr.mxu0 0.0
    %2718 = vmatpush1.msra.mxu0 0.0
    %2719 = vmatprep.subr.mxu0 0.0
    %2720 = vmatpush1.msra.mxu0 0.0
    %2721 = vmatprep.subr.mxu0 0.0
    %2722 = vmatpush1.msra.mxu0 0.0
    %2723 = vmatprep.subr.mxu0 0.0
    %2724 = vmatpush1.msra.mxu0 0.0
    %2725 = vmatprep.subr.mxu0 0.0
    %2726 = vmatpush1.msra.mxu0 0.0
    %2727 = vmatprep.subr.mxu0 0.0
    %2728 = vmatpush1.msra.mxu0 0.0
    %2729 = vmatprep.subr.mxu0 0.0
    %2730 = vmatpush1.msra.mxu0 0.0
    %2731 = vmatprep.subr.mxu0 0.0
    %2732 = vmatpush1.msra.mxu0 0.0
    %2733 = vmatprep.subr.mxu0 0.0
    %2734 = vmatpush1.msra.mxu0 0.0
    %2735 = vmatprep.subr.mxu0 0.0
    %2736 = vmatpush1.msra.mxu0 0.0
    %2737 = vmatprep.subr.mxu0 0.0
    %2738 = vmatpush1.msra.mxu0 0.0
    %2739 = vmatprep.subr.mxu0 0.0
    %2740 = vmatpush1.msra.mxu0 0.0
    %2741 = vmatprep.subr.mxu0 0.0
    %2742 = vmatpush1.msra.mxu0 0.0
    %2743 = vmatprep.subr.mxu0 0.0
    %2744 = vmatpush1.msra.mxu0 0.0
    %2745 = vmatprep.subr.mxu0 0.0
    %2746 = vmatpush1.msra.mxu0 0.0
    %2747 = vmatprep.subr.mxu0 0.0
    %2748 = vmatpush1.msra.mxu0 0.0
    %2749 = vmatprep.mubr.f32.mxu0 0.0
    %2750 = vmatmul.mubr.f32.gmra.mrb[0].mxu0 %v2683
    %v2751 = vpop.f32.mrb[0].mxu0
    %v2752 = vadd.f32 0.0, %v2751
    %v2753 = vpop.f32.mrb[0].mxu0
    %v2754 = vadd.f32 0.0, %v2753
    %2755 = vdwg.mxu0
    %v2756 = vadd.f32 %v2680, %v2752
    %v2757 = vadd.f32 %v2681, %v2754
    %v2758 = vxor.u32 %v2756, 2147483648
    %v2759 = vmul.f32 %v2758, 1.442695
    %v2760 = vpow.pop %v2759
    %v2761 = vadd.f32 %v2760, 1.0
    %v2762 = vrcp.pop %v2761
    %v2763 = vmul.f32 1.0, %v2762
    %v2764 = vtanh.pop %v2757
    %v2765 = vxor.u32 %v2757, 2147483648
    %v2766 = vmul.f32 %v2765, 1.442695
    %v2767 = vpow.pop %v2766
    %v2768 = vadd.f32 %v2767, 1.0
    %v2769 = vrcp.pop %v2768
    %v2770 = vmul.f32 1.0, %v2769
    %v2771 = vsel %vm86, %v2764, %v2770
    %v2772 = vmul.f32 %v2763, %v2673
    %v2773 = vmul.f32 %v2763, %v2771
    %2775 = vrot.lane.b32.xlu0 %v2773, 64
    %v2776 = vpop.permute.xlu0 %2775
    %v2778 = vadd.f32 %v2772, %v2776
    %v2779 = vtanh.pop %v2778
    %v2780 = vmul.f32 %v2771, %v2779
    %2782 = vrot.lane.b32.xlu0 %v2778, 64
    %v2783 = vpop.permute.xlu0 %2782
    %v2785 = vsel %vm455, %v2780, %v2783
    %s2786 = scalar_lea.vmem %s3, 8
    %2787 = vst [vmem:[%s2786] sm:$0xff] %v2785
    %v2788 = vld [vmem:[#allocation3 + $0x420] sm:$0xff]
    %v2789 = vld [vmem:[#allocation3 + $0x440] sm:$0xff]
    %v2790 = vld [vmem:[#allocation3 + $0x460] sm:$0xff]
    %v2791 = vld [vmem:[#allocation3 + $0x480] sm:$0xff]
    %v2792 = vld [vmem:[#allocation3 + $0x4a0] ss:$0 sm:$0xff]
    %2793 = vrot.lane.b32.xlu0 %v2045, 96
    %v2794 = vpop.permute.xlu0 %2793
    %v2795 = vsel %vm1348, %v2794, 0
    %2797 = vmatprep.subr.mxu0 0.0
    %2798 = vmatpush1.msra.mxu0 %v2788
    %2799 = vmatprep.subr.mxu0 0.0
    %2800 = vmatpush1.msra.mxu0 %v2789
    %2801 = vmatprep.subr.mxu0 0.0
    %2802 = vmatpush1.msra.mxu0 %v2790
    %2803 = vmatprep.subr.mxu0 0.0
    %2804 = vmatpush1.msra.mxu0 %v2791
    %2805 = vmatprep.subr.mxu0 0.0
    %2806 = vmatpush1.msra.mxu0 0.0
    %2807 = vmatprep.subr.mxu0 0.0
    %2808 = vmatpush1.msra.mxu0 0.0
    %2809 = vmatprep.subr.mxu0 0.0
    %2810 = vmatpush1.msra.mxu0 0.0
    %2811 = vmatprep.subr.mxu0 0.0
    %2812 = vmatpush1.msra.mxu0 0.0
    %2813 = vmatprep.subr.mxu0 0.0
    %2814 = vmatpush1.msra.mxu0 0.0
    %2815 = vmatprep.subr.mxu0 0.0
    %2816 = vmatpush1.msra.mxu0 0.0
    %2817 = vmatprep.subr.mxu0 0.0
    %2818 = vmatpush1.msra.mxu0 0.0
    %2819 = vmatprep.subr.mxu0 0.0
    %2820 = vmatpush1.msra.mxu0 0.0
    %2821 = vmatprep.subr.mxu0 0.0
    %2822 = vmatpush1.msra.mxu0 0.0
    %2823 = vmatprep.subr.mxu0 0.0
    %2824 = vmatpush1.msra.mxu0 0.0
    %2825 = vmatprep.subr.mxu0 0.0
    %2826 = vmatpush1.msra.mxu0 0.0
    %2827 = vmatprep.subr.mxu0 0.0
    %2828 = vmatpush1.msra.mxu0 0.0
    %2829 = vmatprep.subr.mxu0 0.0
    %2830 = vmatpush1.msra.mxu0 0.0
    %2831 = vmatprep.subr.mxu0 0.0
    %2832 = vmatpush1.msra.mxu0 0.0
    %2833 = vmatprep.subr.mxu0 0.0
    %2834 = vmatpush1.msra.mxu0 0.0
    %2835 = vmatprep.subr.mxu0 0.0
    %2836 = vmatpush1.msra.mxu0 0.0
    %2837 = vmatprep.subr.mxu0 0.0
    %2838 = vmatpush1.msra.mxu0 0.0
    %2839 = vmatprep.subr.mxu0 0.0
    %2840 = vmatpush1.msra.mxu0 0.0
    %2841 = vmatprep.subr.mxu0 0.0
    %2842 = vmatpush1.msra.mxu0 0.0
    %2843 = vmatprep.subr.mxu0 0.0
    %2844 = vmatpush1.msra.mxu0 0.0
    %2845 = vmatprep.subr.mxu0 0.0
    %2846 = vmatpush1.msra.mxu0 0.0
    %2847 = vmatprep.subr.mxu0 0.0
    %2848 = vmatpush1.msra.mxu0 0.0
    %2849 = vmatprep.subr.mxu0 0.0
    %2850 = vmatpush1.msra.mxu0 0.0
    %2851 = vmatprep.subr.mxu0 0.0
    %2852 = vmatpush1.msra.mxu0 0.0
    %2853 = vmatprep.subr.mxu0 0.0
    %2854 = vmatpush1.msra.mxu0 0.0
    %2855 = vmatprep.subr.mxu0 0.0
    %2856 = vmatpush1.msra.mxu0 0.0
    %2857 = vmatprep.subr.mxu0 0.0
    %2858 = vmatpush1.msra.mxu0 0.0
    %2859 = vmatprep.subr.mxu0 0.0
    %2860 = vmatpush1.msra.mxu0 0.0
    %2861 = vmatprep.mubr.f32.mxu0 0.0
    %2862 = vmatmul.mubr.f32.gmra.mrb[0].mxu0 %v2795
    %v2863 = vpop.f32.mrb[0].mxu0
    %v2864 = vadd.f32 %v2792, %v2863
    %v2865 = vpop.f32.mrb[0].mxu0
    %2866 = vdwg.mxu0
    %v2867 = vxor.u32 %v2864, 2147483648
    %v2868 = vmul.f32 %v2867, 1.442695
    %v2869 = vpow.pop %v2868
    %v2870 = vadd.f32 %v2869, 1.0
    %v2871 = vrcp.pop %v2870
    %v2872 = vmul.f32 1.0, %v2871
    %s2873 = scalar_lea.vmem %s3, 16
    %2874 = vst [vmem:[%s2873] sm:$0xff] %v2872
    // Predicated region
    $region18: #{bilstm_forward.1} parent=1 // pred_check
      _
    $region19: #{bilstm_forward.1} parent=1 // pred_check_branch
      %2876 = sbr.rel (0) target = $region21
    $region20: #{bilstm_forward.1} parent=1 // pred_region
      _
    $region21: #{bilstm_forward.1} parent=1 // pred_fallthru
      _
    // Predicated region
    $region22: #{bilstm_forward.1} parent=1 // pred_check
      _
    $region23: #{bilstm_forward.1} parent=1 // pred_check_branch
      %2878 = sbr.rel (0) target = $region25
    $region24: #{bilstm_forward.1} parent=1 // pred_region
      _
    $region25: #{bilstm_forward.1} parent=1 // pred_fallthru
      _
    %2879 = vsyncpa [#allocation4], 1

</llo_original>
